<compile_context>
chip_gen: v7x
topology: tpu7x:2x2x1
jax: 0.10.0
libtpu: 0.0.40
codegen_flags: <defaults>
</compile_context>

<pallas_src>
import jax
import jax.numpy as jnp
import numpy as np
from jax import lax
from jax.experimental import pallas as pl
from jax.experimental.pallas import tpu as pltpu

POOL = 10         # number of prompts in the pool
PROMPT_LEN = 5    # tokens per prompt
EMBED_DIM = 1000  # embedding dim used by the module
TOP_K = 5         # topk size used by the module
BATCH = 2


# ----------------------------------------------------------------------------
# Single fused kernel: normalize + similarity + selection + gather + reduce.
# ----------------------------------------------------------------------------
def _fused_prompt_kernel(pk_ref, x_ref, pool_ref,
                         pn_ref, xn_ref, sim_ref, idx_ref,
                         selkey_ref, gp_ref, rs_ref):
    P, D = pk_ref.shape
    B = x_ref.shape[0]
    K = idx_ref.shape[1]
    eps = jnp.float32(1e-12)
    f32 = jnp.float32

    # ---- L2 normalize (module semantics: x * rsqrt(max(sum(x^2), eps))) ----
    pk = pk_ref[...]                                                   # (P, D)
    pn = pk * lax.rsqrt(jnp.maximum(
        jnp.sum(pk * pk, axis=1, keepdims=True), eps))
    pn_ref[...] = pn

    x = x_ref[...]                                                     # (B, D)
    xn = x * lax.rsqrt(jnp.maximum(
        jnp.sum(x * x, axis=1, keepdims=True), eps))
    xn_ref[...] = xn

    # ---- cosine similarity (B, P) on the MXU: xn @ pn^T ----------------------
    sim = lax.dot_general(xn, pn, (((1,), (1,)), ((), ())),
                          preferred_element_type=jnp.float32)          # (B, P)
    sim_ref[...] = sim

    # ---- per-row top-K membership via rank (ties -> lower index wins, same
    #      tie-breaking as lax.top_k); similarity is tiny (B=2, P=10) so the
    #      unrolled VPU rank arithmetic is essentially free -------------------
    lane_bp = lax.broadcasted_iota(jnp.int32, (B, P), 1)
    rank = jnp.zeros((B, P), f32)
    for j in range(P):
        sj = sim[:, j:j + 1]                                           # (B, 1)
        beats = (sj > sim) | ((sj == sim) & (lane_bp > j))
        rank = rank + beats.astype(f32)
    selected = (rank < K).astype(f32)          # (B, P), exactly K ones per row

    # ---- vote counts per prompt id and top-K "major" ids ---------------------
    counts = jnp.sum(selected, axis=0, keepdims=True)                  # (1, P)
    lane_1p = lax.broadcasted_iota(jnp.int32, (1, P), 1)
    crank = jnp.zeros((1, P), f32)
    for j in range(P):
        cj = counts[:, j:j + 1]
        beats = (cj > counts) | ((cj == counts) & (lane_1p > j))
        crank = crank + beats.astype(f32)
    major = (crank < K).astype(f32)                    # (1, P), exactly K ones

    # position of each selected id in ascending-id order (== torch.sort)
    sel_rank = jnp.zeros((1, P), f32)
    for j in range(P):
        sel_rank = sel_rank + major[:, j:j + 1] * (lane_1p > j).astype(f32)

    # ---- prompt_idx output (B, K): k-th smallest selected id -----------------
    kio = lax.broadcasted_iota(jnp.int32, (B, K), 1).astype(f32)
    idx_f = jnp.zeros((B, K), f32)
    for p in range(P):
        hit = major[:, p:p + 1] * (sel_rank[:, p:p + 1] == kio).astype(f32)
        idx_f = idx_f + f32(p) * hit
    idx_ref[...] = (idx_f + 0.5).astype(jnp.int32)     # exact for P=10

    # ---- one-hot (K, P): row k selects the k-th smallest major id ------------
    krow = lax.broadcasted_iota(jnp.int32, (K, P), 0).astype(f32)
    onehot = (jnp.broadcast_to(major, (K, P)) *
              (jnp.broadcast_to(sel_rank, (K, P)) == krow).astype(f32))

    # ---- gather selected prompt keys on the MXU (one-hot rows -> exact) ------
    selk = jnp.dot(onehot, pn, preferred_element_type=jnp.float32)     # (K, D)
    selkey_ref[...] = selk

    # ---- gather selected prompts (pool rows) on the MXU ----------------------
    # TODO(synk): a scalar-prefetch-driven DMA row gather would move only the
    # 5 selected rows HBM->VMEM, but it needs the ids before kernel launch;
    # per the review the one-hot MXU dot is the right call at this size.
    gp_ref[...] = jnp.dot(onehot, pool_ref[...],
                          preferred_element_type=jnp.float32)          # (K, L*D)

    # ---- reduce_sim -----------------------------------------------------------
    # Valid factorization because all batch rows share the same major ids.
    xsum = jnp.sum(xn, axis=0, keepdims=True)                          # (1, D)
    ksum = jnp.sum(selk, axis=0, keepdims=True)                        # (1, D)
    rs_ref[...] = jnp.sum(xsum * ksum, axis=1, keepdims=True) * f32(1.0 / B)


# ----------------------------------------------------------------------------
# Wrapper reproducing Prompt.forward
# ----------------------------------------------------------------------------
def prompt_forward(params, x):
    prompt_key = params["prompt_key"]            # (P, D)
    pool_flat = params["prompt_pool_flat"]       # (P, L*D), contiguous, no pad
    P, D = prompt_key.shape
    L = PROMPT_LEN
    K = TOP_K
    B = x.shape[0]

    vmem = pl.BlockSpec(memory_space=pltpu.MemorySpace.VMEM)

    pn, xn, sim, idx, selkey, gp, rs = pl.pallas_call(
        _fused_prompt_kernel,
        out_shape=(
            jax.ShapeDtypeStruct((P, D), jnp.float32),        # prompt_norm
            jax.ShapeDtypeStruct((B, D), jnp.float32),        # x_embed_norm
            jax.ShapeDtypeStruct((B, P), jnp.float32),        # similarity
            jax.ShapeDtypeStruct((B, K), jnp.int32),          # prompt_idx
            jax.ShapeDtypeStruct((K, D), jnp.float32),        # selected keys
            jax.ShapeDtypeStruct((K, L * D), jnp.float32),    # gathered prompts
            jax.ShapeDtypeStruct((1, 1), jnp.float32),        # reduce_sim
        ),
        in_specs=[vmem, vmem, vmem],
        out_specs=(vmem,) * 7,
    )(prompt_key, x, pool_flat)

    # ---- cheap XLA glue: contiguous reshape + lazy broadcasts + concat -------
    selected_key = jnp.broadcast_to(selkey[None, :, :], (B, K, D))
    batched_prompt = jnp.broadcast_to(gp.reshape(1, K * L * D), (B, K * L * D))

    return {
        "prompt_idx": idx,
        "prompt_norm": pn,
        "x_embed_norm": xn,
        "sim": sim,
        "selected_key": selected_key,
        "reduce_sim": rs[0, 0],
        "prompted_embedding": jnp.concatenate([batched_prompt, x], axis=1),
    }


def init_params(key):
    kp, kk = jax.random.split(key)
    # nn.init.uniform_(tensor, 0, 0.01)
    prompt = jax.random.uniform(kp, (POOL, PROMPT_LEN, EMBED_DIM),
                                jnp.float32, 0.0, 0.01)
    prompt_key = jax.random.uniform(kk, (POOL, EMBED_DIM),
                                    jnp.float32, 0.0, 0.01)
    return {
        "prompt": prompt,                                       # (P, L, D)
        "prompt_key": prompt_key,                               # (P, D)
        "prompt_pool_flat": prompt.reshape(POOL, PROMPT_LEN * EMBED_DIM),
    }


def reference_forward(params, x):
    """Pure-JAX mirror of the PyTorch module (used only for the self-check)."""
    prompt = params["prompt"]                   # (P, L, D)
    prompt_key = params["prompt_key"]           # (P, D)
    P, L, D = prompt.shape
    B = x.shape[0]
    K = TOP_K
    eps = 1e-12
    pn = prompt_key * lax.rsqrt(jnp.maximum(
        jnp.sum(prompt_key * prompt_key, axis=1, keepdims=True), eps))
    xn = x * lax.rsqrt(jnp.maximum(
        jnp.sum(x * x, axis=1, keepdims=True), eps))
    sim = jnp.matmul(xn, pn.T, precision=jax.lax.Precision.HIGHEST)
    _, idx_raw = jax.lax.top_k(sim, K)
    counts = jnp.bincount(idx_raw.reshape(-1), length=P)
    _, major = jax.lax.top_k(counts, K)
    ids = jnp.sort(major).astype(jnp.int32)
    idx = jnp.broadcast_to(ids[None, :], (B, K))
    gathered = prompt[ids]                                    # (K, L, D)
    batched_prompt = jnp.broadcast_to(
        gathered.reshape(1, K * L * D), (B, K * L * D))
    sel_keys = pn[ids]                                        # (K, D)
    selected_key = jnp.broadcast_to(sel_keys[None], (B, K, D))
    reduce_sim = jnp.sum(selected_key * xn[:, None, :]) / B
    return {
        "prompt_idx": idx,
        "prompt_norm": pn,
        "x_embed_norm": xn,
        "sim": sim,
        "selected_key": selected_key,
        "reduce_sim": reduce_sim,
        "prompted_embedding": jnp.concatenate([batched_prompt, x], axis=1),
    }


if __name__ == "__main__":
    root = jax.random.PRNGKey(0)
    kparams, kx = jax.random.split(root)
    params = init_params(kparams)
    x = jax.random.normal(kx, (BATCH, EMBED_DIM), jnp.float32)

    fwd = jax.jit(prompt_forward)
    res = fwd(params, x)
    jax.block_until_ready(res)

    # ---- shape checks --------------------------------------------------------
    assert res["prompt_idx"].shape == (BATCH, TOP_K)
    assert res["prompt_norm"].shape == (POOL, EMBED_DIM)
    assert res["x_embed_norm"].shape == (BATCH, EMBED_DIM)
    assert res["sim"].shape == (BATCH, POOL)
    assert res["selected_key"].shape == (BATCH, TOP_K, EMBED_DIM)
    assert res["prompted_embedding"].shape == (
        BATCH, TOP_K * PROMPT_LEN * EMBED_DIM + EMBED_DIM)
    assert res["reduce_sim"].shape == ()

    # ---- numerical self-check vs. pure-JAX reference -------------------------
    ref = jax.jit(reference_forward)(params, x)
    jax.block_until_ready(ref)
    np.testing.assert_array_equal(np.asarray(res["prompt_idx"]),
                                  np.asarray(ref["prompt_idx"]))
    np.testing.assert_allclose(np.asarray(res["prompt_norm"]),
                               np.asarray(ref["prompt_norm"]), atol=1e-5, rtol=1e-5)
    np.testing.assert_allclose(np.asarray(res["x_embed_norm"]),
                               np.asarray(ref["x_embed_norm"]), atol=1e-5, rtol=1e-5)
    np.testing.assert_allclose(np.asarray(res["sim"]),
                               np.asarray(ref["sim"]), atol=1e-4, rtol=1e-4)
    np.testing.assert_allclose(np.asarray(res["selected_key"]),
                               np.asarray(ref["selected_key"]), atol=1e-5, rtol=1e-5)
    np.testing.assert_allclose(np.asarray(res["prompted_embedding"]),
                               np.asarray(ref["prompted_embedding"]),
                               atol=1e-5, rtol=1e-5)
    np.testing.assert_allclose(float(res["reduce_sim"]),
                               float(ref["reduce_sim"]), atol=1e-4, rtol=1e-4)

    print("KERNEL_OK")
</pallas_src>

<mosaic_0001>
module attributes {stable_mosaic.version = 11 : i64} {
  func.func @_fused_prompt_kernel(%arg0: memref<10x1000xf32, #tpu.memory_space<vmem>>, %arg1: memref<2x1000xf32, #tpu.memory_space<vmem>>, %arg2: memref<10x5000xf32, #tpu.memory_space<vmem>>, %arg3: memref<10x1000xf32, #tpu.memory_space<vmem>>, %arg4: memref<2x1000xf32, #tpu.memory_space<vmem>>, %arg5: memref<2x10xf32, #tpu.memory_space<vmem>>, %arg6: memref<2x5xi32, #tpu.memory_space<vmem>>, %arg7: memref<5x1000xf32, #tpu.memory_space<vmem>>, %arg8: memref<5x5000xf32, #tpu.memory_space<vmem>>, %arg9: memref<1x1xf32, #tpu.memory_space<vmem>>) attributes {dimension_semantics = [], scalar_prefetch = 0 : i64, scratch_operands = 0 : i64, tpu.core_type = #tpu.core_type<tc>} {
    %c0 = arith.constant 0 : index
    %c0_0 = arith.constant 0 : index
    %0 = vector.load %arg0[%c0, %c0_0] : memref<10x1000xf32, #tpu.memory_space<vmem>>, vector<10x1000xf32>
    %1 = arith.mulf %0, %0 : vector<10x1000xf32>
    %cst = arith.constant dense<0.000000e+00> : vector<10xf32>
    %2 = vector.multi_reduction <add>, %1, %cst [1] : vector<10x1000xf32> to vector<10xf32>
    %3 = vector.shape_cast %2 : vector<10xf32> to vector<10x1xf32>
    %cst_1 = arith.constant 9.99999996E-13 : f32
    %4 = vector.broadcast %cst_1 : f32 to vector<10x1xf32>
    %5 = arith.maximumf %3, %4 : vector<10x1xf32>
    %6 = math.rsqrt %5 : vector<10x1xf32>
    %7 = vector.broadcast %6 : vector<10x1xf32> to vector<10x1000xf32>
    %8 = arith.mulf %0, %7 : vector<10x1000xf32>
    %c0_2 = arith.constant 0 : index
    %c0_3 = arith.constant 0 : index
    %9 = vector.load %arg3[%c0_2, %c0_3] : memref<10x1000xf32, #tpu.memory_space<vmem>>, vector<10x1000xf32>
    tpu.vector_store %arg3[%c0_2, %c0_3], %8 {strides = array<i32>} : memref<10x1000xf32, #tpu.memory_space<vmem>>, vector<10x1000xf32>,
    %c0_4 = arith.constant 0 : index
    %c0_5 = arith.constant 0 : index
    %10 = vector.load %arg1[%c0_4, %c0_5] : memref<2x1000xf32, #tpu.memory_space<vmem>>, vector<2x1000xf32>
    %11 = arith.mulf %10, %10 : vector<2x1000xf32>
    %cst_6 = arith.constant dense<0.000000e+00> : vector<2xf32>
    %12 = vector.multi_reduction <add>, %11, %cst_6 [1] : vector<2x1000xf32> to vector<2xf32>
    %13 = vector.shape_cast %12 : vector<2xf32> to vector<2x1xf32>
    %cst_7 = arith.constant 9.99999996E-13 : f32
    %14 = vector.broadcast %cst_7 : f32 to vector<2x1xf32>
    %15 = arith.maximumf %13, %14 : vector<2x1xf32>
    %16 = math.rsqrt %15 : vector<2x1xf32>
    %17 = vector.broadcast %16 : vector<2x1xf32> to vector<2x1000xf32>
    %18 = arith.mulf %10, %17 : vector<2x1000xf32>
    %c0_8 = arith.constant 0 : index
    %c0_9 = arith.constant 0 : index
    %19 = vector.load %arg4[%c0_8, %c0_9] : memref<2x1000xf32, #tpu.memory_space<vmem>>, vector<2x1000xf32>
    tpu.vector_store %arg4[%c0_8, %c0_9], %18 {strides = array<i32>} : memref<2x1000xf32, #tpu.memory_space<vmem>>, vector<2x1000xf32>,
    %cst_10 = arith.constant dense<0.000000e+00> : vector<2x10xf32>
    %20 = tpu.matmul %18, %8, %cst_10 {dimension_numbers = #tpu.dot_dimension_numbers<[1], [1], [0], [0], [0, 0, 1, 0], [], []>} : vector<2x1000xf32>, vector<10x1000xf32>, vector<2x10xf32> -> vector<2x10xf32>
    %c0_11 = arith.constant 0 : index
    %c0_12 = arith.constant 0 : index
    %21 = vector.load %arg5[%c0_11, %c0_12] : memref<2x10xf32, #tpu.memory_space<vmem>>, vector<2x10xf32>
    tpu.vector_store %arg5[%c0_11, %c0_12], %20 {strides = array<i32>} : memref<2x10xf32, #tpu.memory_space<vmem>>, vector<2x10xf32>,
    %22 = tpu.iota {dimensions = array<i32: 1>} : vector<2x10xi32>
    %cst_13 = arith.constant 0.000000e+00 : f32
    %23 = vector.broadcast %cst_13 : f32 to vector<2x10xf32>
    %24 = vector.extract_strided_slice %20 {offsets = [0, 0], sizes = [2, 1], strides = [1, 1]} : vector<2x10xf32> to vector<2x1xf32>
    %25 = vector.broadcast %24 : vector<2x1xf32> to vector<2x10xf32>
    %26 = arith.cmpf ogt, %25, %20 : vector<2x10xf32>
    %27 = vector.broadcast %24 : vector<2x1xf32> to vector<2x10xf32>
    %28 = arith.cmpf oeq, %27, %20 : vector<2x10xf32>
    %c0_i32 = arith.constant 0 : i32
    %29 = vector.broadcast %c0_i32 : i32 to vector<2x10xi32>
    %30 = arith.cmpi sgt, %22, %29 : vector<2x10xi32>
    %31 = arith.andi %28, %30 : vector<2x10xi1>
    %32 = arith.ori %26, %31 : vector<2x10xi1>
    %33 = arith.extui %32 : vector<2x10xi1> to vector<2x10xi32>
    %34 = arith.sitofp %33 : vector<2x10xi32> to vector<2x10xf32>
    %35 = arith.addf %23, %34 : vector<2x10xf32>
    %36 = vector.extract_strided_slice %20 {offsets = [0, 1], sizes = [2, 1], strides = [1, 1]} : vector<2x10xf32> to vector<2x1xf32>
    %37 = vector.broadcast %36 : vector<2x1xf32> to vector<2x10xf32>
    %38 = arith.cmpf ogt, %37, %20 : vector<2x10xf32>
    %39 = vector.broadcast %36 : vector<2x1xf32> to vector<2x10xf32>
    %40 = arith.cmpf oeq, %39, %20 : vector<2x10xf32>
    %c1_i32 = arith.constant 1 : i32
    %41 = vector.broadcast %c1_i32 : i32 to vector<2x10xi32>
    %42 = arith.cmpi sgt, %22, %41 : vector<2x10xi32>
    %43 = arith.andi %40, %42 : vector<2x10xi1>
    %44 = arith.ori %38, %43 : vector<2x10xi1>
    %45 = arith.extui %44 : vector<2x10xi1> to vector<2x10xi32>
    %46 = arith.sitofp %45 : vector<2x10xi32> to vector<2x10xf32>
    %47 = arith.addf %35, %46 : vector<2x10xf32>
    %48 = vector.extract_strided_slice %20 {offsets = [0, 2], sizes = [2, 1], strides = [1, 1]} : vector<2x10xf32> to vector<2x1xf32>
    %49 = vector.broadcast %48 : vector<2x1xf32> to vector<2x10xf32>
    %50 = arith.cmpf ogt, %49, %20 : vector<2x10xf32>
    %51 = vector.broadcast %48 : vector<2x1xf32> to vector<2x10xf32>
    %52 = arith.cmpf oeq, %51, %20 : vector<2x10xf32>
    %c2_i32 = arith.constant 2 : i32
    %53 = vector.broadcast %c2_i32 : i32 to vector<2x10xi32>
    %54 = arith.cmpi sgt, %22, %53 : vector<2x10xi32>
    %55 = arith.andi %52, %54 : vector<2x10xi1>
    %56 = arith.ori %50, %55 : vector<2x10xi1>
    %57 = arith.extui %56 : vector<2x10xi1> to vector<2x10xi32>
    %58 = arith.sitofp %57 : vector<2x10xi32> to vector<2x10xf32>
    %59 = arith.addf %47, %58 : vector<2x10xf32>
    %60 = vector.extract_strided_slice %20 {offsets = [0, 3], sizes = [2, 1], strides = [1, 1]} : vector<2x10xf32> to vector<2x1xf32>
    %61 = vector.broadcast %60 : vector<2x1xf32> to vector<2x10xf32>
    %62 = arith.cmpf ogt, %61, %20 : vector<2x10xf32>
    %63 = vector.broadcast %60 : vector<2x1xf32> to vector<2x10xf32>
    %64 = arith.cmpf oeq, %63, %20 : vector<2x10xf32>
    %c3_i32 = arith.constant 3 : i32
    %65 = vector.broadcast %c3_i32 : i32 to vector<2x10xi32>
    %66 = arith.cmpi sgt, %22, %65 : vector<2x10xi32>
    %67 = arith.andi %64, %66 : vector<2x10xi1>
    %68 = arith.ori %62, %67 : vector<2x10xi1>
    %69 = arith.extui %68 : vector<2x10xi1> to vector<2x10xi32>
    %70 = arith.sitofp %69 : vector<2x10xi32> to vector<2x10xf32>
    %71 = arith.addf %59, %70 : vector<2x10xf32>
    %72 = vector.extract_strided_slice %20 {offsets = [0, 4], sizes = [2, 1], strides = [1, 1]} : vector<2x10xf32> to vector<2x1xf32>
    %73 = vector.broadcast %72 : vector<2x1xf32> to vector<2x10xf32>
    %74 = arith.cmpf ogt, %73, %20 : vector<2x10xf32>
    %75 = vector.broadcast %72 : vector<2x1xf32> to vector<2x10xf32>
    %76 = arith.cmpf oeq, %75, %20 : vector<2x10xf32>
    %c4_i32 = arith.constant 4 : i32
    %77 = vector.broadcast %c4_i32 : i32 to vector<2x10xi32>
    %78 = arith.cmpi sgt, %22, %77 : vector<2x10xi32>
    %79 = arith.andi %76, %78 : vector<2x10xi1>
    %80 = arith.ori %74, %79 : vector<2x10xi1>
    %81 = arith.extui %80 : vector<2x10xi1> to vector<2x10xi32>
    %82 = arith.sitofp %81 : vector<2x10xi32> to vector<2x10xf32>
    %83 = arith.addf %71, %82 : vector<2x10xf32>
    %84 = vector.extract_strided_slice %20 {offsets = [0, 5], sizes = [2, 1], strides = [1, 1]} : vector<2x10xf32> to vector<2x1xf32>
    %85 = vector.broadcast %84 : vector<2x1xf32> to vector<2x10xf32>
    %86 = arith.cmpf ogt, %85, %20 : vector<2x10xf32>
    %87 = vector.broadcast %84 : vector<2x1xf32> to vector<2x10xf32>
    %88 = arith.cmpf oeq, %87, %20 : vector<2x10xf32>
    %c5_i32 = arith.constant 5 : i32
    %89 = vector.broadcast %c5_i32 : i32 to vector<2x10xi32>
    %90 = arith.cmpi sgt, %22, %89 : vector<2x10xi32>
    %91 = arith.andi %88, %90 : vector<2x10xi1>
    %92 = arith.ori %86, %91 : vector<2x10xi1>
    %93 = arith.extui %92 : vector<2x10xi1> to vector<2x10xi32>
    %94 = arith.sitofp %93 : vector<2x10xi32> to vector<2x10xf32>
    %95 = arith.addf %83, %94 : vector<2x10xf32>
    %96 = vector.extract_strided_slice %20 {offsets = [0, 6], sizes = [2, 1], strides = [1, 1]} : vector<2x10xf32> to vector<2x1xf32>
    %97 = vector.broadcast %96 : vector<2x1xf32> to vector<2x10xf32>
    %98 = arith.cmpf ogt, %97, %20 : vector<2x10xf32>
    %99 = vector.broadcast %96 : vector<2x1xf32> to vector<2x10xf32>
    %100 = arith.cmpf oeq, %99, %20 : vector<2x10xf32>
    %c6_i32 = arith.constant 6 : i32
    %101 = vector.broadcast %c6_i32 : i32 to vector<2x10xi32>
    %102 = arith.cmpi sgt, %22, %101 : vector<2x10xi32>
    %103 = arith.andi %100, %102 : vector<2x10xi1>
    %104 = arith.ori %98, %103 : vector<2x10xi1>
    %105 = arith.extui %104 : vector<2x10xi1> to vector<2x10xi32>
    %106 = arith.sitofp %105 : vector<2x10xi32> to vector<2x10xf32>
    %107 = arith.addf %95, %106 : vector<2x10xf32>
    %108 = vector.extract_strided_slice %20 {offsets = [0, 7], sizes = [2, 1], strides = [1, 1]} : vector<2x10xf32> to vector<2x1xf32>
    %109 = vector.broadcast %108 : vector<2x1xf32> to vector<2x10xf32>
    %110 = arith.cmpf ogt, %109, %20 : vector<2x10xf32>
    %111 = vector.broadcast %108 : vector<2x1xf32> to vector<2x10xf32>
    %112 = arith.cmpf oeq, %111, %20 : vector<2x10xf32>
    %c7_i32 = arith.constant 7 : i32
    %113 = vector.broadcast %c7_i32 : i32 to vector<2x10xi32>
    %114 = arith.cmpi sgt, %22, %113 : vector<2x10xi32>
    %115 = arith.andi %112, %114 : vector<2x10xi1>
    %116 = arith.ori %110, %115 : vector<2x10xi1>
    %117 = arith.extui %116 : vector<2x10xi1> to vector<2x10xi32>
    %118 = arith.sitofp %117 : vector<2x10xi32> to vector<2x10xf32>
    %119 = arith.addf %107, %118 : vector<2x10xf32>
    %120 = vector.extract_strided_slice %20 {offsets = [0, 8], sizes = [2, 1], strides = [1, 1]} : vector<2x10xf32> to vector<2x1xf32>
    %121 = vector.broadcast %120 : vector<2x1xf32> to vector<2x10xf32>
    %122 = arith.cmpf ogt, %121, %20 : vector<2x10xf32>
    %123 = vector.broadcast %120 : vector<2x1xf32> to vector<2x10xf32>
    %124 = arith.cmpf oeq, %123, %20 : vector<2x10xf32>
    %c8_i32 = arith.constant 8 : i32
    %125 = vector.broadcast %c8_i32 : i32 to vector<2x10xi32>
    %126 = arith.cmpi sgt, %22, %125 : vector<2x10xi32>
    %127 = arith.andi %124, %126 : vector<2x10xi1>
    %128 = arith.ori %122, %127 : vector<2x10xi1>
    %129 = arith.extui %128 : vector<2x10xi1> to vector<2x10xi32>
    %130 = arith.sitofp %129 : vector<2x10xi32> to vector<2x10xf32>
    %131 = arith.addf %119, %130 : vector<2x10xf32>
    %132 = vector.extract_strided_slice %20 {offsets = [0, 9], sizes = [2, 1], strides = [1, 1]} : vector<2x10xf32> to vector<2x1xf32>
    %133 = vector.broadcast %132 : vector<2x1xf32> to vector<2x10xf32>
    %134 = arith.cmpf ogt, %133, %20 : vector<2x10xf32>
    %135 = vector.broadcast %132 : vector<2x1xf32> to vector<2x10xf32>
    %136 = arith.cmpf oeq, %135, %20 : vector<2x10xf32>
    %c9_i32 = arith.constant 9 : i32
    %137 = vector.broadcast %c9_i32 : i32 to vector<2x10xi32>
    %138 = arith.cmpi sgt, %22, %137 : vector<2x10xi32>
    %139 = arith.andi %136, %138 : vector<2x10xi1>
    %140 = arith.ori %134, %139 : vector<2x10xi1>
    %141 = arith.extui %140 : vector<2x10xi1> to vector<2x10xi32>
    %142 = arith.sitofp %141 : vector<2x10xi32> to vector<2x10xf32>
    %143 = arith.addf %131, %142 : vector<2x10xf32>
    %cst_14 = arith.constant 5.000000e+00 : f32
    %144 = vector.broadcast %cst_14 : f32 to vector<2x10xf32>
    %145 = arith.cmpf olt, %143, %144 : vector<2x10xf32>
    %146 = arith.extui %145 : vector<2x10xi1> to vector<2x10xi32>
    %147 = arith.sitofp %146 : vector<2x10xi32> to vector<2x10xf32>
    %cst_15 = arith.constant dense<0.000000e+00> : vector<10xf32>
    %148 = vector.multi_reduction <add>, %147, %cst_15 [0] : vector<2x10xf32> to vector<10xf32>
    %149 = vector.shape_cast %148 : vector<10xf32> to vector<1x10xf32>
    %150 = tpu.iota {dimensions = array<i32: 1>} : vector<1x10xi32>
    %cst_16 = arith.constant 0.000000e+00 : f32
    %151 = vector.broadcast %cst_16 : f32 to vector<1x10xf32>
    %152 = vector.extract_strided_slice %149 {offsets = [0, 0], sizes = [1, 1], strides = [1, 1]} : vector<1x10xf32> to vector<1x1xf32>
    %153 = vector.broadcast %152 : vector<1x1xf32> to vector<1x10xf32>
    %154 = arith.cmpf ogt, %153, %149 : vector<1x10xf32>
    %155 = vector.broadcast %152 : vector<1x1xf32> to vector<1x10xf32>
    %156 = arith.cmpf oeq, %155, %149 : vector<1x10xf32>
    %c0_i32_17 = arith.constant 0 : i32
    %157 = vector.broadcast %c0_i32_17 : i32 to vector<1x10xi32>
    %158 = arith.cmpi sgt, %150, %157 : vector<1x10xi32>
    %159 = arith.andi %156, %158 : vector<1x10xi1>
    %160 = arith.ori %154, %159 : vector<1x10xi1>
    %161 = arith.extui %160 : vector<1x10xi1> to vector<1x10xi32>
    %162 = arith.sitofp %161 : vector<1x10xi32> to vector<1x10xf32>
    %163 = arith.addf %151, %162 : vector<1x10xf32>
    %164 = vector.extract_strided_slice %149 {offsets = [0, 1], sizes = [1, 1], strides = [1, 1]} : vector<1x10xf32> to vector<1x1xf32>
    %165 = vector.broadcast %164 : vector<1x1xf32> to vector<1x10xf32>
    %166 = arith.cmpf ogt, %165, %149 : vector<1x10xf32>
    %167 = vector.broadcast %164 : vector<1x1xf32> to vector<1x10xf32>
    %168 = arith.cmpf oeq, %167, %149 : vector<1x10xf32>
    %c1_i32_18 = arith.constant 1 : i32
    %169 = vector.broadcast %c1_i32_18 : i32 to vector<1x10xi32>
    %170 = arith.cmpi sgt, %150, %169 : vector<1x10xi32>
    %171 = arith.andi %168, %170 : vector<1x10xi1>
    %172 = arith.ori %166, %171 : vector<1x10xi1>
    %173 = arith.extui %172 : vector<1x10xi1> to vector<1x10xi32>
    %174 = arith.sitofp %173 : vector<1x10xi32> to vector<1x10xf32>
    %175 = arith.addf %163, %174 : vector<1x10xf32>
    %176 = vector.extract_strided_slice %149 {offsets = [0, 2], sizes = [1, 1], strides = [1, 1]} : vector<1x10xf32> to vector<1x1xf32>
    %177 = vector.broadcast %176 : vector<1x1xf32> to vector<1x10xf32>
    %178 = arith.cmpf ogt, %177, %149 : vector<1x10xf32>
    %179 = vector.broadcast %176 : vector<1x1xf32> to vector<1x10xf32>
    %180 = arith.cmpf oeq, %179, %149 : vector<1x10xf32>
    %c2_i32_19 = arith.constant 2 : i32
    %181 = vector.broadcast %c2_i32_19 : i32 to vector<1x10xi32>
    %182 = arith.cmpi sgt, %150, %181 : vector<1x10xi32>
    %183 = arith.andi %180, %182 : vector<1x10xi1>
    %184 = arith.ori %178, %183 : vector<1x10xi1>
    %185 = arith.extui %184 : vector<1x10xi1> to vector<1x10xi32>
    %186 = arith.sitofp %185 : vector<1x10xi32> to vector<1x10xf32>
    %187 = arith.addf %175, %186 : vector<1x10xf32>
    %188 = vector.extract_strided_slice %149 {offsets = [0, 3], sizes = [1, 1], strides = [1, 1]} : vector<1x10xf32> to vector<1x1xf32>
    %189 = vector.broadcast %188 : vector<1x1xf32> to vector<1x10xf32>
    %190 = arith.cmpf ogt, %189, %149 : vector<1x10xf32>
    %191 = vector.broadcast %188 : vector<1x1xf32> to vector<1x10xf32>
    %192 = arith.cmpf oeq, %191, %149 : vector<1x10xf32>
    %c3_i32_20 = arith.constant 3 : i32
    %193 = vector.broadcast %c3_i32_20 : i32 to vector<1x10xi32>
    %194 = arith.cmpi sgt, %150, %193 : vector<1x10xi32>
    %195 = arith.andi %192, %194 : vector<1x10xi1>
    %196 = arith.ori %190, %195 : vector<1x10xi1>
    %197 = arith.extui %196 : vector<1x10xi1> to vector<1x10xi32>
    %198 = arith.sitofp %197 : vector<1x10xi32> to vector<1x10xf32>
    %199 = arith.addf %187, %198 : vector<1x10xf32>
    %200 = vector.extract_strided_slice %149 {offsets = [0, 4], sizes = [1, 1], strides = [1, 1]} : vector<1x10xf32> to vector<1x1xf32>
    %201 = vector.broadcast %200 : vector<1x1xf32> to vector<1x10xf32>
    %202 = arith.cmpf ogt, %201, %149 : vector<1x10xf32>
    %203 = vector.broadcast %200 : vector<1x1xf32> to vector<1x10xf32>
    %204 = arith.cmpf oeq, %203, %149 : vector<1x10xf32>
    %c4_i32_21 = arith.constant 4 : i32
    %205 = vector.broadcast %c4_i32_21 : i32 to vector<1x10xi32>
    %206 = arith.cmpi sgt, %150, %205 : vector<1x10xi32>
    %207 = arith.andi %204, %206 : vector<1x10xi1>
    %208 = arith.ori %202, %207 : vector<1x10xi1>
    %209 = arith.extui %208 : vector<1x10xi1> to vector<1x10xi32>
    %210 = arith.sitofp %209 : vector<1x10xi32> to vector<1x10xf32>
    %211 = arith.addf %199, %210 : vector<1x10xf32>
    %212 = vector.extract_strided_slice %149 {offsets = [0, 5], sizes = [1, 1], strides = [1, 1]} : vector<1x10xf32> to vector<1x1xf32>
    %213 = vector.broadcast %212 : vector<1x1xf32> to vector<1x10xf32>
    %214 = arith.cmpf ogt, %213, %149 : vector<1x10xf32>
    %215 = vector.broadcast %212 : vector<1x1xf32> to vector<1x10xf32>
    %216 = arith.cmpf oeq, %215, %149 : vector<1x10xf32>
    %c5_i32_22 = arith.constant 5 : i32
    %217 = vector.broadcast %c5_i32_22 : i32 to vector<1x10xi32>
    %218 = arith.cmpi sgt, %150, %217 : vector<1x10xi32>
    %219 = arith.andi %216, %218 : vector<1x10xi1>
    %220 = arith.ori %214, %219 : vector<1x10xi1>
    %221 = arith.extui %220 : vector<1x10xi1> to vector<1x10xi32>
    %222 = arith.sitofp %221 : vector<1x10xi32> to vector<1x10xf32>
    %223 = arith.addf %211, %222 : vector<1x10xf32>
    %224 = vector.extract_strided_slice %149 {offsets = [0, 6], sizes = [1, 1], strides = [1, 1]} : vector<1x10xf32> to vector<1x1xf32>
    %225 = vector.broadcast %224 : vector<1x1xf32> to vector<1x10xf32>
    %226 = arith.cmpf ogt, %225, %149 : vector<1x10xf32>
    %227 = vector.broadcast %224 : vector<1x1xf32> to vector<1x10xf32>
    %228 = arith.cmpf oeq, %227, %149 : vector<1x10xf32>
    %c6_i32_23 = arith.constant 6 : i32
    %229 = vector.broadcast %c6_i32_23 : i32 to vector<1x10xi32>
    %230 = arith.cmpi sgt, %150, %229 : vector<1x10xi32>
    %231 = arith.andi %228, %230 : vector<1x10xi1>
    %232 = arith.ori %226, %231 : vector<1x10xi1>
    %233 = arith.extui %232 : vector<1x10xi1> to vector<1x10xi32>
    %234 = arith.sitofp %233 : vector<1x10xi32> to vector<1x10xf32>
    %235 = arith.addf %223, %234 : vector<1x10xf32>
    %236 = vector.extract_strided_slice %149 {offsets = [0, 7], sizes = [1, 1], strides = [1, 1]} : vector<1x10xf32> to vector<1x1xf32>
    %237 = vector.broadcast %236 : vector<1x1xf32> to vector<1x10xf32>
    %238 = arith.cmpf ogt, %237, %149 : vector<1x10xf32>
    %239 = vector.broadcast %236 : vector<1x1xf32> to vector<1x10xf32>
    %240 = arith.cmpf oeq, %239, %149 : vector<1x10xf32>
    %c7_i32_24 = arith.constant 7 : i32
    %241 = vector.broadcast %c7_i32_24 : i32 to vector<1x10xi32>
    %242 = arith.cmpi sgt, %150, %241 : vector<1x10xi32>
    %243 = arith.andi %240, %242 : vector<1x10xi1>
    %244 = arith.ori %238, %243 : vector<1x10xi1>
    %245 = arith.extui %244 : vector<1x10xi1> to vector<1x10xi32>
    %246 = arith.sitofp %245 : vector<1x10xi32> to vector<1x10xf32>
    %247 = arith.addf %235, %246 : vector<1x10xf32>
    %248 = vector.extract_strided_slice %149 {offsets = [0, 8], sizes = [1, 1], strides = [1, 1]} : vector<1x10xf32> to vector<1x1xf32>
    %249 = vector.broadcast %248 : vector<1x1xf32> to vector<1x10xf32>
    %250 = arith.cmpf ogt, %249, %149 : vector<1x10xf32>
    %251 = vector.broadcast %248 : vector<1x1xf32> to vector<1x10xf32>
    %252 = arith.cmpf oeq, %251, %149 : vector<1x10xf32>
    %c8_i32_25 = arith.constant 8 : i32
    %253 = vector.broadcast %c8_i32_25 : i32 to vector<1x10xi32>
    %254 = arith.cmpi sgt, %150, %253 : vector<1x10xi32>
    %255 = arith.andi %252, %254 : vector<1x10xi1>
    %256 = arith.ori %250, %255 : vector<1x10xi1>
    %257 = arith.extui %256 : vector<1x10xi1> to vector<1x10xi32>
    %258 = arith.sitofp %257 : vector<1x10xi32> to vector<1x10xf32>
    %259 = arith.addf %247, %258 : vector<1x10xf32>
    %260 = vector.extract_strided_slice %149 {offsets = [0, 9], sizes = [1, 1], strides = [1, 1]} : vector<1x10xf32> to vector<1x1xf32>
    %261 = vector.broadcast %260 : vector<1x1xf32> to vector<1x10xf32>
    %262 = arith.cmpf ogt, %261, %149 : vector<1x10xf32>
    %263 = vector.broadcast %260 : vector<1x1xf32> to vector<1x10xf32>
    %264 = arith.cmpf oeq, %263, %149 : vector<1x10xf32>
    %c9_i32_26 = arith.constant 9 : i32
    %265 = vector.broadcast %c9_i32_26 : i32 to vector<1x10xi32>
    %266 = arith.cmpi sgt, %150, %265 : vector<1x10xi32>
    %267 = arith.andi %264, %266 : vector<1x10xi1>
    %268 = arith.ori %262, %267 : vector<1x10xi1>
    %269 = arith.extui %268 : vector<1x10xi1> to vector<1x10xi32>
    %270 = arith.sitofp %269 : vector<1x10xi32> to vector<1x10xf32>
    %271 = arith.addf %259, %270 : vector<1x10xf32>
    %cst_27 = arith.constant 5.000000e+00 : f32
    %272 = vector.broadcast %cst_27 : f32 to vector<1x10xf32>
    %273 = arith.cmpf olt, %271, %272 : vector<1x10xf32>
    %274 = arith.extui %273 : vector<1x10xi1> to vector<1x10xi32>
    %275 = arith.sitofp %274 : vector<1x10xi32> to vector<1x10xf32>
    %cst_28 = arith.constant 0.000000e+00 : f32
    %276 = vector.broadcast %cst_28 : f32 to vector<1x10xf32>
    %277 = vector.extract_strided_slice %275 {offsets = [0, 0], sizes = [1, 1], strides = [1, 1]} : vector<1x10xf32> to vector<1x1xf32>
    %c0_i32_29 = arith.constant 0 : i32
    %278 = vector.broadcast %c0_i32_29 : i32 to vector<1x10xi32>
    %279 = arith.cmpi sgt, %150, %278 : vector<1x10xi32>
    %280 = arith.extui %279 : vector<1x10xi1> to vector<1x10xi32>
    %281 = arith.sitofp %280 : vector<1x10xi32> to vector<1x10xf32>
    %282 = vector.broadcast %277 : vector<1x1xf32> to vector<1x10xf32>
    %283 = arith.mulf %282, %281 : vector<1x10xf32>
    %284 = arith.addf %276, %283 : vector<1x10xf32>
    %285 = vector.extract_strided_slice %275 {offsets = [0, 1], sizes = [1, 1], strides = [1, 1]} : vector<1x10xf32> to vector<1x1xf32>
    %c1_i32_30 = arith.constant 1 : i32
    %286 = vector.broadcast %c1_i32_30 : i32 to vector<1x10xi32>
    %287 = arith.cmpi sgt, %150, %286 : vector<1x10xi32>
    %288 = arith.extui %287 : vector<1x10xi1> to vector<1x10xi32>
    %289 = arith.sitofp %288 : vector<1x10xi32> to vector<1x10xf32>
    %290 = vector.broadcast %285 : vector<1x1xf32> to vector<1x10xf32>
    %291 = arith.mulf %290, %289 : vector<1x10xf32>
    %292 = arith.addf %284, %291 : vector<1x10xf32>
    %293 = vector.extract_strided_slice %275 {offsets = [0, 2], sizes = [1, 1], strides = [1, 1]} : vector<1x10xf32> to vector<1x1xf32>
    %c2_i32_31 = arith.constant 2 : i32
    %294 = vector.broadcast %c2_i32_31 : i32 to vector<1x10xi32>
    %295 = arith.cmpi sgt, %150, %294 : vector<1x10xi32>
    %296 = arith.extui %295 : vector<1x10xi1> to vector<1x10xi32>
    %297 = arith.sitofp %296 : vector<1x10xi32> to vector<1x10xf32>
    %298 = vector.broadcast %293 : vector<1x1xf32> to vector<1x10xf32>
    %299 = arith.mulf %298, %297 : vector<1x10xf32>
    %300 = arith.addf %292, %299 : vector<1x10xf32>
    %301 = vector.extract_strided_slice %275 {offsets = [0, 3], sizes = [1, 1], strides = [1, 1]} : vector<1x10xf32> to vector<1x1xf32>
    %c3_i32_32 = arith.constant 3 : i32
    %302 = vector.broadcast %c3_i32_32 : i32 to vector<1x10xi32>
    %303 = arith.cmpi sgt, %150, %302 : vector<1x10xi32>
    %304 = arith.extui %303 : vector<1x10xi1> to vector<1x10xi32>
    %305 = arith.sitofp %304 : vector<1x10xi32> to vector<1x10xf32>
    %306 = vector.broadcast %301 : vector<1x1xf32> to vector<1x10xf32>
    %307 = arith.mulf %306, %305 : vector<1x10xf32>
    %308 = arith.addf %300, %307 : vector<1x10xf32>
    %309 = vector.extract_strided_slice %275 {offsets = [0, 4], sizes = [1, 1], strides = [1, 1]} : vector<1x10xf32> to vector<1x1xf32>
    %c4_i32_33 = arith.constant 4 : i32
    %310 = vector.broadcast %c4_i32_33 : i32 to vector<1x10xi32>
    %311 = arith.cmpi sgt, %150, %310 : vector<1x10xi32>
    %312 = arith.extui %311 : vector<1x10xi1> to vector<1x10xi32>
    %313 = arith.sitofp %312 : vector<1x10xi32> to vector<1x10xf32>
    %314 = vector.broadcast %309 : vector<1x1xf32> to vector<1x10xf32>
    %315 = arith.mulf %314, %313 : vector<1x10xf32>
    %316 = arith.addf %308, %315 : vector<1x10xf32>
    %317 = vector.extract_strided_slice %275 {offsets = [0, 5], sizes = [1, 1], strides = [1, 1]} : vector<1x10xf32> to vector<1x1xf32>
    %c5_i32_34 = arith.constant 5 : i32
    %318 = vector.broadcast %c5_i32_34 : i32 to vector<1x10xi32>
    %319 = arith.cmpi sgt, %150, %318 : vector<1x10xi32>
    %320 = arith.extui %319 : vector<1x10xi1> to vector<1x10xi32>
    %321 = arith.sitofp %320 : vector<1x10xi32> to vector<1x10xf32>
    %322 = vector.broadcast %317 : vector<1x1xf32> to vector<1x10xf32>
    %323 = arith.mulf %322, %321 : vector<1x10xf32>
    %324 = arith.addf %316, %323 : vector<1x10xf32>
    %325 = vector.extract_strided_slice %275 {offsets = [0, 6], sizes = [1, 1], strides = [1, 1]} : vector<1x10xf32> to vector<1x1xf32>
    %c6_i32_35 = arith.constant 6 : i32
    %326 = vector.broadcast %c6_i32_35 : i32 to vector<1x10xi32>
    %327 = arith.cmpi sgt, %150, %326 : vector<1x10xi32>
    %328 = arith.extui %327 : vector<1x10xi1> to vector<1x10xi32>
    %329 = arith.sitofp %328 : vector<1x10xi32> to vector<1x10xf32>
    %330 = vector.broadcast %325 : vector<1x1xf32> to vector<1x10xf32>
    %331 = arith.mulf %330, %329 : vector<1x10xf32>
    %332 = arith.addf %324, %331 : vector<1x10xf32>
    %333 = vector.extract_strided_slice %275 {offsets = [0, 7], sizes = [1, 1], strides = [1, 1]} : vector<1x10xf32> to vector<1x1xf32>
    %c7_i32_36 = arith.constant 7 : i32
    %334 = vector.broadcast %c7_i32_36 : i32 to vector<1x10xi32>
    %335 = arith.cmpi sgt, %150, %334 : vector<1x10xi32>
    %336 = arith.extui %335 : vector<1x10xi1> to vector<1x10xi32>
    %337 = arith.sitofp %336 : vector<1x10xi32> to vector<1x10xf32>
    %338 = vector.broadcast %333 : vector<1x1xf32> to vector<1x10xf32>
    %339 = arith.mulf %338, %337 : vector<1x10xf32>
    %340 = arith.addf %332, %339 : vector<1x10xf32>
    %341 = vector.extract_strided_slice %275 {offsets = [0, 8], sizes = [1, 1], strides = [1, 1]} : vector<1x10xf32> to vector<1x1xf32>
    %c8_i32_37 = arith.constant 8 : i32
    %342 = vector.broadcast %c8_i32_37 : i32 to vector<1x10xi32>
    %343 = arith.cmpi sgt, %150, %342 : vector<1x10xi32>
    %344 = arith.extui %343 : vector<1x10xi1> to vector<1x10xi32>
    %345 = arith.sitofp %344 : vector<1x10xi32> to vector<1x10xf32>
    %346 = vector.broadcast %341 : vector<1x1xf32> to vector<1x10xf32>
    %347 = arith.mulf %346, %345 : vector<1x10xf32>
    %348 = arith.addf %340, %347 : vector<1x10xf32>
    %349 = vector.extract_strided_slice %275 {offsets = [0, 9], sizes = [1, 1], strides = [1, 1]} : vector<1x10xf32> to vector<1x1xf32>
    %c9_i32_38 = arith.constant 9 : i32
    %350 = vector.broadcast %c9_i32_38 : i32 to vector<1x10xi32>
    %351 = arith.cmpi sgt, %150, %350 : vector<1x10xi32>
    %352 = arith.extui %351 : vector<1x10xi1> to vector<1x10xi32>
    %353 = arith.sitofp %352 : vector<1x10xi32> to vector<1x10xf32>
    %354 = vector.broadcast %349 : vector<1x1xf32> to vector<1x10xf32>
    %355 = arith.mulf %354, %353 : vector<1x10xf32>
    %356 = arith.addf %348, %355 : vector<1x10xf32>
    %357 = tpu.iota {dimensions = array<i32: 1>} : vector<2x5xi32>
    %358 = arith.sitofp %357 : vector<2x5xi32> to vector<2x5xf32>
    %cst_39 = arith.constant 0.000000e+00 : f32
    %359 = vector.broadcast %cst_39 : f32 to vector<2x5xf32>
    %360 = vector.extract_strided_slice %275 {offsets = [0, 0], sizes = [1, 1], strides = [1, 1]} : vector<1x10xf32> to vector<1x1xf32>
    %361 = vector.extract_strided_slice %356 {offsets = [0, 0], sizes = [1, 1], strides = [1, 1]} : vector<1x10xf32> to vector<1x1xf32>
    %362 = vector.broadcast %361 : vector<1x1xf32> to vector<2x5xf32>
    %363 = arith.cmpf oeq, %362, %358 : vector<2x5xf32>
    %364 = arith.extui %363 : vector<2x5xi1> to vector<2x5xi32>
    %365 = arith.sitofp %364 : vector<2x5xi32> to vector<2x5xf32>
    %366 = vector.broadcast %360 : vector<1x1xf32> to vector<2x5xf32>
    %367 = arith.mulf %366, %365 : vector<2x5xf32>
    %cst_40 = arith.constant 0.000000e+00 : f32
    %368 = vector.broadcast %cst_40 : f32 to vector<2x5xf32>
    %369 = arith.mulf %368, %367 : vector<2x5xf32>
    %370 = arith.addf %359, %369 : vector<2x5xf32>
    %371 = vector.extract_strided_slice %275 {offsets = [0, 1], sizes = [1, 1], strides = [1, 1]} : vector<1x10xf32> to vector<1x1xf32>
    %372 = vector.extract_strided_slice %356 {offsets = [0, 1], sizes = [1, 1], strides = [1, 1]} : vector<1x10xf32> to vector<1x1xf32>
    %373 = vector.broadcast %372 : vector<1x1xf32> to vector<2x5xf32>
    %374 = arith.cmpf oeq, %373, %358 : vector<2x5xf32>
    %375 = arith.extui %374 : vector<2x5xi1> to vector<2x5xi32>
    %376 = arith.sitofp %375 : vector<2x5xi32> to vector<2x5xf32>
    %377 = vector.broadcast %371 : vector<1x1xf32> to vector<2x5xf32>
    %378 = arith.mulf %377, %376 : vector<2x5xf32>
    %cst_41 = arith.constant 1.000000e+00 : f32
    %379 = vector.broadcast %cst_41 : f32 to vector<2x5xf32>
    %380 = arith.mulf %379, %378 : vector<2x5xf32>
    %381 = arith.addf %370, %380 : vector<2x5xf32>
    %382 = vector.extract_strided_slice %275 {offsets = [0, 2], sizes = [1, 1], strides = [1, 1]} : vector<1x10xf32> to vector<1x1xf32>
    %383 = vector.extract_strided_slice %356 {offsets = [0, 2], sizes = [1, 1], strides = [1, 1]} : vector<1x10xf32> to vector<1x1xf32>
    %384 = vector.broadcast %383 : vector<1x1xf32> to vector<2x5xf32>
    %385 = arith.cmpf oeq, %384, %358 : vector<2x5xf32>
    %386 = arith.extui %385 : vector<2x5xi1> to vector<2x5xi32>
    %387 = arith.sitofp %386 : vector<2x5xi32> to vector<2x5xf32>
    %388 = vector.broadcast %382 : vector<1x1xf32> to vector<2x5xf32>
    %389 = arith.mulf %388, %387 : vector<2x5xf32>
    %cst_42 = arith.constant 2.000000e+00 : f32
    %390 = vector.broadcast %cst_42 : f32 to vector<2x5xf32>
    %391 = arith.mulf %390, %389 : vector<2x5xf32>
    %392 = arith.addf %381, %391 : vector<2x5xf32>
    %393 = vector.extract_strided_slice %275 {offsets = [0, 3], sizes = [1, 1], strides = [1, 1]} : vector<1x10xf32> to vector<1x1xf32>
    %394 = vector.extract_strided_slice %356 {offsets = [0, 3], sizes = [1, 1], strides = [1, 1]} : vector<1x10xf32> to vector<1x1xf32>
    %395 = vector.broadcast %394 : vector<1x1xf32> to vector<2x5xf32>
    %396 = arith.cmpf oeq, %395, %358 : vector<2x5xf32>
    %397 = arith.extui %396 : vector<2x5xi1> to vector<2x5xi32>
    %398 = arith.sitofp %397 : vector<2x5xi32> to vector<2x5xf32>
    %399 = vector.broadcast %393 : vector<1x1xf32> to vector<2x5xf32>
    %400 = arith.mulf %399, %398 : vector<2x5xf32>
    %cst_43 = arith.constant 3.000000e+00 : f32
    %401 = vector.broadcast %cst_43 : f32 to vector<2x5xf32>
    %402 = arith.mulf %401, %400 : vector<2x5xf32>
    %403 = arith.addf %392, %402 : vector<2x5xf32>
    %404 = vector.extract_strided_slice %275 {offsets = [0, 4], sizes = [1, 1], strides = [1, 1]} : vector<1x10xf32> to vector<1x1xf32>
    %405 = vector.extract_strided_slice %356 {offsets = [0, 4], sizes = [1, 1], strides = [1, 1]} : vector<1x10xf32> to vector<1x1xf32>
    %406 = vector.broadcast %405 : vector<1x1xf32> to vector<2x5xf32>
    %407 = arith.cmpf oeq, %406, %358 : vector<2x5xf32>
    %408 = arith.extui %407 : vector<2x5xi1> to vector<2x5xi32>
    %409 = arith.sitofp %408 : vector<2x5xi32> to vector<2x5xf32>
    %410 = vector.broadcast %404 : vector<1x1xf32> to vector<2x5xf32>
    %411 = arith.mulf %410, %409 : vector<2x5xf32>
    %cst_44 = arith.constant 4.000000e+00 : f32
    %412 = vector.broadcast %cst_44 : f32 to vector<2x5xf32>
    %413 = arith.mulf %412, %411 : vector<2x5xf32>
    %414 = arith.addf %403, %413 : vector<2x5xf32>
    %415 = vector.extract_strided_slice %275 {offsets = [0, 5], sizes = [1, 1], strides = [1, 1]} : vector<1x10xf32> to vector<1x1xf32>
    %416 = vector.extract_strided_slice %356 {offsets = [0, 5], sizes = [1, 1], strides = [1, 1]} : vector<1x10xf32> to vector<1x1xf32>
    %417 = vector.broadcast %416 : vector<1x1xf32> to vector<2x5xf32>
    %418 = arith.cmpf oeq, %417, %358 : vector<2x5xf32>
    %419 = arith.extui %418 : vector<2x5xi1> to vector<2x5xi32>
    %420 = arith.sitofp %419 : vector<2x5xi32> to vector<2x5xf32>
    %421 = vector.broadcast %415 : vector<1x1xf32> to vector<2x5xf32>
    %422 = arith.mulf %421, %420 : vector<2x5xf32>
    %cst_45 = arith.constant 5.000000e+00 : f32
    %423 = vector.broadcast %cst_45 : f32 to vector<2x5xf32>
    %424 = arith.mulf %423, %422 : vector<2x5xf32>
    %425 = arith.addf %414, %424 : vector<2x5xf32>
    %426 = vector.extract_strided_slice %275 {offsets = [0, 6], sizes = [1, 1], strides = [1, 1]} : vector<1x10xf32> to vector<1x1xf32>
    %427 = vector.extract_strided_slice %356 {offsets = [0, 6], sizes = [1, 1], strides = [1, 1]} : vector<1x10xf32> to vector<1x1xf32>
    %428 = vector.broadcast %427 : vector<1x1xf32> to vector<2x5xf32>
    %429 = arith.cmpf oeq, %428, %358 : vector<2x5xf32>
    %430 = arith.extui %429 : vector<2x5xi1> to vector<2x5xi32>
    %431 = arith.sitofp %430 : vector<2x5xi32> to vector<2x5xf32>
    %432 = vector.broadcast %426 : vector<1x1xf32> to vector<2x5xf32>
    %433 = arith.mulf %432, %431 : vector<2x5xf32>
    %cst_46 = arith.constant 6.000000e+00 : f32
    %434 = vector.broadcast %cst_46 : f32 to vector<2x5xf32>
    %435 = arith.mulf %434, %433 : vector<2x5xf32>
    %436 = arith.addf %425, %435 : vector<2x5xf32>
    %437 = vector.extract_strided_slice %275 {offsets = [0, 7], sizes = [1, 1], strides = [1, 1]} : vector<1x10xf32> to vector<1x1xf32>
    %438 = vector.extract_strided_slice %356 {offsets = [0, 7], sizes = [1, 1], strides = [1, 1]} : vector<1x10xf32> to vector<1x1xf32>
    %439 = vector.broadcast %438 : vector<1x1xf32> to vector<2x5xf32>
    %440 = arith.cmpf oeq, %439, %358 : vector<2x5xf32>
    %441 = arith.extui %440 : vector<2x5xi1> to vector<2x5xi32>
    %442 = arith.sitofp %441 : vector<2x5xi32> to vector<2x5xf32>
    %443 = vector.broadcast %437 : vector<1x1xf32> to vector<2x5xf32>
    %444 = arith.mulf %443, %442 : vector<2x5xf32>
    %cst_47 = arith.constant 7.000000e+00 : f32
    %445 = vector.broadcast %cst_47 : f32 to vector<2x5xf32>
    %446 = arith.mulf %445, %444 : vector<2x5xf32>
    %447 = arith.addf %436, %446 : vector<2x5xf32>
    %448 = vector.extract_strided_slice %275 {offsets = [0, 8], sizes = [1, 1], strides = [1, 1]} : vector<1x10xf32> to vector<1x1xf32>
    %449 = vector.extract_strided_slice %356 {offsets = [0, 8], sizes = [1, 1], strides = [1, 1]} : vector<1x10xf32> to vector<1x1xf32>
    %450 = vector.broadcast %449 : vector<1x1xf32> to vector<2x5xf32>
    %451 = arith.cmpf oeq, %450, %358 : vector<2x5xf32>
    %452 = arith.extui %451 : vector<2x5xi1> to vector<2x5xi32>
    %453 = arith.sitofp %452 : vector<2x5xi32> to vector<2x5xf32>
    %454 = vector.broadcast %448 : vector<1x1xf32> to vector<2x5xf32>
    %455 = arith.mulf %454, %453 : vector<2x5xf32>
    %cst_48 = arith.constant 8.000000e+00 : f32
    %456 = vector.broadcast %cst_48 : f32 to vector<2x5xf32>
    %457 = arith.mulf %456, %455 : vector<2x5xf32>
    %458 = arith.addf %447, %457 : vector<2x5xf32>
    %459 = vector.extract_strided_slice %275 {offsets = [0, 9], sizes = [1, 1], strides = [1, 1]} : vector<1x10xf32> to vector<1x1xf32>
    %460 = vector.extract_strided_slice %356 {offsets = [0, 9], sizes = [1, 1], strides = [1, 1]} : vector<1x10xf32> to vector<1x1xf32>
    %461 = vector.broadcast %460 : vector<1x1xf32> to vector<2x5xf32>
    %462 = arith.cmpf oeq, %461, %358 : vector<2x5xf32>
    %463 = arith.extui %462 : vector<2x5xi1> to vector<2x5xi32>
    %464 = arith.sitofp %463 : vector<2x5xi32> to vector<2x5xf32>
    %465 = vector.broadcast %459 : vector<1x1xf32> to vector<2x5xf32>
    %466 = arith.mulf %465, %464 : vector<2x5xf32>
    %cst_49 = arith.constant 9.000000e+00 : f32
    %467 = vector.broadcast %cst_49 : f32 to vector<2x5xf32>
    %468 = arith.mulf %467, %466 : vector<2x5xf32>
    %469 = arith.addf %458, %468 : vector<2x5xf32>
    %cst_50 = arith.constant 5.000000e-01 : f32
    %470 = vector.broadcast %cst_50 : f32 to vector<2x5xf32>
    %471 = arith.addf %469, %470 : vector<2x5xf32>
    %472 = arith.fptosi %471 : vector<2x5xf32> to vector<2x5xi32>
    %c0_51 = arith.constant 0 : index
    %c0_52 = arith.constant 0 : index
    %473 = vector.load %arg6[%c0_51, %c0_52] : memref<2x5xi32, #tpu.memory_space<vmem>>, vector<2x5xi32>
    tpu.vector_store %arg6[%c0_51, %c0_52], %472 {strides = array<i32>} : memref<2x5xi32, #tpu.memory_space<vmem>>, vector<2x5xi32>,
    %474 = tpu.iota {dimensions = array<i32: 0>} : vector<5x10xi32>
    %475 = arith.sitofp %474 : vector<5x10xi32> to vector<5x10xf32>
    %476 = vector.shape_cast %275 : vector<1x10xf32> to vector<1x10xf32>
    %477 = vector.broadcast %476 : vector<1x10xf32> to vector<5x10xf32>
    %478 = vector.shape_cast %356 : vector<1x10xf32> to vector<1x10xf32>
    %479 = vector.broadcast %478 : vector<1x10xf32> to vector<5x10xf32>
    %480 = arith.cmpf oeq, %479, %475 : vector<5x10xf32>
    %481 = arith.extui %480 : vector<5x10xi1> to vector<5x10xi32>
    %482 = arith.sitofp %481 : vector<5x10xi32> to vector<5x10xf32>
    %483 = arith.mulf %477, %482 : vector<5x10xf32>
    %cst_53 = arith.constant dense<0.000000e+00> : vector<5x1000xf32>
    %484 = tpu.matmul %483, %8, %cst_53 {dimension_numbers = #tpu.dot_dimension_numbers<[1], [0], [0], [1], [0, 0, 1, 1], [], []>} : vector<5x10xf32>, vector<10x1000xf32>, vector<5x1000xf32> -> vector<5x1000xf32>
    %c0_54 = arith.constant 0 : index
    %c0_55 = arith.constant 0 : index
    %485 = vector.load %arg7[%c0_54, %c0_55] : memref<5x1000xf32, #tpu.memory_space<vmem>>, vector<5x1000xf32>
    tpu.vector_store %arg7[%c0_54, %c0_55], %484 {strides = array<i32>} : memref<5x1000xf32, #tpu.memory_space<vmem>>, vector<5x1000xf32>,
    %c0_56 = arith.constant 0 : index
    %c0_57 = arith.constant 0 : index
    %486 = vector.load %arg2[%c0_56, %c0_57] : memref<10x5000xf32, #tpu.memory_space<vmem>>, vector<10x5000xf32>
    %cst_58 = arith.constant dense<0.000000e+00> : vector<5x5000xf32>
    %487 = tpu.matmul %483, %486, %cst_58 {dimension_numbers = #tpu.dot_dimension_numbers<[1], [0], [0], [1], [0, 0, 1, 1], [], []>} : vector<5x10xf32>, vector<10x5000xf32>, vector<5x5000xf32> -> vector<5x5000xf32>
    %c0_59 = arith.constant 0 : index
    %c0_60 = arith.constant 0 : index
    %488 = vector.load %arg8[%c0_59, %c0_60] : memref<5x5000xf32, #tpu.memory_space<vmem>>, vector<5x5000xf32>
    tpu.vector_store %arg8[%c0_59, %c0_60], %487 {strides = array<i32>} : memref<5x5000xf32, #tpu.memory_space<vmem>>, vector<5x5000xf32>,
    %cst_61 = arith.constant dense<0.000000e+00> : vector<1000xf32>
    %489 = vector.multi_reduction <add>, %18, %cst_61 [0] : vector<2x1000xf32> to vector<1000xf32>
    %490 = vector.shape_cast %489 : vector<1000xf32> to vector<1x1000xf32>
    %cst_62 = arith.constant dense<0.000000e+00> : vector<1000xf32>
    %491 = vector.multi_reduction <add>, %484, %cst_62 [0] : vector<5x1000xf32> to vector<1000xf32>
    %492 = vector.shape_cast %491 : vector<1000xf32> to vector<1x1000xf32>
    %493 = arith.mulf %490, %492 : vector<1x1000xf32>
    %cst_63 = arith.constant dense<0.000000e+00> : vector<1xf32>
    %494 = vector.multi_reduction <add>, %493, %cst_63 [1] : vector<1x1000xf32> to vector<1xf32>
    %495 = vector.shape_cast %494 : vector<1xf32> to vector<1x1xf32>
    %cst_64 = arith.constant 5.000000e-01 : f32
    %496 = vector.broadcast %cst_64 : f32 to vector<1x1xf32>
    %497 = arith.mulf %495, %496 : vector<1x1xf32>
    %c0_65 = arith.constant 0 : index
    %c0_66 = arith.constant 0 : index
    %498 = vector.load %arg9[%c0_65, %c0_66] : memref<1x1xf32, #tpu.memory_space<vmem>>, vector<1x1xf32>
    tpu.vector_store %arg9[%c0_65, %c0_66], %497 {strides = array<i32>} : memref<1x1xf32, #tpu.memory_space<vmem>>, vector<1x1xf32>,
    return
  }
}

</mosaic_0001>

<llo_original>
// kernel: prompt_forward.1
$region0: #{prompt_forward.1}
  #allocation0 [shape = 'u32[]', space=smem, size = 0x4, offset = 0x4, fixed_abs, tag = 'smem constant byte address 0x4 - core index']
  #allocation1 [shape = 'u32[144,128]{1,0:T(1,128)}', space=vmem, size = 0x12000, scoped, tag = 'internal scratch']
  %s0 = inlined_call_operand.hbm [shape: f32[10,1000], index: 0, kind: input, shape index: {}]
  %s1 = inlined_call_operand.hbm [shape: f32[2,1000], index: 1, kind: input, shape index: {}]
  %s2 = inlined_call_operand.hbm [shape: f32[10,5000], index: 2, kind: input, shape index: {}]
  %s3 = inlined_call_operand.hbm [shape: f32[10,1000], index: 3, kind: output, shape index: {0}]
  %s4 = inlined_call_operand.hbm [shape: f32[2,1000], index: 4, kind: output, shape index: {1}]
  %s5 = inlined_call_operand.hbm [shape: f32[2,10], index: 5, kind: output, shape index: {2}]
  %s6 = inlined_call_operand.hbm [shape: s32[2,5], index: 6, kind: output, shape index: {3}]
  %s7 = inlined_call_operand.vmem [shape: f32[5,1000], index: 7, kind: output, shape index: {4}]
  %s8 = inlined_call_operand.vmem [shape: f32[5,5000], index: 8, kind: output, shape index: {5}]
  %s9 = inlined_call_operand.hbm [shape: f32[1,1], index: 9, kind: output, shape index: {6}]
  %10 = xla_tuple %s3, %s4, %s5, %s6, %s7, %s8, %s9
  %s11 = sld [smem:[#allocation0]]
  $region82: #{prompt_forward.1} parent=0
    _
  %s13 = ssub.s32 1, %s11
  %s14 = scalar_select 0, %s13, %s11
  $region1: #{prompt_forward.1} parent=0
    #allocation2 [shape = 'u8[65536]{0}', space=vmem, size = 0x10000, scoped, tag = 'input window, operand 0, single buffered']
    #allocation3 [shape = 's32[1]{0}', space=sflag, size = 0x4, scoped, tag = 'scoped memory for prompt_forward.1']
    #allocation4 [shape = 's32[1]{0}', space=sflag, size = 0x4, scoped, tag = 'scoped memory for prompt_forward.1']
    #allocation5 [shape = 'u8[8192]{0}', space=vmem, size = 0x2000, scoped, tag = 'input window, operand 1, single buffered']
    #allocation6 [shape = 's32[1]{0}', space=sflag, size = 0x4, scoped, tag = 'scoped memory for prompt_forward.1']
    #allocation7 [shape = 'u8[327680]{0}', space=vmem, size = 0x50000, scoped, tag = 'input window, operand 2, single buffered']
    #allocation8 [shape = 'u8[65536]{0}', space=vmem, size = 0x10000, scoped, tag = 'output window, operand 0, single buffered']
    #allocation9 [shape = 'u8[8192]{0}', space=vmem, size = 0x2000, scoped, tag = 'output window, operand 1, single buffered']
    #allocation10 [shape = 's32[1]{0}', space=sflag, size = 0x4, scoped, tag = 'scoped memory for prompt_forward.1']
    #allocation11 [shape = 'u8[1024]{0}', space=vmem, size = 0x400, scoped, tag = 'output window, operand 2, single buffered']
    #allocation12 [shape = 'u8[1024]{0}', space=vmem, size = 0x400, scoped, tag = 'output window, operand 3, single buffered']
    #allocation13 [shape = 's32[1]{0}', space=sflag, size = 0x4, scoped, tag = 'scoped memory for prompt_forward.1']
    #allocation14 [shape = 'u8[512]{0}', space=vmem, size = 0x400, scoped, tag = 'output window, operand 6, single buffered']
    %15 = vsyncpa [#allocation3], 0
    %16 = vsyncpa [#allocation6], 0
    %17 = vsyncpa [#allocation4], 0
    %18 = vsyncpa [#allocation10], 0
    %19 = vsyncpa [#allocation13], 0
    // Predicated region
    $region2: #{prompt_forward.1} parent=1 // pred_check
      _
    $region3: #{prompt_forward.1} parent=1 // pred_check_branch
      %21 = sbr.rel (0) target = $region5
    $region4: #{prompt_forward.1} parent=1 // pred_region
      %s23 = ssub.s32 2048, 2048
      %24 = vsyncadd [#allocation3], %s23
      %s25 = sshll.u32 [#allocation2], 4
      %s26 = int_to_ptr.vmem [resolvable:$true] %s25
      %31 = dma.hbm_to_vmem [thread:$0]  %s0, 2048, %s26, [#allocation3], 1024, 1024, 64
    $region5: #{prompt_forward.1} parent=1 // pred_fallthru
      _
    // Predicated region
    $region6: #{prompt_forward.1} parent=1 // pred_check
      _
    $region7: #{prompt_forward.1} parent=1 // pred_check_branch
      %33 = sbr.rel (0) target = $region9
    $region8: #{prompt_forward.1} parent=1 // pred_region
      %s35 = ssub.s32 256, 256
      %36 = vsyncadd [#allocation6], %s35
      %s38 = sshll.u32 [#allocation5], 4
      %s39 = int_to_ptr.vmem [resolvable:$true] %s38
      %41 = dma.hbm_to_vmem [thread:$0]  %s1, 256, %s39, [#allocation6]
    $region9: #{prompt_forward.1} parent=1 // pred_fallthru
      _
    // Predicated region
    $region10: #{prompt_forward.1} parent=1 // pred_check
      _
    $region11: #{prompt_forward.1} parent=1 // pred_check_branch
      %43 = sbr.rel (0) target = $region13
    $region12: #{prompt_forward.1} parent=1 // pred_region
      %s45 = ssub.s32 10240, 10240
      %46 = vsyncadd [#allocation6], %s45
      %s47 = sshll.u32 [#allocation7], 4
      %s48 = int_to_ptr.vmem [resolvable:$true] %s47
      %53 = dma.hbm_to_vmem [thread:$0]  %s2, 10240, %s48, [#allocation6], 5120, 5120, 320
    $region13: #{prompt_forward.1} parent=1 // pred_fallthru
      _
    // Predicated region
    $region14: #{prompt_forward.1} parent=1 // pred_check
      _
    $region15: #{prompt_forward.1} parent=1 // pred_check_branch
      %55 = sbr.rel (0) target = $region17
    $region16: #{prompt_forward.1} parent=1 // pred_region
      %56 = dma.done [#allocation3], 2048
    $region17: #{prompt_forward.1} parent=1 // pred_fallthru
      _
    // Predicated region
    $region18: #{prompt_forward.1} parent=1 // pred_check
      _
    $region19: #{prompt_forward.1} parent=1 // pred_check_branch
      %58 = sbr.rel (0) target = $region21
    $region20: #{prompt_forward.1} parent=1 // pred_region
      %59 = dma.done [#allocation6], 256
    $region21: #{prompt_forward.1} parent=1 // pred_fallthru
      _
    // Predicated region
    $region22: #{prompt_forward.1} parent=1 // pred_check
      _
    $region23: #{prompt_forward.1} parent=1 // pred_check_branch
      %61 = sbr.rel (0) target = $region25
    $region24: #{prompt_forward.1} parent=1 // pred_region
      %62 = dma.done [#allocation6], 10240
    $region25: #{prompt_forward.1} parent=1 // pred_fallthru
      _
    %v63 = vld [vmem:[#allocation2] sm:$0xff]
    %v64 = vld [vmem:[#allocation2 + $0x8] sm:$0xff]
    %v65 = vld [vmem:[#allocation2 + $0x10] sm:$0xff]
    %v66 = vld [vmem:[#allocation2 + $0x18] sm:$0xff]
    %v67 = vld [vmem:[#allocation2 + $0x20] sm:$0xff]
    %v68 = vld [vmem:[#allocation2 + $0x28] sm:$0xff]
    %v69 = vld [vmem:[#allocation2 + $0x30] sm:$0xff]
    %v70 = vld [vmem:[#allocation2 + $0x38] sm:$0xff]
    %v71 = vld [vmem:[#allocation2 + $0x40] sm:$0x3]
    %v72 = vld [vmem:[#allocation2 + $0x48] sm:$0x3]
    %v73 = vld [vmem:[#allocation2 + $0x50] sm:$0x3]
    %v74 = vld [vmem:[#allocation2 + $0x58] sm:$0x3]
    %v75 = vld [vmem:[#allocation2 + $0x60] sm:$0x3]
    %v76 = vld [vmem:[#allocation2 + $0x68] sm:$0x3]
    %v77 = vld [vmem:[#allocation2 + $0x70] sm:$0x3]
    %v78 = vld [vmem:[#allocation2 + $0x78] sm:$0x3]
    %v79 = vmul.f32 %v63, %v63
    %v80 = vmul.f32 %v64, %v64
    %v81 = vmul.f32 %v65, %v65
    %v82 = vmul.f32 %v66, %v66
    %v83 = vmul.f32 %v67, %v67
    %v84 = vmul.f32 %v68, %v68
    %v85 = vmul.f32 %v69, %v69
    %v86 = vmul.f32 %v70, %v70
    %v87 = vmul.f32 %v71, %v71
    %v88 = vmul.f32 %v72, %v72
    %v89 = vmul.f32 %v73, %v73
    %v90 = vmul.f32 %v74, %v74
    %v91 = vmul.f32 %v75, %v75
    %v92 = vmul.f32 %v76, %v76
    %v93 = vmul.f32 %v77, %v77
    %v94 = vmul.f32 %v78, %v78
    %v95 = vadd.f32 %v79, %v80
    %v96 = vadd.f32 %v95, %v81
    %v97 = vadd.f32 %v96, %v82
    %v98 = vadd.f32 %v97, %v83
    %v99 = vadd.f32 %v98, %v84
    %v100 = vadd.f32 %v99, %v85
    %vm101 = vcmask 850944
    %v102 = vsel %vm101, %v86, 0.0
    %v103 = vadd.f32 %v100, %v102
    %104 = vadd.xlane.f32.xlu0 %v103
    %v105 = vpop.xlane.xlu0 %104
    %vm106 = vcmask 1041408
    %v107 = vsel %vm106, %v87, 0.0
    %v108 = vsel %vm106, %v88, 0.0
    %v109 = vadd.f32 %v107, %v108
    %v110 = vsel %vm106, %v89, 0.0
    %v111 = vadd.f32 %v109, %v110
    %v112 = vsel %vm106, %v90, 0.0
    %v113 = vadd.f32 %v111, %v112
    %v114 = vsel %vm106, %v91, 0.0
    %v115 = vadd.f32 %v113, %v114
    %v116 = vsel %vm106, %v92, 0.0
    %v117 = vadd.f32 %v115, %v116
    %v118 = vsel %vm106, %v93, 0.0
    %v119 = vadd.f32 %v117, %v118
    %vm120 = vcmask 844800
    %v121 = vsel %vm120, %v94, 0.0
    %v122 = vadd.f32 %v119, %v121
    %123 = vadd.xlane.f32.xlu0 %v122
    %v124 = vpop.xlane.xlu0 %123
    %v125 = vmax.f32 %v105, 1e-12
    %v126 = vmax.f32 %v124, 1e-12
    %v127 = vrsqrt.pop %v125
    %v128 = vrsqrt.pop %v126
    %v129 = vmul.f32 %v63, %v127
    %v130 = vmul.f32 %v64, %v127
    %v131 = vmul.f32 %v65, %v127
    %v132 = vmul.f32 %v66, %v127
    %v133 = vmul.f32 %v67, %v127
    %v134 = vmul.f32 %v68, %v127
    %v135 = vmul.f32 %v69, %v127
    %v136 = vmul.f32 %v70, %v127
    %v137 = vmul.f32 %v71, %v128
    %v138 = vmul.f32 %v72, %v128
    %v139 = vmul.f32 %v73, %v128
    %v140 = vmul.f32 %v74, %v128
    %v141 = vmul.f32 %v75, %v128
    %v142 = vmul.f32 %v76, %v128
    %v143 = vmul.f32 %v77, %v128
    %v144 = vmul.f32 %v78, %v128
    %145 = vst [vmem:[#allocation8] sm:$0xff] %v129
    %146 = vst [vmem:[#allocation8 + $0x8] sm:$0xff] %v130
    %147 = vst [vmem:[#allocation8 + $0x10] sm:$0xff] %v131
    %148 = vst [vmem:[#allocation8 + $0x18] sm:$0xff] %v132
    %149 = vst [vmem:[#allocation8 + $0x20] sm:$0xff] %v133
    %150 = vst [vmem:[#allocation8 + $0x28] sm:$0xff] %v134
    %151 = vst [vmem:[#allocation8 + $0x30] sm:$0xff] %v135
    %152 = vst.msk [vmem:[#allocation8 + $0x38] sm:$0xff] %vm101, %v136
    %153 = vst [vmem:[#allocation8 + $0x40] sm:$0x3] %v137
    %154 = vst [vmem:[#allocation8 + $0x48] sm:$0x3] %v138
    %155 = vst [vmem:[#allocation8 + $0x50] sm:$0x3] %v139
    %156 = vst [vmem:[#allocation8 + $0x58] sm:$0x3] %v140
    %157 = vst [vmem:[#allocation8 + $0x60] sm:$0x3] %v141
    %158 = vst [vmem:[#allocation8 + $0x68] sm:$0x3] %v142
    %159 = vst [vmem:[#allocation8 + $0x70] sm:$0x3] %v143
    %160 = vst.msk [vmem:[#allocation8 + $0x78] sm:$0x3] %vm120, %v144
    %v161 = vld [vmem:[#allocation5] sm:$0xff]
    %v162 = vld [vmem:[#allocation5 + $0x8] sm:$0xff]
    %v163 = vmul.f32 %v161, %v161
    %v164 = vmul.f32 %v162, %v162
    %v167 = vcombine.high %v163, %v163
    %v169 = vunpack.c.l.s4 1983009808
    %v170 = vunpack.c.0.s8 %v169
    %v171 = vlaneseq
    %v172 = vshrl.u32 %v171, 7
    %v173 = vsub.s32 %v170, %v172
    %v174 = vrot.slane %v163, %v173
    %v176 = vunpack.c.l.s4 1983009808
    %v177 = vunpack.c.0.s8 %v176
    %v178 = vlaneseq
    %v179 = vshrl.u32 %v178, 7
    %v180 = vsub.s32 %v177, %v179
    %v181 = vrot.slane %v167, %v180
    %v182 = vcombine.high %v174, %v174
    %v183 = vcombine.high %v181, %v181
    %v184 = vcombine.high %v164, %v164
    %v186 = vunpack.c.l.s4 1983009808
    %v187 = vunpack.c.0.s8 %v186
    %v188 = vlaneseq
    %v189 = vshrl.u32 %v188, 7
    %v190 = vsub.s32 %v187, %v189
    %v191 = vrot.slane %v164, %v190
    %v193 = vunpack.c.l.s4 1983009808
    %v194 = vunpack.c.0.s8 %v193
    %v195 = vlaneseq
    %v196 = vshrl.u32 %v195, 7
    %v197 = vsub.s32 %v194, %v196
    %v198 = vrot.slane %v184, %v197
    %v199 = vcombine.high %v191, %v191
    %v200 = vcombine.high %v198, %v198
    %v209 = vsel %vm106, %v174, 0.0
    %v210 = vsel %vm106, %v182, 0.0
    %v211 = vadd.f32 %v209, %v210
    %v212 = vsel %vm106, %v181, 0.0
    %v213 = vadd.f32 %v211, %v212
    %v214 = vsel %vm106, %v183, 0.0
    %v215 = vadd.f32 %v213, %v214
    %v216 = vsel %vm106, %v191, 0.0
    %v217 = vadd.f32 %v215, %v216
    %v218 = vsel %vm106, %v199, 0.0
    %v219 = vadd.f32 %v217, %v218
    %v220 = vsel %vm106, %v198, 0.0
    %v221 = vadd.f32 %v219, %v220
    %v222 = vsel %vm120, %v200, 0.0
    %v223 = vadd.f32 %v221, %v222
    %224 = vadd.xlane.f32.xlu0 %v223
    %v225 = vpop.xlane.xlu0 %224
    %v226 = vmax.f32 %v225, 1e-12
    %v227 = vrsqrt.pop %v226
    %v230 = vunpack.c.l.s4 269488144
    %v231 = vunpack.c.0.s8 %v230
    %v232 = vlaneseq
    %v233 = vshrl.u32 %v232, 7
    %v234 = vsub.s32 %v231, %v233
    %v235 = vrot.slane %v227, %v234
    %v237 = vmul.f32 %v161, %v235
    %v238 = vmul.f32 %v162, %v235
    %239 = vst [vmem:[#allocation9] sm:$0xff] %v237
    %vm240 = vcmask 1043458
    %vm241 = vmor %vm240, %vm106
    %vm242 = vcmask 1045508
    %vm243 = vmor %vm242, %vm241
    %vm244 = vcmask 850950
    %vm245 = vmor %vm244, %vm243
    %246 = vst.msk [vmem:[#allocation9 + $0x8] sm:$0xff] %vm245, %v238
    %v249 = vcombine.high %v237, %v237
    %v251 = vunpack.c.l.s4 1983009808
    %v252 = vunpack.c.0.s8 %v251
    %v253 = vlaneseq
    %v254 = vshrl.u32 %v253, 7
    %v255 = vsub.s32 %v252, %v254
    %v256 = vrot.slane %v237, %v255
    %v258 = vunpack.c.l.s4 1983009808
    %v259 = vunpack.c.0.s8 %v258
    %v260 = vlaneseq
    %v261 = vshrl.u32 %v260, 7
    %v262 = vsub.s32 %v259, %v261
    %v263 = vrot.slane %v249, %v262
    %v264 = vcombine.high %v256, %v256
    %v265 = vcombine.high %v263, %v263
    %v266 = vcombine.high %v238, %v238
    %v268 = vunpack.c.l.s4 1983009808
    %v269 = vunpack.c.0.s8 %v268
    %v270 = vlaneseq
    %v271 = vshrl.u32 %v270, 7
    %v272 = vsub.s32 %v269, %v271
    %v273 = vrot.slane %v238, %v272
    %v275 = vunpack.c.l.s4 1983009808
    %v276 = vunpack.c.0.s8 %v275
    %v277 = vlaneseq
    %v278 = vshrl.u32 %v277, 7
    %v279 = vsub.s32 %v276, %v278
    %v280 = vrot.slane %v266, %v279
    %v281 = vcombine.high %v273, %v273
    %v282 = vcombine.high %v280, %v280
    %v290 = vsel %vm101, %v282, 0
    %v293 = vsel %vm101, %v136, 0
    %v296 = vsel %vm101, %v144, 0
    %298 = vmatprep.subr.mxu0 %v130
    %299 = vmatpush1.xpose.msra.mxu0 %v129
    %300 = vmatprep.subr.mxu0 %v138
    %301 = vmatpush1.xpose.msra.mxu0 %v137
    %302 = vmatprep.subr.mxu0 0.0
    %303 = vmatpush1.xpose.msra.mxu0 0.0
    %304 = vmatprep.subr.mxu0 0.0
    %305 = vmatpush1.xpose.msra.mxu0 0.0
    %306 = vmatprep.subr.mxu0 0.0
    %307 = vmatpush1.xpose.msra.mxu0 0.0
    %308 = vmatprep.subr.mxu0 0.0
    %309 = vmatpush1.xpose.msra.mxu0 0.0
    %310 = vmatprep.subr.mxu0 0.0
    %311 = vmatpush1.xpose.msra.mxu0 0.0
    %312 = vmatprep.subr.mxu0 0.0
    %313 = vmatpush1.xpose.msra.mxu0 0.0
    %314 = vmatprep.subr.mxu0 0.0
    %315 = vmatpush1.xpose.msra.mxu0 0.0
    %316 = vmatprep.subr.mxu0 0.0
    %317 = vmatpush1.xpose.msra.mxu0 0.0
    %318 = vmatprep.subr.mxu0 0.0
    %319 = vmatpush1.xpose.msra.mxu0 0.0
    %320 = vmatprep.subr.mxu0 0.0
    %321 = vmatpush1.xpose.msra.mxu0 0.0
    %322 = vmatprep.subr.mxu0 0.0
    %323 = vmatpush1.xpose.msra.mxu0 0.0
    %324 = vmatprep.subr.mxu0 0.0
    %325 = vmatpush1.xpose.msra.mxu0 0.0
    %326 = vmatprep.subr.mxu0 0.0
    %327 = vmatpush1.xpose.msra.mxu0 0.0
    %328 = vmatprep.subr.mxu0 0.0
    %329 = vmatpush1.xpose.msra.mxu0 0.0
    %330 = vmatprep.subr.mxu0 0.0
    %331 = vmatpush1.xpose.msra.mxu0 0.0
    %332 = vmatprep.subr.mxu0 0.0
    %333 = vmatpush1.xpose.msra.mxu0 0.0
    %334 = vmatprep.subr.mxu0 0.0
    %335 = vmatpush1.xpose.msra.mxu0 0.0
    %336 = vmatprep.subr.mxu0 0.0
    %337 = vmatpush1.xpose.msra.mxu0 0.0
    %338 = vmatprep.subr.mxu0 0.0
    %339 = vmatpush1.xpose.msra.mxu0 0.0
    %340 = vmatprep.subr.mxu0 0.0
    %341 = vmatpush1.xpose.msra.mxu0 0.0
    %342 = vmatprep.subr.mxu0 0.0
    %343 = vmatpush1.xpose.msra.mxu0 0.0
    %344 = vmatprep.subr.mxu0 0.0
    %345 = vmatpush1.xpose.msra.mxu0 0.0
    %346 = vmatprep.subr.mxu0 0.0
    %347 = vmatpush1.xpose.msra.mxu0 0.0
    %348 = vmatprep.subr.mxu0 0.0
    %349 = vmatpush1.xpose.msra.mxu0 0.0
    %350 = vmatprep.subr.mxu0 0.0
    %351 = vmatpush1.xpose.msra.mxu0 0.0
    %352 = vmatprep.subr.mxu0 0.0
    %353 = vmatpush1.xpose.msra.mxu0 0.0
    %354 = vmatprep.subr.mxu0 0.0
    %355 = vmatpush1.xpose.msra.mxu0 0.0
    %356 = vmatprep.subr.mxu0 0.0
    %357 = vmatpush1.xpose.msra.mxu0 0.0
    %358 = vmatprep.subr.mxu0 0.0
    %359 = vmatpush1.xpose.msra.mxu0 0.0
    %360 = vmatprep.subr.mxu0 0.0
    %361 = vmatpush1.xpose.msra.mxu0 0.0
    %362 = vmatprep.mubr.f32.mxu0 %v264
    %363 = vmatmul.mubr.f32.gmra.mrb[0].mxu0 %v256
    %v364 = vpop.f32.mrb[0].mxu0
    %v365 = vadd.f32 0.0, %v364
    %v366 = vpop.f32.mrb[0].mxu0
    %367 = vdwg.mxu0
    %368 = vmatprep.subr.mxu0 %v132
    %369 = vmatpush1.xpose.msra.mxu0 %v131
    %370 = vmatprep.subr.mxu0 %v140
    %371 = vmatpush1.xpose.msra.mxu0 %v139
    %372 = vmatprep.subr.mxu0 0.0
    %373 = vmatpush1.xpose.msra.mxu0 0.0
    %374 = vmatprep.subr.mxu0 0.0
    %375 = vmatpush1.xpose.msra.mxu0 0.0
    %376 = vmatprep.subr.mxu0 0.0
    %377 = vmatpush1.xpose.msra.mxu0 0.0
    %378 = vmatprep.subr.mxu0 0.0
    %379 = vmatpush1.xpose.msra.mxu0 0.0
    %380 = vmatprep.subr.mxu0 0.0
    %381 = vmatpush1.xpose.msra.mxu0 0.0
    %382 = vmatprep.subr.mxu0 0.0
    %383 = vmatpush1.xpose.msra.mxu0 0.0
    %384 = vmatprep.subr.mxu0 0.0
    %385 = vmatpush1.xpose.msra.mxu0 0.0
    %386 = vmatprep.subr.mxu0 0.0
    %387 = vmatpush1.xpose.msra.mxu0 0.0
    %388 = vmatprep.subr.mxu0 0.0
    %389 = vmatpush1.xpose.msra.mxu0 0.0
    %390 = vmatprep.subr.mxu0 0.0
    %391 = vmatpush1.xpose.msra.mxu0 0.0
    %392 = vmatprep.subr.mxu0 0.0
    %393 = vmatpush1.xpose.msra.mxu0 0.0
    %394 = vmatprep.subr.mxu0 0.0
    %395 = vmatpush1.xpose.msra.mxu0 0.0
    %396 = vmatprep.subr.mxu0 0.0
    %397 = vmatpush1.xpose.msra.mxu0 0.0
    %398 = vmatprep.subr.mxu0 0.0
    %399 = vmatpush1.xpose.msra.mxu0 0.0
    %400 = vmatprep.subr.mxu0 0.0
    %401 = vmatpush1.xpose.msra.mxu0 0.0
    %402 = vmatprep.subr.mxu0 0.0
    %403 = vmatpush1.xpose.msra.mxu0 0.0
    %404 = vmatprep.subr.mxu0 0.0
    %405 = vmatpush1.xpose.msra.mxu0 0.0
    %406 = vmatprep.subr.mxu0 0.0
    %407 = vmatpush1.xpose.msra.mxu0 0.0
    %408 = vmatprep.subr.mxu0 0.0
    %409 = vmatpush1.xpose.msra.mxu0 0.0
    %410 = vmatprep.subr.mxu0 0.0
    %411 = vmatpush1.xpose.msra.mxu0 0.0
    %412 = vmatprep.subr.mxu0 0.0
    %413 = vmatpush1.xpose.msra.mxu0 0.0
    %414 = vmatprep.subr.mxu0 0.0
    %415 = vmatpush1.xpose.msra.mxu0 0.0
    %416 = vmatprep.subr.mxu0 0.0
    %417 = vmatpush1.xpose.msra.mxu0 0.0
    %418 = vmatprep.subr.mxu0 0.0
    %419 = vmatpush1.xpose.msra.mxu0 0.0
    %420 = vmatprep.subr.mxu0 0.0
    %421 = vmatpush1.xpose.msra.mxu0 0.0
    %422 = vmatprep.subr.mxu0 0.0
    %423 = vmatpush1.xpose.msra.mxu0 0.0
    %424 = vmatprep.subr.mxu0 0.0
    %425 = vmatpush1.xpose.msra.mxu0 0.0
    %426 = vmatprep.subr.mxu0 0.0
    %427 = vmatpush1.xpose.msra.mxu0 0.0
    %428 = vmatprep.subr.mxu0 0.0
    %429 = vmatpush1.xpose.msra.mxu0 0.0
    %430 = vmatprep.subr.mxu0 0.0
    %431 = vmatpush1.xpose.msra.mxu0 0.0
    %432 = vmatprep.mubr.f32.mxu0 %v265
    %433 = vmatmul.mubr.f32.gmra.mrb[0].mxu0 %v263
    %v434 = vpop.f32.mrb[0].mxu0
    %v435 = vadd.f32 %v365, %v434
    %v436 = vpop.f32.mrb[0].mxu0
    %437 = vdwg.mxu0
    %438 = vmatprep.subr.mxu0 %v134
    %439 = vmatpush1.xpose.msra.mxu0 %v133
    %440 = vmatprep.subr.mxu0 %v142
    %441 = vmatpush1.xpose.msra.mxu0 %v141
    %442 = vmatprep.subr.mxu0 0.0
    %443 = vmatpush1.xpose.msra.mxu0 0.0
    %444 = vmatprep.subr.mxu0 0.0
    %445 = vmatpush1.xpose.msra.mxu0 0.0
    %446 = vmatprep.subr.mxu0 0.0
    %447 = vmatpush1.xpose.msra.mxu0 0.0
    %448 = vmatprep.subr.mxu0 0.0
    %449 = vmatpush1.xpose.msra.mxu0 0.0
    %450 = vmatprep.subr.mxu0 0.0
    %451 = vmatpush1.xpose.msra.mxu0 0.0
    %452 = vmatprep.subr.mxu0 0.0
    %453 = vmatpush1.xpose.msra.mxu0 0.0
    %454 = vmatprep.subr.mxu0 0.0
    %455 = vmatpush1.xpose.msra.mxu0 0.0
    %456 = vmatprep.subr.mxu0 0.0
    %457 = vmatpush1.xpose.msra.mxu0 0.0
    %458 = vmatprep.subr.mxu0 0.0
    %459 = vmatpush1.xpose.msra.mxu0 0.0
    %460 = vmatprep.subr.mxu0 0.0
    %461 = vmatpush1.xpose.msra.mxu0 0.0
    %462 = vmatprep.subr.mxu0 0.0
    %463 = vmatpush1.xpose.msra.mxu0 0.0
    %464 = vmatprep.subr.mxu0 0.0
    %465 = vmatpush1.xpose.msra.mxu0 0.0
    %466 = vmatprep.subr.mxu0 0.0
    %467 = vmatpush1.xpose.msra.mxu0 0.0
    %468 = vmatprep.subr.mxu0 0.0
    %469 = vmatpush1.xpose.msra.mxu0 0.0
    %470 = vmatprep.subr.mxu0 0.0
    %471 = vmatpush1.xpose.msra.mxu0 0.0
    %472 = vmatprep.subr.mxu0 0.0
    %473 = vmatpush1.xpose.msra.mxu0 0.0
    %474 = vmatprep.subr.mxu0 0.0
    %475 = vmatpush1.xpose.msra.mxu0 0.0
    %476 = vmatprep.subr.mxu0 0.0
    %477 = vmatpush1.xpose.msra.mxu0 0.0
    %478 = vmatprep.subr.mxu0 0.0
    %479 = vmatpush1.xpose.msra.mxu0 0.0
    %480 = vmatprep.subr.mxu0 0.0
    %481 = vmatpush1.xpose.msra.mxu0 0.0
    %482 = vmatprep.subr.mxu0 0.0
    %483 = vmatpush1.xpose.msra.mxu0 0.0
    %484 = vmatprep.subr.mxu0 0.0
    %485 = vmatpush1.xpose.msra.mxu0 0.0
    %486 = vmatprep.subr.mxu0 0.0
    %487 = vmatpush1.xpose.msra.mxu0 0.0
    %488 = vmatprep.subr.mxu0 0.0
    %489 = vmatpush1.xpose.msra.mxu0 0.0
    %490 = vmatprep.subr.mxu0 0.0
    %491 = vmatpush1.xpose.msra.mxu0 0.0
    %492 = vmatprep.subr.mxu0 0.0
    %493 = vmatpush1.xpose.msra.mxu0 0.0
    %494 = vmatprep.subr.mxu0 0.0
    %495 = vmatpush1.xpose.msra.mxu0 0.0
    %496 = vmatprep.subr.mxu0 0.0
    %497 = vmatpush1.xpose.msra.mxu0 0.0
    %498 = vmatprep.subr.mxu0 0.0
    %499 = vmatpush1.xpose.msra.mxu0 0.0
    %500 = vmatprep.subr.mxu0 0.0
    %501 = vmatpush1.xpose.msra.mxu0 0.0
    %502 = vmatprep.mubr.f32.mxu0 %v281
    %503 = vmatmul.mubr.f32.gmra.mrb[0].mxu0 %v273
    %v504 = vpop.f32.mrb[0].mxu0
    %v505 = vadd.f32 %v435, %v504
    %v506 = vpop.f32.mrb[0].mxu0
    %507 = vdwg.mxu0
    %508 = vmatprep.subr.mxu0 %v293
    %509 = vmatpush1.xpose.msra.mxu0 %v135
    %510 = vmatprep.subr.mxu0 %v296
    %511 = vmatpush1.xpose.msra.mxu0 %v143
    %512 = vmatprep.subr.mxu0 0.0
    %513 = vmatpush1.xpose.msra.mxu0 0.0
    %514 = vmatprep.subr.mxu0 0.0
    %515 = vmatpush1.xpose.msra.mxu0 0.0
    %516 = vmatprep.subr.mxu0 0.0
    %517 = vmatpush1.xpose.msra.mxu0 0.0
    %518 = vmatprep.subr.mxu0 0.0
    %519 = vmatpush1.xpose.msra.mxu0 0.0
    %520 = vmatprep.subr.mxu0 0.0
    %521 = vmatpush1.xpose.msra.mxu0 0.0
    %522 = vmatprep.subr.mxu0 0.0
    %523 = vmatpush1.xpose.msra.mxu0 0.0
    %524 = vmatprep.subr.mxu0 0.0
    %525 = vmatpush1.xpose.msra.mxu0 0.0
    %526 = vmatprep.subr.mxu0 0.0
    %527 = vmatpush1.xpose.msra.mxu0 0.0
    %528 = vmatprep.subr.mxu0 0.0
    %529 = vmatpush1.xpose.msra.mxu0 0.0
    %530 = vmatprep.subr.mxu0 0.0
    %531 = vmatpush1.xpose.msra.mxu0 0.0
    %532 = vmatprep.subr.mxu0 0.0
    %533 = vmatpush1.xpose.msra.mxu0 0.0
    %534 = vmatprep.subr.mxu0 0.0
    %535 = vmatpush1.xpose.msra.mxu0 0.0
    %536 = vmatprep.subr.mxu0 0.0
    %537 = vmatpush1.xpose.msra.mxu0 0.0
    %538 = vmatprep.subr.mxu0 0.0
    %539 = vmatpush1.xpose.msra.mxu0 0.0
    %540 = vmatprep.subr.mxu0 0.0
    %541 = vmatpush1.xpose.msra.mxu0 0.0
    %542 = vmatprep.subr.mxu0 0.0
    %543 = vmatpush1.xpose.msra.mxu0 0.0
    %544 = vmatprep.subr.mxu0 0.0
    %545 = vmatpush1.xpose.msra.mxu0 0.0
    %546 = vmatprep.subr.mxu0 0.0
    %547 = vmatpush1.xpose.msra.mxu0 0.0
    %548 = vmatprep.subr.mxu0 0.0
    %549 = vmatpush1.xpose.msra.mxu0 0.0
    %550 = vmatprep.subr.mxu0 0.0
    %551 = vmatpush1.xpose.msra.mxu0 0.0
    %552 = vmatprep.subr.mxu0 0.0
    %553 = vmatpush1.xpose.msra.mxu0 0.0
    %554 = vmatprep.subr.mxu0 0.0
    %555 = vmatpush1.xpose.msra.mxu0 0.0
    %556 = vmatprep.subr.mxu0 0.0
    %557 = vmatpush1.xpose.msra.mxu0 0.0
    %558 = vmatprep.subr.mxu0 0.0
    %559 = vmatpush1.xpose.msra.mxu0 0.0
    %560 = vmatprep.subr.mxu0 0.0
    %561 = vmatpush1.xpose.msra.mxu0 0.0
    %562 = vmatprep.subr.mxu0 0.0
    %563 = vmatpush1.xpose.msra.mxu0 0.0
    %564 = vmatprep.subr.mxu0 0.0
    %565 = vmatpush1.xpose.msra.mxu0 0.0
    %566 = vmatprep.subr.mxu0 0.0
    %567 = vmatpush1.xpose.msra.mxu0 0.0
    %568 = vmatprep.subr.mxu0 0.0
    %569 = vmatpush1.xpose.msra.mxu0 0.0
    %570 = vmatprep.subr.mxu0 0.0
    %571 = vmatpush1.xpose.msra.mxu0 0.0
    %572 = vmatprep.mubr.f32.mxu0 %v290
    %573 = vmatmul.mubr.f32.gmra.mrb[0].mxu0 %v280
    %v574 = vpop.f32.mrb[0].mxu0
    %v575 = vadd.f32 %v505, %v574
    %v576 = vpop.f32.mrb[0].mxu0
    %577 = vdwg.mxu0
    %vm578 = vcmask 74752
    %579 = vst.msk [vmem:[#allocation11] sm:$0x3] %vm578, %v575
    %v580 = vlaneseq
    %v581 = vand.u32 %v580, 127
    %583 = vset.pattern.permute.xlu0 0
    %584 = vperm.xlu0 %583, %v575
    %v585 = vpop.permute.xlu0 %584
    %vm587 = vcmp.gt.f32.partialorder %v585, %v575
    %vm588 = vcmp.eq.f32.partialorder %v585, %v575
    %vm589 = vcmp.gt.s32.totalorder %v581, 0
    %vm590 = vmand %vm588, %vm589
    %vm591 = vmor %vm587, %vm590
    %v592 = vsel %vm591, 1, 0
    %v593 = vcvt.s32.f32 %v592
    %v594 = vadd.f32 %v593, 0.0
    %595 = vset.pattern.permute.xlu0 1
    %596 = vperm.xlu0 %595, %v575
    %v597 = vpop.permute.xlu0 %596
    %vm599 = vcmp.gt.f32.partialorder %v597, %v575
    %vm600 = vcmp.eq.f32.partialorder %v597, %v575
    %vm601 = vcmp.gt.s32.totalorder %v581, 1
    %vm602 = vmand %vm600, %vm601
    %vm603 = vmor %vm599, %vm602
    %v604 = vsel %vm603, 1, 0
    %v605 = vcvt.s32.f32 %v604
    %v606 = vadd.f32 %v594, %v605
    %607 = vset.pattern.permute.xlu0 2
    %608 = vperm.xlu0 %607, %v575
    %v609 = vpop.permute.xlu0 %608
    %vm611 = vcmp.gt.f32.partialorder %v609, %v575
    %vm612 = vcmp.eq.f32.partialorder %v609, %v575
    %vm613 = vcmp.gt.s32.totalorder %v581, 2
    %vm614 = vmand %vm612, %vm613
    %vm615 = vmor %vm611, %vm614
    %v616 = vsel %vm615, 1, 0
    %v617 = vcvt.s32.f32 %v616
    %v618 = vadd.f32 %v606, %v617
    %619 = vset.pattern.permute.xlu0 3
    %620 = vperm.xlu0 %619, %v575
    %v621 = vpop.permute.xlu0 %620
    %vm623 = vcmp.gt.f32.partialorder %v621, %v575
    %vm624 = vcmp.eq.f32.partialorder %v621, %v575
    %vm625 = vcmp.gt.s32.totalorder %v581, 3
    %vm626 = vmand %vm624, %vm625
    %vm627 = vmor %vm623, %vm626
    %v628 = vsel %vm627, 1, 0
    %v629 = vcvt.s32.f32 %v628
    %v630 = vadd.f32 %v618, %v629
    %631 = vset.pattern.permute.xlu0 4
    %632 = vperm.xlu0 %631, %v575
    %v633 = vpop.permute.xlu0 %632
    %vm635 = vcmp.gt.f32.partialorder %v633, %v575
    %vm636 = vcmp.eq.f32.partialorder %v633, %v575
    %vm637 = vcmp.gt.s32.totalorder %v581, 4
    %vm638 = vmand %vm636, %vm637
    %vm639 = vmor %vm635, %vm638
    %v640 = vsel %vm639, 1, 0
    %v641 = vcvt.s32.f32 %v640
    %v642 = vadd.f32 %v630, %v641
    %643 = vset.pattern.permute.xlu0 5
    %644 = vperm.xlu0 %643, %v575
    %v645 = vpop.permute.xlu0 %644
    %vm647 = vcmp.gt.f32.partialorder %v645, %v575
    %vm648 = vcmp.eq.f32.partialorder %v645, %v575
    %vm649 = vcmp.gt.s32.totalorder %v581, 5
    %vm650 = vmand %vm648, %vm649
    %vm651 = vmor %vm647, %vm650
    %v652 = vsel %vm651, 1, 0
    %v653 = vcvt.s32.f32 %v652
    %v654 = vadd.f32 %v642, %v653
    %655 = vset.pattern.permute.xlu0 6
    %656 = vperm.xlu0 %655, %v575
    %v657 = vpop.permute.xlu0 %656
    %vm659 = vcmp.gt.f32.partialorder %v657, %v575
    %vm660 = vcmp.eq.f32.partialorder %v657, %v575
    %vm661 = vcmp.gt.s32.totalorder %v581, 6
    %vm662 = vmand %vm660, %vm661
    %vm663 = vmor %vm659, %vm662
    %v664 = vsel %vm663, 1, 0
    %v665 = vcvt.s32.f32 %v664
    %v666 = vadd.f32 %v654, %v665
    %667 = vset.pattern.permute.xlu0 7
    %668 = vperm.xlu0 %667, %v575
    %v669 = vpop.permute.xlu0 %668
    %vm671 = vcmp.gt.f32.partialorder %v669, %v575
    %vm672 = vcmp.eq.f32.partialorder %v669, %v575
    %vm673 = vcmp.gt.s32.totalorder %v581, 7
    %vm674 = vmand %vm672, %vm673
    %vm675 = vmor %vm671, %vm674
    %v676 = vsel %vm675, 1, 0
    %v677 = vcvt.s32.f32 %v676
    %v678 = vadd.f32 %v666, %v677
    %679 = vset.pattern.permute.xlu0 8
    %680 = vperm.xlu0 %679, %v575
    %v681 = vpop.permute.xlu0 %680
    %vm683 = vcmp.gt.f32.partialorder %v681, %v575
    %vm684 = vcmp.eq.f32.partialorder %v681, %v575
    %vm685 = vcmp.gt.s32.totalorder %v581, 8
    %vm686 = vmand %vm684, %vm685
    %vm687 = vmor %vm683, %vm686
    %v688 = vsel %vm687, 1, 0
    %v689 = vcvt.s32.f32 %v688
    %v690 = vadd.f32 %v678, %v689
    %691 = vset.pattern.permute.xlu0 9
    %692 = vperm.xlu0 %691, %v575
    %v693 = vpop.permute.xlu0 %692
    %vm695 = vcmp.gt.f32.partialorder %v693, %v575
    %vm696 = vcmp.eq.f32.partialorder %v693, %v575
    %vm697 = vcmp.gt.s32.totalorder %v581, 9
    %vm698 = vmand %vm696, %vm697
    %vm699 = vmor %vm695, %vm698
    %v700 = vsel %vm699, 1, 0
    %v701 = vcvt.s32.f32 %v700
    %v702 = vadd.f32 %v690, %v701
    %vm703 = vcmp.lt.f32.partialorder %v702, 5.0
    %v704 = vsel %vm703, 1, 0
    %v705 = vcvt.s32.f32 %v704
    %v706 = vsel %vm578, %v705, 0.0
    %v707 = vrot.slane %v706, 4
    %v708 = vadd.f32 %v706, %v707
    %v709 = vrot.slane %v708, 2
    %v710 = vadd.f32 %v708, %v709
    %v711 = vrot.slane %v710, 1
    %v712 = vadd.f32 %v710, %v711
    %714 = vset.pattern.permute.xlu0 0
    %715 = vperm.xlu0 %714, %v712
    %v716 = vpop.permute.xlu0 %715
    %vm718 = vcmp.gt.f32.partialorder %v716, %v712
    %vm719 = vcmp.eq.f32.partialorder %v716, %v712
    %vm720 = vmand %vm719, %vm589
    %vm721 = vmor %vm718, %vm720
    %v722 = vsel %vm721, 1, 0
    %v723 = vcvt.s32.f32 %v722
    %v724 = vadd.f32 %v723, 0.0
    %725 = vset.pattern.permute.xlu0 1
    %726 = vperm.xlu0 %725, %v712
    %v727 = vpop.permute.xlu0 %726
    %vm729 = vcmp.gt.f32.partialorder %v727, %v712
    %vm730 = vcmp.eq.f32.partialorder %v727, %v712
    %vm731 = vmand %vm730, %vm601
    %vm732 = vmor %vm729, %vm731
    %v733 = vsel %vm732, 1, 0
    %v734 = vcvt.s32.f32 %v733
    %v735 = vadd.f32 %v724, %v734
    %736 = vset.pattern.permute.xlu0 2
    %737 = vperm.xlu0 %736, %v712
    %v738 = vpop.permute.xlu0 %737
    %vm740 = vcmp.gt.f32.partialorder %v738, %v712
    %vm741 = vcmp.eq.f32.partialorder %v738, %v712
    %vm742 = vmand %vm741, %vm613
    %vm743 = vmor %vm740, %vm742
    %v744 = vsel %vm743, 1, 0
    %v745 = vcvt.s32.f32 %v744
    %v746 = vadd.f32 %v735, %v745
    %747 = vset.pattern.permute.xlu0 3
    %748 = vperm.xlu0 %747, %v712
    %v749 = vpop.permute.xlu0 %748
    %vm751 = vcmp.gt.f32.partialorder %v749, %v712
    %vm752 = vcmp.eq.f32.partialorder %v749, %v712
    %vm753 = vmand %vm752, %vm625
    %vm754 = vmor %vm751, %vm753
    %v755 = vsel %vm754, 1, 0
    %v756 = vcvt.s32.f32 %v755
    %v757 = vadd.f32 %v746, %v756
    %758 = vset.pattern.permute.xlu0 4
    %759 = vperm.xlu0 %758, %v712
    %v760 = vpop.permute.xlu0 %759
    %vm762 = vcmp.gt.f32.partialorder %v760, %v712
    %vm763 = vcmp.eq.f32.partialorder %v760, %v712
    %vm764 = vmand %vm763, %vm637
    %vm765 = vmor %vm762, %vm764
    %v766 = vsel %vm765, 1, 0
    %v767 = vcvt.s32.f32 %v766
    %v768 = vadd.f32 %v757, %v767
    %769 = vset.pattern.permute.xlu0 5
    %770 = vperm.xlu0 %769, %v712
    %v771 = vpop.permute.xlu0 %770
    %vm773 = vcmp.gt.f32.partialorder %v771, %v712
    %vm774 = vcmp.eq.f32.partialorder %v771, %v712
    %vm775 = vmand %vm774, %vm649
    %vm776 = vmor %vm773, %vm775
    %v777 = vsel %vm776, 1, 0
    %v778 = vcvt.s32.f32 %v777
    %v779 = vadd.f32 %v768, %v778
    %780 = vset.pattern.permute.xlu0 6
    %781 = vperm.xlu0 %780, %v712
    %v782 = vpop.permute.xlu0 %781
    %vm784 = vcmp.gt.f32.partialorder %v782, %v712
    %vm785 = vcmp.eq.f32.partialorder %v782, %v712
    %vm786 = vmand %vm785, %vm661
    %vm787 = vmor %vm784, %vm786
    %v788 = vsel %vm787, 1, 0
    %v789 = vcvt.s32.f32 %v788
    %v790 = vadd.f32 %v779, %v789
    %791 = vset.pattern.permute.xlu0 7
    %792 = vperm.xlu0 %791, %v712
    %v793 = vpop.permute.xlu0 %792
    %vm795 = vcmp.gt.f32.partialorder %v793, %v712
    %vm796 = vcmp.eq.f32.partialorder %v793, %v712
    %vm797 = vmand %vm796, %vm673
    %vm798 = vmor %vm795, %vm797
    %v799 = vsel %vm798, 1, 0
    %v800 = vcvt.s32.f32 %v799
    %v801 = vadd.f32 %v790, %v800
    %802 = vset.pattern.permute.xlu0 8
    %803 = vperm.xlu0 %802, %v712
    %v804 = vpop.permute.xlu0 %803
    %vm806 = vcmp.gt.f32.partialorder %v804, %v712
    %vm807 = vcmp.eq.f32.partialorder %v804, %v712
    %vm808 = vmand %vm807, %vm685
    %vm809 = vmor %vm806, %vm808
    %v810 = vsel %vm809, 1, 0
    %v811 = vcvt.s32.f32 %v810
    %v812 = vadd.f32 %v801, %v811
    %813 = vset.pattern.permute.xlu0 9
    %814 = vperm.xlu0 %813, %v712
    %v815 = vpop.permute.xlu0 %814
    %vm817 = vcmp.gt.f32.partialorder %v815, %v712
    %vm818 = vcmp.eq.f32.partialorder %v815, %v712
    %vm819 = vmand %vm818, %vm697
    %vm820 = vmor %vm817, %vm819
    %v821 = vsel %vm820, 1, 0
    %v822 = vcvt.s32.f32 %v821
    %v823 = vadd.f32 %v812, %v822
    %vm824 = vcmp.lt.f32.partialorder %v823, 5.0
    %v825 = vsel %vm824, 1, 0
    %v826 = vcvt.s32.f32 %v825
    %v827 = vsel %vm589, 1, 0
    %v828 = vcvt.s32.f32 %v827
    %830 = vset.pattern.permute.xlu0 0
    %831 = vperm.xlu0 %830, %v826
    %v832 = vpop.permute.xlu0 %831
    %v834 = vmul.f32 %v832, %v828
    %v835 = vadd.f32 %v834, 0.0
    %v836 = vsel %vm601, 1, 0
    %v837 = vcvt.s32.f32 %v836
    %838 = vset.pattern.permute.xlu0 1
    %839 = vperm.xlu0 %838, %v826
    %v840 = vpop.permute.xlu0 %839
    %v842 = vmul.f32 %v840, %v837
    %v843 = vadd.f32 %v835, %v842
    %v844 = vsel %vm613, 1, 0
    %v845 = vcvt.s32.f32 %v844
    %846 = vset.pattern.permute.xlu0 2
    %847 = vperm.xlu0 %846, %v826
    %v848 = vpop.permute.xlu0 %847
    %v850 = vmul.f32 %v848, %v845
    %v851 = vadd.f32 %v843, %v850
    %v852 = vsel %vm625, 1, 0
    %v853 = vcvt.s32.f32 %v852
    %854 = vset.pattern.permute.xlu0 3
    %855 = vperm.xlu0 %854, %v826
    %v856 = vpop.permute.xlu0 %855
    %v858 = vmul.f32 %v856, %v853
    %v859 = vadd.f32 %v851, %v858
    %v860 = vsel %vm637, 1, 0
    %v861 = vcvt.s32.f32 %v860
    %862 = vset.pattern.permute.xlu0 4
    %863 = vperm.xlu0 %862, %v826
    %v864 = vpop.permute.xlu0 %863
    %v866 = vmul.f32 %v864, %v861
    %v867 = vadd.f32 %v859, %v866
    %v868 = vsel %vm649, 1, 0
    %v869 = vcvt.s32.f32 %v868
    %870 = vset.pattern.permute.xlu0 5
    %871 = vperm.xlu0 %870, %v826
    %v872 = vpop.permute.xlu0 %871
    %v874 = vmul.f32 %v872, %v869
    %v875 = vadd.f32 %v867, %v874
    %v876 = vsel %vm661, 1, 0
    %v877 = vcvt.s32.f32 %v876
    %878 = vset.pattern.permute.xlu0 6
    %879 = vperm.xlu0 %878, %v826
    %v880 = vpop.permute.xlu0 %879
    %v882 = vmul.f32 %v880, %v877
    %v883 = vadd.f32 %v875, %v882
    %v884 = vsel %vm673, 1, 0
    %v885 = vcvt.s32.f32 %v884
    %886 = vset.pattern.permute.xlu0 7
    %887 = vperm.xlu0 %886, %v826
    %v888 = vpop.permute.xlu0 %887
    %v890 = vmul.f32 %v888, %v885
    %v891 = vadd.f32 %v883, %v890
    %v892 = vsel %vm685, 1, 0
    %v893 = vcvt.s32.f32 %v892
    %894 = vset.pattern.permute.xlu0 8
    %895 = vperm.xlu0 %894, %v826
    %v896 = vpop.permute.xlu0 %895
    %v898 = vmul.f32 %v896, %v893
    %v899 = vadd.f32 %v891, %v898
    %v900 = vsel %vm697, 1, 0
    %v901 = vcvt.s32.f32 %v900
    %902 = vset.pattern.permute.xlu0 9
    %903 = vperm.xlu0 %902, %v826
    %v904 = vpop.permute.xlu0 %903
    %v906 = vmul.f32 %v904, %v901
    %v907 = vadd.f32 %v899, %v906
    %v908 = vcvt.s32.f32 %v581
    %910 = vset.pattern.permute.xlu0 0
    %911 = vperm.xlu0 %910, %v907
    %v912 = vpop.permute.xlu0 %911
    %vm914 = vcmp.eq.f32.partialorder %v912, %v908
    %v915 = vsel %vm914, 1, 0
    %v916 = vcvt.s32.f32 %v915
    %v917 = vmul.f32 %v832, %v916
    %v918 = vmul.f32 %v917, 0.0
    %v919 = vadd.f32 %v918, 0.0
    %920 = vset.pattern.permute.xlu0 1
    %921 = vperm.xlu0 %920, %v907
    %v922 = vpop.permute.xlu0 %921
    %vm924 = vcmp.eq.f32.partialorder %v922, %v908
    %v925 = vsel %vm924, 1, 0
    %v926 = vcvt.s32.f32 %v925
    %v927 = vmul.f32 %v840, %v926
    %v928 = vadd.f32 %v919, %v927
    %929 = vset.pattern.permute.xlu0 2
    %930 = vperm.xlu0 %929, %v907
    %v931 = vpop.permute.xlu0 %930
    %vm933 = vcmp.eq.f32.partialorder %v931, %v908
    %v934 = vsel %vm933, 1, 0
    %v935 = vcvt.s32.f32 %v934
    %v936 = vmul.f32 %v848, %v935
    %v937 = vmul.f32 %v936, 2.0
    %v938 = vadd.f32 %v928, %v937
    %939 = vset.pattern.permute.xlu0 3
    %940 = vperm.xlu0 %939, %v907
    %v941 = vpop.permute.xlu0 %940
    %vm943 = vcmp.eq.f32.partialorder %v941, %v908
    %v944 = vsel %vm943, 1, 0
    %v945 = vcvt.s32.f32 %v944
    %v946 = vmul.f32 %v856, %v945
    %v947 = vmul.f32 %v946, 3.0
    %v948 = vadd.f32 %v938, %v947
    %949 = vset.pattern.permute.xlu0 4
    %950 = vperm.xlu0 %949, %v907
    %v951 = vpop.permute.xlu0 %950
    %vm953 = vcmp.eq.f32.partialorder %v951, %v908
    %v954 = vsel %vm953, 1, 0
    %v955 = vcvt.s32.f32 %v954
    %v956 = vmul.f32 %v864, %v955
    %v957 = vmul.f32 %v956, 4.0
    %v958 = vadd.f32 %v948, %v957
    %959 = vset.pattern.permute.xlu0 5
    %960 = vperm.xlu0 %959, %v907
    %v961 = vpop.permute.xlu0 %960
    %vm963 = vcmp.eq.f32.partialorder %v961, %v908
    %v964 = vsel %vm963, 1, 0
    %v965 = vcvt.s32.f32 %v964
    %v966 = vmul.f32 %v872, %v965
    %v967 = vmul.f32 %v966, 5.0
    %v968 = vadd.f32 %v958, %v967
    %969 = vset.pattern.permute.xlu0 6
    %970 = vperm.xlu0 %969, %v907
    %v971 = vpop.permute.xlu0 %970
    %vm973 = vcmp.eq.f32.partialorder %v971, %v908
    %v974 = vsel %vm973, 1, 0
    %v975 = vcvt.s32.f32 %v974
    %v976 = vmul.f32 %v880, %v975
    %v977 = vmul.f32 %v976, 6.0
    %v978 = vadd.f32 %v968, %v977
    %979 = vset.pattern.permute.xlu0 7
    %980 = vperm.xlu0 %979, %v907
    %v981 = vpop.permute.xlu0 %980
    %vm983 = vcmp.eq.f32.partialorder %v981, %v908
    %v984 = vsel %vm983, 1, 0
    %v985 = vcvt.s32.f32 %v984
    %v986 = vmul.f32 %v888, %v985
    %v987 = vmul.f32 %v986, 7.0
    %v988 = vadd.f32 %v978, %v987
    %989 = vset.pattern.permute.xlu0 8
    %990 = vperm.xlu0 %989, %v907
    %v991 = vpop.permute.xlu0 %990
    %vm993 = vcmp.eq.f32.partialorder %v991, %v908
    %v994 = vsel %vm993, 1, 0
    %v995 = vcvt.s32.f32 %v994
    %v996 = vmul.f32 %v896, %v995
    %v997 = vmul.f32 %v996, 8.0
    %v998 = vadd.f32 %v988, %v997
    %999 = vset.pattern.permute.xlu0 9
    %1000 = vperm.xlu0 %999, %v907
    %v1001 = vpop.permute.xlu0 %1000
    %vm1003 = vcmp.eq.f32.partialorder %v1001, %v908
    %v1004 = vsel %vm1003, 1, 0
    %v1005 = vcvt.s32.f32 %v1004
    %v1006 = vmul.f32 %v904, %v1005
    %v1007 = vmul.f32 %v1006, 9.0
    %v1008 = vadd.f32 %v998, %v1007
    %v1009 = vadd.f32 %v1008, 0.5
    %v1010 = vcvt.f32.s32.to.zero.pseudo %v1009
    %vm1011 = vcmask 33792
    %1012 = vst.msk [vmem:[#allocation12] sm:$0x3] %vm1011, %v1010
    %v1013 = vlaneseq
    %v1014 = vshrl.u32 %v1013, 7
    %v1015 = vcvt.s32.f32 %v1014
    %vm1016 = vcmp.eq.f32.partialorder %v907, %v1015
    %v1017 = vsel %vm1016, 1, 0
    %v1018 = vcvt.s32.f32 %v1017
    %v1019 = vmul.f32 %v826, %v1018
    %vm1020 = vcmask 80896
    %v1022 = vsel %vm1020, %v1019, 0
    %v1025 = vsel %vm106, %v137, 0
    %v1028 = vsel %vm106, %v138, 0
    %v1031 = vsel %vm106, %v139, 0
    %v1034 = vsel %vm106, %v140, 0
    %v1037 = vsel %vm106, %v141, 0
    %v1040 = vsel %vm106, %v142, 0
    %v1043 = vsel %vm106, %v143, 0
    %v1045 = vsel %vm106, %v144, 0
    %1047 = vmatprep.subr.mxu0 %v130
    %1048 = vmatpush1.msra.mxu0 %v129
    %1049 = vmatprep.subr.mxu0 %v1028
    %1050 = vmatpush1.msra.mxu0 %v1025
    %1051 = vmatprep.subr.mxu0 0.0
    %1052 = vmatpush1.msra.mxu0 0.0
    %1053 = vmatprep.subr.mxu0 0.0
    %1054 = vmatpush1.msra.mxu0 0.0
    %1055 = vmatprep.subr.mxu0 0.0
    %1056 = vmatpush1.msra.mxu0 0.0
    %1057 = vmatprep.subr.mxu0 0.0
    %1058 = vmatpush1.msra.mxu0 0.0
    %1059 = vmatprep.subr.mxu0 0.0
    %1060 = vmatpush1.msra.mxu0 0.0
    %1061 = vmatprep.subr.mxu0 0.0
    %1062 = vmatpush1.msra.mxu0 0.0
    %1063 = vmatprep.subr.mxu0 0.0
    %1064 = vmatpush1.msra.mxu0 0.0
    %1065 = vmatprep.subr.mxu0 0.0
    %1066 = vmatpush1.msra.mxu0 0.0
    %1067 = vmatprep.subr.mxu0 0.0
    %1068 = vmatpush1.msra.mxu0 0.0
    %1069 = vmatprep.subr.mxu0 0.0
    %1070 = vmatpush1.msra.mxu0 0.0
    %1071 = vmatprep.subr.mxu0 0.0
    %1072 = vmatpush1.msra.mxu0 0.0
    %1073 = vmatprep.subr.mxu0 0.0
    %1074 = vmatpush1.msra.mxu0 0.0
    %1075 = vmatprep.subr.mxu0 0.0
    %1076 = vmatpush1.msra.mxu0 0.0
    %1077 = vmatprep.subr.mxu0 0.0
    %1078 = vmatpush1.msra.mxu0 0.0
    %1079 = vmatprep.subr.mxu0 0.0
    %1080 = vmatpush1.msra.mxu0 0.0
    %1081 = vmatprep.subr.mxu0 0.0
    %1082 = vmatpush1.msra.mxu0 0.0
    %1083 = vmatprep.subr.mxu0 0.0
    %1084 = vmatpush1.msra.mxu0 0.0
    %1085 = vmatprep.subr.mxu0 0.0
    %1086 = vmatpush1.msra.mxu0 0.0
    %1087 = vmatprep.subr.mxu0 0.0
    %1088 = vmatpush1.msra.mxu0 0.0
    %1089 = vmatprep.subr.mxu0 0.0
    %1090 = vmatpush1.msra.mxu0 0.0
    %1091 = vmatprep.subr.mxu0 0.0
    %1092 = vmatpush1.msra.mxu0 0.0
    %1093 = vmatprep.subr.mxu0 0.0
    %1094 = vmatpush1.msra.mxu0 0.0
    %1095 = vmatprep.subr.mxu0 0.0
    %1096 = vmatpush1.msra.mxu0 0.0
    %1097 = vmatprep.subr.mxu0 0.0
    %1098 = vmatpush1.msra.mxu0 0.0
    %1099 = vmatprep.subr.mxu0 0.0
    %1100 = vmatpush1.msra.mxu0 0.0
    %1101 = vmatprep.subr.mxu0 0.0
    %1102 = vmatpush1.msra.mxu0 0.0
    %1103 = vmatprep.subr.mxu0 0.0
    %1104 = vmatpush1.msra.mxu0 0.0
    %1105 = vmatprep.subr.mxu0 0.0
    %1106 = vmatpush1.msra.mxu0 0.0
    %1107 = vmatprep.subr.mxu0 0.0
    %1108 = vmatpush1.msra.mxu0 0.0
    %1109 = vmatprep.subr.mxu0 0.0
    %1110 = vmatpush1.msra.mxu0 0.0
    %1111 = vmatprep.mubr.f32.mxu0 0.0
    %1112 = vmatmul.mubr.f32.gmra.mrb[0].mxu0 %v1022
    %v1113 = vpop.f32.mrb[0].mxu0
    %v1114 = vadd.f32 0.0, %v1113
    %v1115 = vpop.f32.mrb[0].mxu0
    %v1116 = vadd.f32 0.0, %v1115
    %1117 = vdwg.mxu0
    %1118 = vmatprep.subr.mxu0 %v132
    %1119 = vmatpush1.msra.mxu0 %v131
    %1120 = vmatprep.subr.mxu0 %v1034
    %1121 = vmatpush1.msra.mxu0 %v1031
    %1122 = vmatprep.subr.mxu0 0.0
    %1123 = vmatpush1.msra.mxu0 0.0
    %1124 = vmatprep.subr.mxu0 0.0
    %1125 = vmatpush1.msra.mxu0 0.0
    %1126 = vmatprep.subr.mxu0 0.0
    %1127 = vmatpush1.msra.mxu0 0.0
    %1128 = vmatprep.subr.mxu0 0.0
    %1129 = vmatpush1.msra.mxu0 0.0
    %1130 = vmatprep.subr.mxu0 0.0
    %1131 = vmatpush1.msra.mxu0 0.0
    %1132 = vmatprep.subr.mxu0 0.0
    %1133 = vmatpush1.msra.mxu0 0.0
    %1134 = vmatprep.subr.mxu0 0.0
    %1135 = vmatpush1.msra.mxu0 0.0
    %1136 = vmatprep.subr.mxu0 0.0
    %1137 = vmatpush1.msra.mxu0 0.0
    %1138 = vmatprep.subr.mxu0 0.0
    %1139 = vmatpush1.msra.mxu0 0.0
    %1140 = vmatprep.subr.mxu0 0.0
    %1141 = vmatpush1.msra.mxu0 0.0
    %1142 = vmatprep.subr.mxu0 0.0
    %1143 = vmatpush1.msra.mxu0 0.0
    %1144 = vmatprep.subr.mxu0 0.0
    %1145 = vmatpush1.msra.mxu0 0.0
    %1146 = vmatprep.subr.mxu0 0.0
    %1147 = vmatpush1.msra.mxu0 0.0
    %1148 = vmatprep.subr.mxu0 0.0
    %1149 = vmatpush1.msra.mxu0 0.0
    %1150 = vmatprep.subr.mxu0 0.0
    %1151 = vmatpush1.msra.mxu0 0.0
    %1152 = vmatprep.subr.mxu0 0.0
    %1153 = vmatpush1.msra.mxu0 0.0
    %1154 = vmatprep.subr.mxu0 0.0
    %1155 = vmatpush1.msra.mxu0 0.0
    %1156 = vmatprep.subr.mxu0 0.0
    %1157 = vmatpush1.msra.mxu0 0.0
    %1158 = vmatprep.subr.mxu0 0.0
    %1159 = vmatpush1.msra.mxu0 0.0
    %1160 = vmatprep.subr.mxu0 0.0
    %1161 = vmatpush1.msra.mxu0 0.0
    %1162 = vmatprep.subr.mxu0 0.0
    %1163 = vmatpush1.msra.mxu0 0.0
    %1164 = vmatprep.subr.mxu0 0.0
    %1165 = vmatpush1.msra.mxu0 0.0
    %1166 = vmatprep.subr.mxu0 0.0
    %1167 = vmatpush1.msra.mxu0 0.0
    %1168 = vmatprep.subr.mxu0 0.0
    %1169 = vmatpush1.msra.mxu0 0.0
    %1170 = vmatprep.subr.mxu0 0.0
    %1171 = vmatpush1.msra.mxu0 0.0
    %1172 = vmatprep.subr.mxu0 0.0
    %1173 = vmatpush1.msra.mxu0 0.0
    %1174 = vmatprep.subr.mxu0 0.0
    %1175 = vmatpush1.msra.mxu0 0.0
    %1176 = vmatprep.subr.mxu0 0.0
    %1177 = vmatpush1.msra.mxu0 0.0
    %1178 = vmatprep.subr.mxu0 0.0
    %1179 = vmatpush1.msra.mxu0 0.0
    %1180 = vmatprep.subr.mxu0 0.0
    %1181 = vmatpush1.msra.mxu0 0.0
    %1182 = vmatprep.mubr.f32.mxu0 0.0
    %1183 = vmatmul.mubr.f32.gmra.mrb[0].mxu0 %v1022
    %v1184 = vpop.f32.mrb[0].mxu0
    %v1185 = vadd.f32 0.0, %v1184
    %v1186 = vpop.f32.mrb[0].mxu0
    %v1187 = vadd.f32 0.0, %v1186
    %1188 = vdwg.mxu0
    %1189 = vmatprep.subr.mxu0 %v134
    %1190 = vmatpush1.msra.mxu0 %v133
    %1191 = vmatprep.subr.mxu0 %v1040
    %1192 = vmatpush1.msra.mxu0 %v1037
    %1193 = vmatprep.subr.mxu0 0.0
    %1194 = vmatpush1.msra.mxu0 0.0
    %1195 = vmatprep.subr.mxu0 0.0
    %1196 = vmatpush1.msra.mxu0 0.0
    %1197 = vmatprep.subr.mxu0 0.0
    %1198 = vmatpush1.msra.mxu0 0.0
    %1199 = vmatprep.subr.mxu0 0.0
    %1200 = vmatpush1.msra.mxu0 0.0
    %1201 = vmatprep.subr.mxu0 0.0
    %1202 = vmatpush1.msra.mxu0 0.0
    %1203 = vmatprep.subr.mxu0 0.0
    %1204 = vmatpush1.msra.mxu0 0.0
    %1205 = vmatprep.subr.mxu0 0.0
    %1206 = vmatpush1.msra.mxu0 0.0
    %1207 = vmatprep.subr.mxu0 0.0
    %1208 = vmatpush1.msra.mxu0 0.0
    %1209 = vmatprep.subr.mxu0 0.0
    %1210 = vmatpush1.msra.mxu0 0.0
    %1211 = vmatprep.subr.mxu0 0.0
    %1212 = vmatpush1.msra.mxu0 0.0
    %1213 = vmatprep.subr.mxu0 0.0
    %1214 = vmatpush1.msra.mxu0 0.0
    %1215 = vmatprep.subr.mxu0 0.0
    %1216 = vmatpush1.msra.mxu0 0.0
    %1217 = vmatprep.subr.mxu0 0.0
    %1218 = vmatpush1.msra.mxu0 0.0
    %1219 = vmatprep.subr.mxu0 0.0
    %1220 = vmatpush1.msra.mxu0 0.0
    %1221 = vmatprep.subr.mxu0 0.0
    %1222 = vmatpush1.msra.mxu0 0.0
    %1223 = vmatprep.subr.mxu0 0.0
    %1224 = vmatpush1.msra.mxu0 0.0
    %1225 = vmatprep.subr.mxu0 0.0
    %1226 = vmatpush1.msra.mxu0 0.0
    %1227 = vmatprep.subr.mxu0 0.0
    %1228 = vmatpush1.msra.mxu0 0.0
    %1229 = vmatprep.subr.mxu0 0.0
    %1230 = vmatpush1.msra.mxu0 0.0
    %1231 = vmatprep.subr.mxu0 0.0
    %1232 = vmatpush1.msra.mxu0 0.0
    %1233 = vmatprep.subr.mxu0 0.0
    %1234 = vmatpush1.msra.mxu0 0.0
    %1235 = vmatprep.subr.mxu0 0.0
    %1236 = vmatpush1.msra.mxu0 0.0
    %1237 = vmatprep.subr.mxu0 0.0
    %1238 = vmatpush1.msra.mxu0 0.0
    %1239 = vmatprep.subr.mxu0 0.0
    %1240 = vmatpush1.msra.mxu0 0.0
    %1241 = vmatprep.subr.mxu0 0.0
    %1242 = vmatpush1.msra.mxu0 0.0
    %1243 = vmatprep.subr.mxu0 0.0
    %1244 = vmatpush1.msra.mxu0 0.0
    %1245 = vmatprep.subr.mxu0 0.0
    %1246 = vmatpush1.msra.mxu0 0.0
    %1247 = vmatprep.subr.mxu0 0.0
    %1248 = vmatpush1.msra.mxu0 0.0
    %1249 = vmatprep.subr.mxu0 0.0
    %1250 = vmatpush1.msra.mxu0 0.0
    %1251 = vmatprep.subr.mxu0 0.0
    %1252 = vmatpush1.msra.mxu0 0.0
    %1253 = vmatprep.mubr.f32.mxu0 0.0
    %1254 = vmatmul.mubr.f32.gmra.mrb[0].mxu0 %v1022
    %v1255 = vpop.f32.mrb[0].mxu0
    %v1256 = vadd.f32 0.0, %v1255
    %v1257 = vpop.f32.mrb[0].mxu0
    %v1258 = vadd.f32 0.0, %v1257
    %1259 = vdwg.mxu0
    %1260 = vmatprep.subr.mxu0 %v136
    %1261 = vmatpush1.msra.mxu0 %v135
    %1262 = vmatprep.subr.mxu0 %v1045
    %1263 = vmatpush1.msra.mxu0 %v1043
    %1264 = vmatprep.subr.mxu0 0.0
    %1265 = vmatpush1.msra.mxu0 0.0
    %1266 = vmatprep.subr.mxu0 0.0
    %1267 = vmatpush1.msra.mxu0 0.0
    %1268 = vmatprep.subr.mxu0 0.0
    %1269 = vmatpush1.msra.mxu0 0.0
    %1270 = vmatprep.subr.mxu0 0.0
    %1271 = vmatpush1.msra.mxu0 0.0
    %1272 = vmatprep.subr.mxu0 0.0
    %1273 = vmatpush1.msra.mxu0 0.0
    %1274 = vmatprep.subr.mxu0 0.0
    %1275 = vmatpush1.msra.mxu0 0.0
    %1276 = vmatprep.subr.mxu0 0.0
    %1277 = vmatpush1.msra.mxu0 0.0
    %1278 = vmatprep.subr.mxu0 0.0
    %1279 = vmatpush1.msra.mxu0 0.0
    %1280 = vmatprep.subr.mxu0 0.0
    %1281 = vmatpush1.msra.mxu0 0.0
    %1282 = vmatprep.subr.mxu0 0.0
    %1283 = vmatpush1.msra.mxu0 0.0
    %1284 = vmatprep.subr.mxu0 0.0
    %1285 = vmatpush1.msra.mxu0 0.0
    %1286 = vmatprep.subr.mxu0 0.0
    %1287 = vmatpush1.msra.mxu0 0.0
    %1288 = vmatprep.subr.mxu0 0.0
    %1289 = vmatpush1.msra.mxu0 0.0
    %1290 = vmatprep.subr.mxu0 0.0
    %1291 = vmatpush1.msra.mxu0 0.0
    %1292 = vmatprep.subr.mxu0 0.0
    %1293 = vmatpush1.msra.mxu0 0.0
    %1294 = vmatprep.subr.mxu0 0.0
    %1295 = vmatpush1.msra.mxu0 0.0
    %1296 = vmatprep.subr.mxu0 0.0
    %1297 = vmatpush1.msra.mxu0 0.0
    %1298 = vmatprep.subr.mxu0 0.0
    %1299 = vmatpush1.msra.mxu0 0.0
    %1300 = vmatprep.subr.mxu0 0.0
    %1301 = vmatpush1.msra.mxu0 0.0
    %1302 = vmatprep.subr.mxu0 0.0
    %1303 = vmatpush1.msra.mxu0 0.0
    %1304 = vmatprep.subr.mxu0 0.0
    %1305 = vmatpush1.msra.mxu0 0.0
    %1306 = vmatprep.subr.mxu0 0.0
    %1307 = vmatpush1.msra.mxu0 0.0
    %1308 = vmatprep.subr.mxu0 0.0
    %1309 = vmatpush1.msra.mxu0 0.0
    %1310 = vmatprep.subr.mxu0 0.0
    %1311 = vmatpush1.msra.mxu0 0.0
    %1312 = vmatprep.subr.mxu0 0.0
    %1313 = vmatpush1.msra.mxu0 0.0
    %1314 = vmatprep.subr.mxu0 0.0
    %1315 = vmatpush1.msra.mxu0 0.0
    %1316 = vmatprep.subr.mxu0 0.0
    %1317 = vmatpush1.msra.mxu0 0.0
    %1318 = vmatprep.subr.mxu0 0.0
    %1319 = vmatpush1.msra.mxu0 0.0
    %1320 = vmatprep.subr.mxu0 0.0
    %1321 = vmatpush1.msra.mxu0 0.0
    %1322 = vmatprep.subr.mxu0 0.0
    %1323 = vmatpush1.msra.mxu0 0.0
    %1324 = vmatprep.mubr.f32.mxu0 0.0
    %1325 = vmatmul.mubr.f32.gmra.mrb[0].mxu0 %v1022
    %v1326 = vpop.f32.mrb[0].mxu0
    %v1327 = vadd.f32 0.0, %v1326
    %v1328 = vpop.f32.mrb[0].mxu0
    %v1329 = vadd.f32 0.0, %v1328
    %1330 = vdwg.mxu0
    %1331 = vst [vmem:[%s7] sm:$0x1f] %v1114
    %1332 = vst [vmem:[%s7 + $0x8] sm:$0x1f] %v1116
    %1333 = vst [vmem:[%s7 + $0x10] sm:$0x1f] %v1185
    %1334 = vst [vmem:[%s7 + $0x18] sm:$0x1f] %v1187
    %1335 = vst [vmem:[%s7 + $0x20] sm:$0x1f] %v1256
    %1336 = vst [vmem:[%s7 + $0x28] sm:$0x1f] %v1258
    %1337 = vst [vmem:[%s7 + $0x30] sm:$0x1f] %v1327
    %vm1338 = vcmask 847872
    %1339 = vst.msk [vmem:[%s7 + $0x38] sm:$0x1f] %vm1338, %v1329
    %v1340 = vld [vmem:[#allocation7] sm:$0xff]
    %v1341 = vld [vmem:[#allocation7 + $0x8] sm:$0xff]
    %v1342 = vld [vmem:[#allocation7 + $0x10] sm:$0xff]
    %v1343 = vld [vmem:[#allocation7 + $0x18] sm:$0xff]
    %v1344 = vld [vmem:[#allocation7 + $0x20] sm:$0xff]
    %v1345 = vld [vmem:[#allocation7 + $0x28] sm:$0xff]
    %v1346 = vld [vmem:[#allocation7 + $0x30] sm:$0xff]
    %v1347 = vld [vmem:[#allocation7 + $0x38] sm:$0xff]
    %v1348 = vld [vmem:[#allocation7 + $0x40] sm:$0xff]
    %v1349 = vld [vmem:[#allocation7 + $0x48] sm:$0xff]
    %v1350 = vld [vmem:[#allocation7 + $0x50] sm:$0xff]
    %v1351 = vld [vmem:[#allocation7 + $0x58] sm:$0xff]
    %v1352 = vld [vmem:[#allocation7 + $0x60] sm:$0xff]
    %v1353 = vld [vmem:[#allocation7 + $0x68] sm:$0xff]
    %v1354 = vld [vmem:[#allocation7 + $0x70] sm:$0xff]
    %v1355 = vld [vmem:[#allocation7 + $0x78] sm:$0xff]
    %v1356 = vld [vmem:[#allocation7 + $0x80] sm:$0xff]
    %v1357 = vld [vmem:[#allocation7 + $0x88] sm:$0xff]
    %v1358 = vld [vmem:[#allocation7 + $0x90] sm:$0xff]
    %v1359 = vld [vmem:[#allocation7 + $0x98] sm:$0xff]
    %v1360 = vld [vmem:[#allocation7 + $0xa0] sm:$0xff]
    %v1361 = vld [vmem:[#allocation7 + $0xa8] sm:$0xff]
    %v1362 = vld [vmem:[#allocation7 + $0xb0] sm:$0xff]
    %v1363 = vld [vmem:[#allocation7 + $0xb8] sm:$0xff]
    %v1364 = vld [vmem:[#allocation7 + $0xc0] sm:$0xff]
    %v1365 = vld [vmem:[#allocation7 + $0xc8] sm:$0xff]
    %v1366 = vld [vmem:[#allocation7 + $0xd0] sm:$0xff]
    %v1367 = vld [vmem:[#allocation7 + $0xd8] sm:$0xff]
    %v1368 = vld [vmem:[#allocation7 + $0xe0] sm:$0xff]
    %v1369 = vld [vmem:[#allocation7 + $0xe8] sm:$0xff]
    %v1370 = vld [vmem:[#allocation7 + $0xf0] sm:$0xff]
    %v1371 = vld [vmem:[#allocation7 + $0xf8] sm:$0xff]
    %v1372 = vld [vmem:[#allocation7 + $0x100] sm:$0xff]
    %v1373 = vld [vmem:[#allocation7 + $0x108] sm:$0xff]
    %v1374 = vld [vmem:[#allocation7 + $0x110] sm:$0xff]
    %v1375 = vld [vmem:[#allocation7 + $0x118] sm:$0xff]
    %v1376 = vld [vmem:[#allocation7 + $0x120] sm:$0xff]
    %v1377 = vld [vmem:[#allocation7 + $0x128] sm:$0xff]
    %v1378 = vld [vmem:[#allocation7 + $0x130] sm:$0xff]
    %v1379 = vld [vmem:[#allocation7 + $0x138] sm:$0xff]
    %v1380 = vld [vmem:[#allocation7 + $0x140] sm:$0x3]
    %v1381 = vld [vmem:[#allocation7 + $0x148] sm:$0x3]
    %v1382 = vld [vmem:[#allocation7 + $0x150] sm:$0x3]
    %v1383 = vld [vmem:[#allocation7 + $0x158] sm:$0x3]
    %v1384 = vld [vmem:[#allocation7 + $0x160] sm:$0x3]
    %v1385 = vld [vmem:[#allocation7 + $0x168] sm:$0x3]
    %v1386 = vld [vmem:[#allocation7 + $0x170] sm:$0x3]
    %v1387 = vld [vmem:[#allocation7 + $0x178] sm:$0x3]
    %v1388 = vld [vmem:[#allocation7 + $0x180] sm:$0x3]
    %v1389 = vld [vmem:[#allocation7 + $0x188] sm:$0x3]
    %v1390 = vld [vmem:[#allocation7 + $0x190] sm:$0x3]
    %v1391 = vld [vmem:[#allocation7 + $0x198] sm:$0x3]
    %v1392 = vld [vmem:[#allocation7 + $0x1a0] sm:$0x3]
    %v1393 = vld [vmem:[#allocation7 + $0x1a8] sm:$0x3]
    %v1394 = vld [vmem:[#allocation7 + $0x1b0] sm:$0x3]
    %v1395 = vld [vmem:[#allocation7 + $0x1b8] sm:$0x3]
    %v1396 = vld [vmem:[#allocation7 + $0x1c0] sm:$0x3]
    %v1397 = vld [vmem:[#allocation7 + $0x1c8] sm:$0x3]
    %v1398 = vld [vmem:[#allocation7 + $0x1d0] sm:$0x3]
    %v1399 = vld [vmem:[#allocation7 + $0x1d8] sm:$0x3]
    %v1400 = vld [vmem:[#allocation7 + $0x1e0] sm:$0x3]
    %v1401 = vld [vmem:[#allocation7 + $0x1e8] sm:$0x3]
    %v1402 = vld [vmem:[#allocation7 + $0x1f0] sm:$0x3]
    %v1403 = vld [vmem:[#allocation7 + $0x1f8] sm:$0x3]
    %v1404 = vld [vmem:[#allocation7 + $0x200] sm:$0x3]
    %v1405 = vld [vmem:[#allocation7 + $0x208] sm:$0x3]
    %v1406 = vld [vmem:[#allocation7 + $0x210] sm:$0x3]
    %v1407 = vld [vmem:[#allocation7 + $0x218] sm:$0x3]
    %v1408 = vld [vmem:[#allocation7 + $0x220] sm:$0x3]
    %v1409 = vld [vmem:[#allocation7 + $0x228] sm:$0x3]
    %v1410 = vld [vmem:[#allocation7 + $0x230] sm:$0x3]
    %v1411 = vld [vmem:[#allocation7 + $0x238] sm:$0x3]
    %v1412 = vld [vmem:[#allocation7 + $0x240] sm:$0x3]
    %v1413 = vld [vmem:[#allocation7 + $0x248] sm:$0x3]
    %v1414 = vld [vmem:[#allocation7 + $0x250] sm:$0x3]
    %v1415 = vld [vmem:[#allocation7 + $0x258] sm:$0x3]
    %v1416 = vld [vmem:[#allocation7 + $0x260] sm:$0x3]
    %v1417 = vld [vmem:[#allocation7 + $0x268] sm:$0x3]
    %v1418 = vld [vmem:[#allocation7 + $0x270] sm:$0x3]
    %v1419 = vld [vmem:[#allocation7 + $0x278] sm:$0x3]
    %v1421 = vsel %vm106, %v1380, 0
    %v1424 = vsel %vm106, %v1381, 0
    %v1427 = vsel %vm106, %v1382, 0
    %v1430 = vsel %vm106, %v1383, 0
    %v1433 = vsel %vm106, %v1384, 0
    %v1436 = vsel %vm106, %v1385, 0
    %v1439 = vsel %vm106, %v1386, 0
    %v1442 = vsel %vm106, %v1387, 0
    %v1445 = vsel %vm106, %v1388, 0
    %v1448 = vsel %vm106, %v1389, 0
    %v1451 = vsel %vm106, %v1390, 0
    %v1454 = vsel %vm106, %v1391, 0
    %v1457 = vsel %vm106, %v1392, 0
    %v1460 = vsel %vm106, %v1393, 0
    %v1463 = vsel %vm106, %v1394, 0
    %v1466 = vsel %vm106, %v1395, 0
    %v1469 = vsel %vm106, %v1396, 0
    %v1472 = vsel %vm106, %v1397, 0
    %v1475 = vsel %vm106, %v1398, 0
    %v1478 = vsel %vm106, %v1399, 0
    %v1481 = vsel %vm106, %v1400, 0
    %v1484 = vsel %vm106, %v1401, 0
    %v1487 = vsel %vm106, %v1402, 0
    %v1490 = vsel %vm106, %v1403, 0
    %v1493 = vsel %vm106, %v1404, 0
    %v1496 = vsel %vm106, %v1405, 0
    %v1499 = vsel %vm106, %v1406, 0
    %v1502 = vsel %vm106, %v1407, 0
    %v1505 = vsel %vm106, %v1408, 0
    %v1508 = vsel %vm106, %v1409, 0
    %v1511 = vsel %vm106, %v1410, 0
    %v1514 = vsel %vm106, %v1411, 0
    %v1517 = vsel %vm106, %v1412, 0
    %v1520 = vsel %vm106, %v1413, 0
    %v1523 = vsel %vm106, %v1414, 0
    %v1526 = vsel %vm106, %v1415, 0
    %v1529 = vsel %vm106, %v1416, 0
    %v1532 = vsel %vm106, %v1417, 0
    %v1535 = vsel %vm106, %v1418, 0
    %v1538 = vsel %vm106, %v1419, 0
    %1540 = vmatprep.subr.mxu0 %v1341
    %1541 = vmatpush1.msra.mxu0 %v1340
    %1542 = vmatprep.subr.mxu0 %v1424
    %1543 = vmatpush1.msra.mxu0 %v1421
    %1544 = vmatprep.subr.mxu0 0.0
    %1545 = vmatpush1.msra.mxu0 0.0
    %1546 = vmatprep.subr.mxu0 0.0
    %1547 = vmatpush1.msra.mxu0 0.0
    %1548 = vmatprep.subr.mxu0 0.0
    %1549 = vmatpush1.msra.mxu0 0.0
    %1550 = vmatprep.subr.mxu0 0.0
    %1551 = vmatpush1.msra.mxu0 0.0
    %1552 = vmatprep.subr.mxu0 0.0
    %1553 = vmatpush1.msra.mxu0 0.0
    %1554 = vmatprep.subr.mxu0 0.0
    %1555 = vmatpush1.msra.mxu0 0.0
    %1556 = vmatprep.subr.mxu0 0.0
    %1557 = vmatpush1.msra.mxu0 0.0
    %1558 = vmatprep.subr.mxu0 0.0
    %1559 = vmatpush1.msra.mxu0 0.0
    %1560 = vmatprep.subr.mxu0 0.0
    %1561 = vmatpush1.msra.mxu0 0.0
    %1562 = vmatprep.subr.mxu0 0.0
    %1563 = vmatpush1.msra.mxu0 0.0
    %1564 = vmatprep.subr.mxu0 0.0
    %1565 = vmatpush1.msra.mxu0 0.0
    %1566 = vmatprep.subr.mxu0 0.0
    %1567 = vmatpush1.msra.mxu0 0.0
    %1568 = vmatprep.subr.mxu0 0.0
    %1569 = vmatpush1.msra.mxu0 0.0
    %1570 = vmatprep.subr.mxu0 0.0
    %1571 = vmatpush1.msra.mxu0 0.0
    %1572 = vmatprep.subr.mxu0 0.0
    %1573 = vmatpush1.msra.mxu0 0.0
    %1574 = vmatprep.subr.mxu0 0.0
    %1575 = vmatpush1.msra.mxu0 0.0
    %1576 = vmatprep.subr.mxu0 0.0
    %1577 = vmatpush1.msra.mxu0 0.0
    %1578 = vmatprep.subr.mxu0 0.0
    %1579 = vmatpush1.msra.mxu0 0.0
    %1580 = vmatprep.subr.mxu0 0.0
    %1581 = vmatpush1.msra.mxu0 0.0
    %1582 = vmatprep.subr.mxu0 0.0
    %1583 = vmatpush1.msra.mxu0 0.0
    %1584 = vmatprep.subr.mxu0 0.0
    %1585 = vmatpush1.msra.mxu0 0.0
    %1586 = vmatprep.subr.mxu0 0.0
    %1587 = vmatpush1.msra.mxu0 0.0
    %1588 = vmatprep.subr.mxu0 0.0
    %1589 = vmatpush1.msra.mxu0 0.0
    %1590 = vmatprep.subr.mxu0 0.0
    %1591 = vmatpush1.msra.mxu0 0.0
    %1592 = vmatprep.subr.mxu0 0.0
    %1593 = vmatpush1.msra.mxu0 0.0
    %1594 = vmatprep.subr.mxu0 0.0
    %1595 = vmatpush1.msra.mxu0 0.0
    %1596 = vmatprep.subr.mxu0 0.0
    %1597 = vmatpush1.msra.mxu0 0.0
    %1598 = vmatprep.subr.mxu0 0.0
    %1599 = vmatpush1.msra.mxu0 0.0
    %1600 = vmatprep.subr.mxu0 0.0
    %1601 = vmatpush1.msra.mxu0 0.0
    %1602 = vmatprep.subr.mxu0 0.0
    %1603 = vmatpush1.msra.mxu0 0.0
    %1604 = vmatprep.mubr.f32.mxu0 0.0
    %1605 = vmatmul.mubr.f32.gmra.mrb[0].mxu0 %v1022
    %v1606 = vpop.f32.mrb[0].mxu0
    %v1607 = vadd.f32 0.0, %v1606
    %v1608 = vpop.f32.mrb[0].mxu0
    %v1609 = vadd.f32 0.0, %v1608
    %1610 = vdwg.mxu0
    %1611 = vmatprep.subr.mxu0 %v1343
    %1612 = vmatpush1.msra.mxu0 %v1342
    %1613 = vmatprep.subr.mxu0 %v1430
    %1614 = vmatpush1.msra.mxu0 %v1427
    %1615 = vmatprep.subr.mxu0 0.0
    %1616 = vmatpush1.msra.mxu0 0.0
    %1617 = vmatprep.subr.mxu0 0.0
    %1618 = vmatpush1.msra.mxu0 0.0
    %1619 = vmatprep.subr.mxu0 0.0
    %1620 = vmatpush1.msra.mxu0 0.0
    %1621 = vmatprep.subr.mxu0 0.0
    %1622 = vmatpush1.msra.mxu0 0.0
    %1623 = vmatprep.subr.mxu0 0.0
    %1624 = vmatpush1.msra.mxu0 0.0
    %1625 = vmatprep.subr.mxu0 0.0
    %1626 = vmatpush1.msra.mxu0 0.0
    %1627 = vmatprep.subr.mxu0 0.0
    %1628 = vmatpush1.msra.mxu0 0.0
    %1629 = vmatprep.subr.mxu0 0.0
    %1630 = vmatpush1.msra.mxu0 0.0
    %1631 = vmatprep.subr.mxu0 0.0
    %1632 = vmatpush1.msra.mxu0 0.0
    %1633 = vmatprep.subr.mxu0 0.0
    %1634 = vmatpush1.msra.mxu0 0.0
    %1635 = vmatprep.subr.mxu0 0.0
    %1636 = vmatpush1.msra.mxu0 0.0
    %1637 = vmatprep.subr.mxu0 0.0
    %1638 = vmatpush1.msra.mxu0 0.0
    %1639 = vmatprep.subr.mxu0 0.0
    %1640 = vmatpush1.msra.mxu0 0.0
    %1641 = vmatprep.subr.mxu0 0.0
    %1642 = vmatpush1.msra.mxu0 0.0
    %1643 = vmatprep.subr.mxu0 0.0
    %1644 = vmatpush1.msra.mxu0 0.0
    %1645 = vmatprep.subr.mxu0 0.0
    %1646 = vmatpush1.msra.mxu0 0.0
    %1647 = vmatprep.subr.mxu0 0.0
    %1648 = vmatpush1.msra.mxu0 0.0
    %1649 = vmatprep.subr.mxu0 0.0
    %1650 = vmatpush1.msra.mxu0 0.0
    %1651 = vmatprep.subr.mxu0 0.0
    %1652 = vmatpush1.msra.mxu0 0.0
    %1653 = vmatprep.subr.mxu0 0.0
    %1654 = vmatpush1.msra.mxu0 0.0
    %1655 = vmatprep.subr.mxu0 0.0
    %1656 = vmatpush1.msra.mxu0 0.0
    %1657 = vmatprep.subr.mxu0 0.0
    %1658 = vmatpush1.msra.mxu0 0.0
    %1659 = vmatprep.subr.mxu0 0.0
    %1660 = vmatpush1.msra.mxu0 0.0
    %1661 = vmatprep.subr.mxu0 0.0
    %1662 = vmatpush1.msra.mxu0 0.0
    %1663 = vmatprep.subr.mxu0 0.0
    %1664 = vmatpush1.msra.mxu0 0.0
    %1665 = vmatprep.subr.mxu0 0.0
    %1666 = vmatpush1.msra.mxu0 0.0
    %1667 = vmatprep.subr.mxu0 0.0
    %1668 = vmatpush1.msra.mxu0 0.0
    %1669 = vmatprep.subr.mxu0 0.0
    %1670 = vmatpush1.msra.mxu0 0.0
    %1671 = vmatprep.subr.mxu0 0.0
    %1672 = vmatpush1.msra.mxu0 0.0
    %1673 = vmatprep.subr.mxu0 0.0
    %1674 = vmatpush1.msra.mxu0 0.0
    %1675 = vmatprep.mubr.f32.mxu0 0.0
    %1676 = vmatmul.mubr.f32.gmra.mrb[0].mxu0 %v1022
    %v1677 = vpop.f32.mrb[0].mxu0
    %v1678 = vadd.f32 0.0, %v1677
    %v1679 = vpop.f32.mrb[0].mxu0
    %v1680 = vadd.f32 0.0, %v1679
    %1681 = vdwg.mxu0
    %1682 = vmatprep.subr.mxu0 %v1345
    %1683 = vmatpush1.msra.mxu0 %v1344
    %1684 = vmatprep.subr.mxu0 %v1436
    %1685 = vmatpush1.msra.mxu0 %v1433
    %1686 = vmatprep.subr.mxu0 0.0
    %1687 = vmatpush1.msra.mxu0 0.0
    %1688 = vmatprep.subr.mxu0 0.0
    %1689 = vmatpush1.msra.mxu0 0.0
    %1690 = vmatprep.subr.mxu0 0.0
    %1691 = vmatpush1.msra.mxu0 0.0
    %1692 = vmatprep.subr.mxu0 0.0
    %1693 = vmatpush1.msra.mxu0 0.0
    %1694 = vmatprep.subr.mxu0 0.0
    %1695 = vmatpush1.msra.mxu0 0.0
    %1696 = vmatprep.subr.mxu0 0.0
    %1697 = vmatpush1.msra.mxu0 0.0
    %1698 = vmatprep.subr.mxu0 0.0
    %1699 = vmatpush1.msra.mxu0 0.0
    %1700 = vmatprep.subr.mxu0 0.0
    %1701 = vmatpush1.msra.mxu0 0.0
    %1702 = vmatprep.subr.mxu0 0.0
    %1703 = vmatpush1.msra.mxu0 0.0
    %1704 = vmatprep.subr.mxu0 0.0
    %1705 = vmatpush1.msra.mxu0 0.0
    %1706 = vmatprep.subr.mxu0 0.0
    %1707 = vmatpush1.msra.mxu0 0.0
    %1708 = vmatprep.subr.mxu0 0.0
    %1709 = vmatpush1.msra.mxu0 0.0
    %1710 = vmatprep.subr.mxu0 0.0
    %1711 = vmatpush1.msra.mxu0 0.0
    %1712 = vmatprep.subr.mxu0 0.0
    %1713 = vmatpush1.msra.mxu0 0.0
    %1714 = vmatprep.subr.mxu0 0.0
    %1715 = vmatpush1.msra.mxu0 0.0
    %1716 = vmatprep.subr.mxu0 0.0
    %1717 = vmatpush1.msra.mxu0 0.0
    %1718 = vmatprep.subr.mxu0 0.0
    %1719 = vmatpush1.msra.mxu0 0.0
    %1720 = vmatprep.subr.mxu0 0.0
    %1721 = vmatpush1.msra.mxu0 0.0
    %1722 = vmatprep.subr.mxu0 0.0
    %1723 = vmatpush1.msra.mxu0 0.0
    %1724 = vmatprep.subr.mxu0 0.0
    %1725 = vmatpush1.msra.mxu0 0.0
    %1726 = vmatprep.subr.mxu0 0.0
    %1727 = vmatpush1.msra.mxu0 0.0
    %1728 = vmatprep.subr.mxu0 0.0
    %1729 = vmatpush1.msra.mxu0 0.0
    %1730 = vmatprep.subr.mxu0 0.0
    %1731 = vmatpush1.msra.mxu0 0.0
    %1732 = vmatprep.subr.mxu0 0.0
    %1733 = vmatpush1.msra.mxu0 0.0
    %1734 = vmatprep.subr.mxu0 0.0
    %1735 = vmatpush1.msra.mxu0 0.0
    %1736 = vmatprep.subr.mxu0 0.0
    %1737 = vmatpush1.msra.mxu0 0.0
    %1738 = vmatprep.subr.mxu0 0.0
    %1739 = vmatpush1.msra.mxu0 0.0
    %1740 = vmatprep.subr.mxu0 0.0
    %1741 = vmatpush1.msra.mxu0 0.0
    %1742 = vmatprep.subr.mxu0 0.0
    %1743 = vmatpush1.msra.mxu0 0.0
    %1744 = vmatprep.subr.mxu0 0.0
    %1745 = vmatpush1.msra.mxu0 0.0
    %1746 = vmatprep.mubr.f32.mxu0 0.0
    %1747 = vmatmul.mubr.f32.gmra.mrb[0].mxu0 %v1022
    %v1748 = vpop.f32.mrb[0].mxu0
    %v1749 = vadd.f32 0.0, %v1748
    %v1750 = vpop.f32.mrb[0].mxu0
    %v1751 = vadd.f32 0.0, %v1750
    %1752 = vdwg.mxu0
    %1753 = vmatprep.subr.mxu0 %v1347
    %1754 = vmatpush1.msra.mxu0 %v1346
    %1755 = vmatprep.subr.mxu0 %v1442
    %1756 = vmatpush1.msra.mxu0 %v1439
    %1757 = vmatprep.subr.mxu0 0.0
    %1758 = vmatpush1.msra.mxu0 0.0
    %1759 = vmatprep.subr.mxu0 0.0
    %1760 = vmatpush1.msra.mxu0 0.0
    %1761 = vmatprep.subr.mxu0 0.0
    %1762 = vmatpush1.msra.mxu0 0.0
    %1763 = vmatprep.subr.mxu0 0.0
    %1764 = vmatpush1.msra.mxu0 0.0
    %1765 = vmatprep.subr.mxu0 0.0
    %1766 = vmatpush1.msra.mxu0 0.0
    %1767 = vmatprep.subr.mxu0 0.0
    %1768 = vmatpush1.msra.mxu0 0.0
    %1769 = vmatprep.subr.mxu0 0.0
    %1770 = vmatpush1.msra.mxu0 0.0
    %1771 = vmatprep.subr.mxu0 0.0
    %1772 = vmatpush1.msra.mxu0 0.0
    %1773 = vmatprep.subr.mxu0 0.0
    %1774 = vmatpush1.msra.mxu0 0.0
    %1775 = vmatprep.subr.mxu0 0.0
    %1776 = vmatpush1.msra.mxu0 0.0
    %1777 = vmatprep.subr.mxu0 0.0
    %1778 = vmatpush1.msra.mxu0 0.0
    %1779 = vmatprep.subr.mxu0 0.0
    %1780 = vmatpush1.msra.mxu0 0.0
    %1781 = vmatprep.subr.mxu0 0.0
    %1782 = vmatpush1.msra.mxu0 0.0
    %1783 = vmatprep.subr.mxu0 0.0
    %1784 = vmatpush1.msra.mxu0 0.0
    %1785 = vmatprep.subr.mxu0 0.0
    %1786 = vmatpush1.msra.mxu0 0.0
    %1787 = vmatprep.subr.mxu0 0.0
    %1788 = vmatpush1.msra.mxu0 0.0
    %1789 = vmatprep.subr.mxu0 0.0
    %1790 = vmatpush1.msra.mxu0 0.0
    %1791 = vmatprep.subr.mxu0 0.0
    %1792 = vmatpush1.msra.mxu0 0.0
    %1793 = vmatprep.subr.mxu0 0.0
    %1794 = vmatpush1.msra.mxu0 0.0
    %1795 = vmatprep.subr.mxu0 0.0
    %1796 = vmatpush1.msra.mxu0 0.0
    %1797 = vmatprep.subr.mxu0 0.0
    %1798 = vmatpush1.msra.mxu0 0.0
    %1799 = vmatprep.subr.mxu0 0.0
    %1800 = vmatpush1.msra.mxu0 0.0
    %1801 = vmatprep.subr.mxu0 0.0
    %1802 = vmatpush1.msra.mxu0 0.0
    %1803 = vmatprep.subr.mxu0 0.0
    %1804 = vmatpush1.msra.mxu0 0.0
    %1805 = vmatprep.subr.mxu0 0.0
    %1806 = vmatpush1.msra.mxu0 0.0
    %1807 = vmatprep.subr.mxu0 0.0
    %1808 = vmatpush1.msra.mxu0 0.0
    %1809 = vmatprep.subr.mxu0 0.0
    %1810 = vmatpush1.msra.mxu0 0.0
    %1811 = vmatprep.subr.mxu0 0.0
    %1812 = vmatpush1.msra.mxu0 0.0
    %1813 = vmatprep.subr.mxu0 0.0
    %1814 = vmatpush1.msra.mxu0 0.0
    %1815 = vmatprep.subr.mxu0 0.0
    %1816 = vmatpush1.msra.mxu0 0.0
    %1817 = vmatprep.mubr.f32.mxu0 0.0
    %1818 = vmatmul.mubr.f32.gmra.mrb[0].mxu0 %v1022
    %v1819 = vpop.f32.mrb[0].mxu0
    %v1820 = vadd.f32 0.0, %v1819
    %v1821 = vpop.f32.mrb[0].mxu0
    %v1822 = vadd.f32 0.0, %v1821
    %1823 = vdwg.mxu0
    %1824 = vmatprep.subr.mxu0 %v1349
    %1825 = vmatpush1.msra.mxu0 %v1348
    %1826 = vmatprep.subr.mxu0 %v1448
    %1827 = vmatpush1.msra.mxu0 %v1445
    %1828 = vmatprep.subr.mxu0 0.0
    %1829 = vmatpush1.msra.mxu0 0.0
    %1830 = vmatprep.subr.mxu0 0.0
    %1831 = vmatpush1.msra.mxu0 0.0
    %1832 = vmatprep.subr.mxu0 0.0
    %1833 = vmatpush1.msra.mxu0 0.0
    %1834 = vmatprep.subr.mxu0 0.0
    %1835 = vmatpush1.msra.mxu0 0.0
    %1836 = vmatprep.subr.mxu0 0.0
    %1837 = vmatpush1.msra.mxu0 0.0
    %1838 = vmatprep.subr.mxu0 0.0
    %1839 = vmatpush1.msra.mxu0 0.0
    %1840 = vmatprep.subr.mxu0 0.0
    %1841 = vmatpush1.msra.mxu0 0.0
    %1842 = vmatprep.subr.mxu0 0.0
    %1843 = vmatpush1.msra.mxu0 0.0
    %1844 = vmatprep.subr.mxu0 0.0
    %1845 = vmatpush1.msra.mxu0 0.0
    %1846 = vmatprep.subr.mxu0 0.0
    %1847 = vmatpush1.msra.mxu0 0.0
    %1848 = vmatprep.subr.mxu0 0.0
    %1849 = vmatpush1.msra.mxu0 0.0
    %1850 = vmatprep.subr.mxu0 0.0
    %1851 = vmatpush1.msra.mxu0 0.0
    %1852 = vmatprep.subr.mxu0 0.0
    %1853 = vmatpush1.msra.mxu0 0.0
    %1854 = vmatprep.subr.mxu0 0.0
    %1855 = vmatpush1.msra.mxu0 0.0
    %1856 = vmatprep.subr.mxu0 0.0
    %1857 = vmatpush1.msra.mxu0 0.0
    %1858 = vmatprep.subr.mxu0 0.0
    %1859 = vmatpush1.msra.mxu0 0.0
    %1860 = vmatprep.subr.mxu0 0.0
    %1861 = vmatpush1.msra.mxu0 0.0
    %1862 = vmatprep.subr.mxu0 0.0
    %1863 = vmatpush1.msra.mxu0 0.0
    %1864 = vmatprep.subr.mxu0 0.0
    %1865 = vmatpush1.msra.mxu0 0.0
    %1866 = vmatprep.subr.mxu0 0.0
    %1867 = vmatpush1.msra.mxu0 0.0
    %1868 = vmatprep.subr.mxu0 0.0
    %1869 = vmatpush1.msra.mxu0 0.0
    %1870 = vmatprep.subr.mxu0 0.0
    %1871 = vmatpush1.msra.mxu0 0.0
    %1872 = vmatprep.subr.mxu0 0.0
    %1873 = vmatpush1.msra.mxu0 0.0
    %1874 = vmatprep.subr.mxu0 0.0
    %1875 = vmatpush1.msra.mxu0 0.0
    %1876 = vmatprep.subr.mxu0 0.0
    %1877 = vmatpush1.msra.mxu0 0.0
    %1878 = vmatprep.subr.mxu0 0.0
    %1879 = vmatpush1.msra.mxu0 0.0
    %1880 = vmatprep.subr.mxu0 0.0
    %1881 = vmatpush1.msra.mxu0 0.0
    %1882 = vmatprep.subr.mxu0 0.0
    %1883 = vmatpush1.msra.mxu0 0.0
    %1884 = vmatprep.subr.mxu0 0.0
    %1885 = vmatpush1.msra.mxu0 0.0
    %1886 = vmatprep.subr.mxu0 0.0
    %1887 = vmatpush1.msra.mxu0 0.0
    %1888 = vmatprep.mubr.f32.mxu0 0.0
    %1889 = vmatmul.mubr.f32.gmra.mrb[0].mxu0 %v1022
    %v1890 = vpop.f32.mrb[0].mxu0
    %v1891 = vadd.f32 0.0, %v1890
    %v1892 = vpop.f32.mrb[0].mxu0
    %v1893 = vadd.f32 0.0, %v1892
    %1894 = vdwg.mxu0
    %1895 = vmatprep.subr.mxu0 %v1351
    %1896 = vmatpush1.msra.mxu0 %v1350
    %1897 = vmatprep.subr.mxu0 %v1454
    %1898 = vmatpush1.msra.mxu0 %v1451
    %1899 = vmatprep.subr.mxu0 0.0
    %1900 = vmatpush1.msra.mxu0 0.0
    %1901 = vmatprep.subr.mxu0 0.0
    %1902 = vmatpush1.msra.mxu0 0.0
    %1903 = vmatprep.subr.mxu0 0.0
    %1904 = vmatpush1.msra.mxu0 0.0
    %1905 = vmatprep.subr.mxu0 0.0
    %1906 = vmatpush1.msra.mxu0 0.0
    %1907 = vmatprep.subr.mxu0 0.0
    %1908 = vmatpush1.msra.mxu0 0.0
    %1909 = vmatprep.subr.mxu0 0.0
    %1910 = vmatpush1.msra.mxu0 0.0
    %1911 = vmatprep.subr.mxu0 0.0
    %1912 = vmatpush1.msra.mxu0 0.0
    %1913 = vmatprep.subr.mxu0 0.0
    %1914 = vmatpush1.msra.mxu0 0.0
    %1915 = vmatprep.subr.mxu0 0.0
    %1916 = vmatpush1.msra.mxu0 0.0
    %1917 = vmatprep.subr.mxu0 0.0
    %1918 = vmatpush1.msra.mxu0 0.0
    %1919 = vmatprep.subr.mxu0 0.0
    %1920 = vmatpush1.msra.mxu0 0.0
    %1921 = vmatprep.subr.mxu0 0.0
    %1922 = vmatpush1.msra.mxu0 0.0
    %1923 = vmatprep.subr.mxu0 0.0
    %1924 = vmatpush1.msra.mxu0 0.0
    %1925 = vmatprep.subr.mxu0 0.0
    %1926 = vmatpush1.msra.mxu0 0.0
    %1927 = vmatprep.subr.mxu0 0.0
    %1928 = vmatpush1.msra.mxu0 0.0
    %1929 = vmatprep.subr.mxu0 0.0
    %1930 = vmatpush1.msra.mxu0 0.0
    %1931 = vmatprep.subr.mxu0 0.0
    %1932 = vmatpush1.msra.mxu0 0.0
    %1933 = vmatprep.subr.mxu0 0.0
    %1934 = vmatpush1.msra.mxu0 0.0
    %1935 = vmatprep.subr.mxu0 0.0
    %1936 = vmatpush1.msra.mxu0 0.0
    %1937 = vmatprep.subr.mxu0 0.0
    %1938 = vmatpush1.msra.mxu0 0.0
    %1939 = vmatprep.subr.mxu0 0.0
    %1940 = vmatpush1.msra.mxu0 0.0
    %1941 = vmatprep.subr.mxu0 0.0
    %1942 = vmatpush1.msra.mxu0 0.0
    %1943 = vmatprep.subr.mxu0 0.0
    %1944 = vmatpush1.msra.mxu0 0.0
    %1945 = vmatprep.subr.mxu0 0.0
    %1946 = vmatpush1.msra.mxu0 0.0
    %1947 = vmatprep.subr.mxu0 0.0
    %1948 = vmatpush1.msra.mxu0 0.0
    %1949 = vmatprep.subr.mxu0 0.0
    %1950 = vmatpush1.msra.mxu0 0.0
    %1951 = vmatprep.subr.mxu0 0.0
    %1952 = vmatpush1.msra.mxu0 0.0
    %1953 = vmatprep.subr.mxu0 0.0
    %1954 = vmatpush1.msra.mxu0 0.0
    %1955 = vmatprep.subr.mxu0 0.0
    %1956 = vmatpush1.msra.mxu0 0.0
    %1957 = vmatprep.subr.mxu0 0.0
    %1958 = vmatpush1.msra.mxu0 0.0
    %1959 = vmatprep.mubr.f32.mxu0 0.0
    %1960 = vmatmul.mubr.f32.gmra.mrb[0].mxu0 %v1022
    %v1961 = vpop.f32.mrb[0].mxu0
    %v1962 = vadd.f32 0.0, %v1961
    %v1963 = vpop.f32.mrb[0].mxu0
    %v1964 = vadd.f32 0.0, %v1963
    %1965 = vdwg.mxu0
    %1966 = vmatprep.subr.mxu0 %v1353
    %1967 = vmatpush1.msra.mxu0 %v1352
    %1968 = vmatprep.subr.mxu0 %v1460
    %1969 = vmatpush1.msra.mxu0 %v1457
    %1970 = vmatprep.subr.mxu0 0.0
    %1971 = vmatpush1.msra.mxu0 0.0
    %1972 = vmatprep.subr.mxu0 0.0
    %1973 = vmatpush1.msra.mxu0 0.0
    %1974 = vmatprep.subr.mxu0 0.0
    %1975 = vmatpush1.msra.mxu0 0.0
    %1976 = vmatprep.subr.mxu0 0.0
    %1977 = vmatpush1.msra.mxu0 0.0
    %1978 = vmatprep.subr.mxu0 0.0
    %1979 = vmatpush1.msra.mxu0 0.0
    %1980 = vmatprep.subr.mxu0 0.0
    %1981 = vmatpush1.msra.mxu0 0.0
    %1982 = vmatprep.subr.mxu0 0.0
    %1983 = vmatpush1.msra.mxu0 0.0
    %1984 = vmatprep.subr.mxu0 0.0
    %1985 = vmatpush1.msra.mxu0 0.0
    %1986 = vmatprep.subr.mxu0 0.0
    %1987 = vmatpush1.msra.mxu0 0.0
    %1988 = vmatprep.subr.mxu0 0.0
    %1989 = vmatpush1.msra.mxu0 0.0
    %1990 = vmatprep.subr.mxu0 0.0
    %1991 = vmatpush1.msra.mxu0 0.0
    %1992 = vmatprep.subr.mxu0 0.0
    %1993 = vmatpush1.msra.mxu0 0.0
    %1994 = vmatprep.subr.mxu0 0.0
    %1995 = vmatpush1.msra.mxu0 0.0
    %1996 = vmatprep.subr.mxu0 0.0
    %1997 = vmatpush1.msra.mxu0 0.0
    %1998 = vmatprep.subr.mxu0 0.0
    %1999 = vmatpush1.msra.mxu0 0.0
    %2000 = vmatprep.subr.mxu0 0.0
    %2001 = vmatpush1.msra.mxu0 0.0
    %2002 = vmatprep.subr.mxu0 0.0
    %2003 = vmatpush1.msra.mxu0 0.0
    %2004 = vmatprep.subr.mxu0 0.0
    %2005 = vmatpush1.msra.mxu0 0.0
    %2006 = vmatprep.subr.mxu0 0.0
    %2007 = vmatpush1.msra.mxu0 0.0
    %2008 = vmatprep.subr.mxu0 0.0
    %2009 = vmatpush1.msra.mxu0 0.0
    %2010 = vmatprep.subr.mxu0 0.0
    %2011 = vmatpush1.msra.mxu0 0.0
    %2012 = vmatprep.subr.mxu0 0.0
    %2013 = vmatpush1.msra.mxu0 0.0
    %2014 = vmatprep.subr.mxu0 0.0
    %2015 = vmatpush1.msra.mxu0 0.0
    %2016 = vmatprep.subr.mxu0 0.0
    %2017 = vmatpush1.msra.mxu0 0.0
    %2018 = vmatprep.subr.mxu0 0.0
    %2019 = vmatpush1.msra.mxu0 0.0
    %2020 = vmatprep.subr.mxu0 0.0
    %2021 = vmatpush1.msra.mxu0 0.0
    %2022 = vmatprep.subr.mxu0 0.0
    %2023 = vmatpush1.msra.mxu0 0.0
    %2024 = vmatprep.subr.mxu0 0.0
    %2025 = vmatpush1.msra.mxu0 0.0
    %2026 = vmatprep.subr.mxu0 0.0
    %2027 = vmatpush1.msra.mxu0 0.0
    %2028 = vmatprep.subr.mxu0 0.0
    %2029 = vmatpush1.msra.mxu0 0.0
    %2030 = vmatprep.mubr.f32.mxu0 0.0
    %2031 = vmatmul.mubr.f32.gmra.mrb[0].mxu0 %v1022
    %v2032 = vpop.f32.mrb[0].mxu0
    %v2033 = vadd.f32 0.0, %v2032
    %v2034 = vpop.f32.mrb[0].mxu0
    %v2035 = vadd.f32 0.0, %v2034
    %2036 = vdwg.mxu0
    %2037 = vmatprep.subr.mxu0 %v1355
    %2038 = vmatpush1.msra.mxu0 %v1354
    %2039 = vmatprep.subr.mxu0 %v1466
    %2040 = vmatpush1.msra.mxu0 %v1463
    %2041 = vmatprep.subr.mxu0 0.0
    %2042 = vmatpush1.msra.mxu0 0.0
    %2043 = vmatprep.subr.mxu0 0.0
    %2044 = vmatpush1.msra.mxu0 0.0
    %2045 = vmatprep.subr.mxu0 0.0
    %2046 = vmatpush1.msra.mxu0 0.0
    %2047 = vmatprep.subr.mxu0 0.0
    %2048 = vmatpush1.msra.mxu0 0.0
    %2049 = vmatprep.subr.mxu0 0.0
    %2050 = vmatpush1.msra.mxu0 0.0
    %2051 = vmatprep.subr.mxu0 0.0
    %2052 = vmatpush1.msra.mxu0 0.0
    %2053 = vmatprep.subr.mxu0 0.0
    %2054 = vmatpush1.msra.mxu0 0.0
    %2055 = vmatprep.subr.mxu0 0.0
    %2056 = vmatpush1.msra.mxu0 0.0
    %2057 = vmatprep.subr.mxu0 0.0
    %2058 = vmatpush1.msra.mxu0 0.0
    %2059 = vmatprep.subr.mxu0 0.0
    %2060 = vmatpush1.msra.mxu0 0.0
    %2061 = vmatprep.subr.mxu0 0.0
    %2062 = vmatpush1.msra.mxu0 0.0
    %2063 = vmatprep.subr.mxu0 0.0
    %2064 = vmatpush1.msra.mxu0 0.0
    %2065 = vmatprep.subr.mxu0 0.0
    %2066 = vmatpush1.msra.mxu0 0.0
    %2067 = vmatprep.subr.mxu0 0.0
    %2068 = vmatpush1.msra.mxu0 0.0
    %2069 = vmatprep.subr.mxu0 0.0
    %2070 = vmatpush1.msra.mxu0 0.0
    %2071 = vmatprep.subr.mxu0 0.0
    %2072 = vmatpush1.msra.mxu0 0.0
    %2073 = vmatprep.subr.mxu0 0.0
    %2074 = vmatpush1.msra.mxu0 0.0
    %2075 = vmatprep.subr.mxu0 0.0
    %2076 = vmatpush1.msra.mxu0 0.0
    %2077 = vmatprep.subr.mxu0 0.0
    %2078 = vmatpush1.msra.mxu0 0.0
    %2079 = vmatprep.subr.mxu0 0.0
    %2080 = vmatpush1.msra.mxu0 0.0
    %2081 = vmatprep.subr.mxu0 0.0
    %2082 = vmatpush1.msra.mxu0 0.0
    %2083 = vmatprep.subr.mxu0 0.0
    %2084 = vmatpush1.msra.mxu0 0.0
    %2085 = vmatprep.subr.mxu0 0.0
    %2086 = vmatpush1.msra.mxu0 0.0
    %2087 = vmatprep.subr.mxu0 0.0
    %2088 = vmatpush1.msra.mxu0 0.0
    %2089 = vmatprep.subr.mxu0 0.0
    %2090 = vmatpush1.msra.mxu0 0.0
    %2091 = vmatprep.subr.mxu0 0.0
    %2092 = vmatpush1.msra.mxu0 0.0
    %2093 = vmatprep.subr.mxu0 0.0
    %2094 = vmatpush1.msra.mxu0 0.0
    %2095 = vmatprep.subr.mxu0 0.0
    %2096 = vmatpush1.msra.mxu0 0.0
    %2097 = vmatprep.subr.mxu0 0.0
    %2098 = vmatpush1.msra.mxu0 0.0
    %2099 = vmatprep.subr.mxu0 0.0
    %2100 = vmatpush1.msra.mxu0 0.0
    %2101 = vmatprep.mubr.f32.mxu0 0.0
    %2102 = vmatmul.mubr.f32.gmra.mrb[0].mxu0 %v1022
    %v2103 = vpop.f32.mrb[0].mxu0
    %v2104 = vadd.f32 0.0, %v2103
    %v2105 = vpop.f32.mrb[0].mxu0
    %v2106 = vadd.f32 0.0, %v2105
    %2107 = vdwg.mxu0
    %2108 = vmatprep.subr.mxu0 %v1357
    %2109 = vmatpush1.msra.mxu0 %v1356
    %2110 = vmatprep.subr.mxu0 %v1472
    %2111 = vmatpush1.msra.mxu0 %v1469
    %2112 = vmatprep.subr.mxu0 0.0
    %2113 = vmatpush1.msra.mxu0 0.0
    %2114 = vmatprep.subr.mxu0 0.0
    %2115 = vmatpush1.msra.mxu0 0.0
    %2116 = vmatprep.subr.mxu0 0.0
    %2117 = vmatpush1.msra.mxu0 0.0
    %2118 = vmatprep.subr.mxu0 0.0
    %2119 = vmatpush1.msra.mxu0 0.0
    %2120 = vmatprep.subr.mxu0 0.0
    %2121 = vmatpush1.msra.mxu0 0.0
    %2122 = vmatprep.subr.mxu0 0.0
    %2123 = vmatpush1.msra.mxu0 0.0
    %2124 = vmatprep.subr.mxu0 0.0
    %2125 = vmatpush1.msra.mxu0 0.0
    %2126 = vmatprep.subr.mxu0 0.0
    %2127 = vmatpush1.msra.mxu0 0.0
    %2128 = vmatprep.subr.mxu0 0.0
    %2129 = vmatpush1.msra.mxu0 0.0
    %2130 = vmatprep.subr.mxu0 0.0
    %2131 = vmatpush1.msra.mxu0 0.0
    %2132 = vmatprep.subr.mxu0 0.0
    %2133 = vmatpush1.msra.mxu0 0.0
    %2134 = vmatprep.subr.mxu0 0.0
    %2135 = vmatpush1.msra.mxu0 0.0
    %2136 = vmatprep.subr.mxu0 0.0
    %2137 = vmatpush1.msra.mxu0 0.0
    %2138 = vmatprep.subr.mxu0 0.0
    %2139 = vmatpush1.msra.mxu0 0.0
    %2140 = vmatprep.subr.mxu0 0.0
    %2141 = vmatpush1.msra.mxu0 0.0
    %2142 = vmatprep.subr.mxu0 0.0
    %2143 = vmatpush1.msra.mxu0 0.0
    %2144 = vmatprep.subr.mxu0 0.0
    %2145 = vmatpush1.msra.mxu0 0.0
    %2146 = vmatprep.subr.mxu0 0.0
    %2147 = vmatpush1.msra.mxu0 0.0
    %2148 = vmatprep.subr.mxu0 0.0
    %2149 = vmatpush1.msra.mxu0 0.0
    %2150 = vmatprep.subr.mxu0 0.0
    %2151 = vmatpush1.msra.mxu0 0.0
    %2152 = vmatprep.subr.mxu0 0.0
    %2153 = vmatpush1.msra.mxu0 0.0
    %2154 = vmatprep.subr.mxu0 0.0
    %2155 = vmatpush1.msra.mxu0 0.0
    %2156 = vmatprep.subr.mxu0 0.0
    %2157 = vmatpush1.msra.mxu0 0.0
    %2158 = vmatprep.subr.mxu0 0.0
    %2159 = vmatpush1.msra.mxu0 0.0
    %2160 = vmatprep.subr.mxu0 0.0
    %2161 = vmatpush1.msra.mxu0 0.0
    %2162 = vmatprep.subr.mxu0 0.0
    %2163 = vmatpush1.msra.mxu0 0.0
    %2164 = vmatprep.subr.mxu0 0.0
    %2165 = vmatpush1.msra.mxu0 0.0
    %2166 = vmatprep.subr.mxu0 0.0
    %2167 = vmatpush1.msra.mxu0 0.0
    %2168 = vmatprep.subr.mxu0 0.0
    %2169 = vmatpush1.msra.mxu0 0.0
    %2170 = vmatprep.subr.mxu0 0.0
    %2171 = vmatpush1.msra.mxu0 0.0
    %2172 = vmatprep.mubr.f32.mxu0 0.0
    %2173 = vmatmul.mubr.f32.gmra.mrb[0].mxu0 %v1022
    %v2174 = vpop.f32.mrb[0].mxu0
    %v2175 = vadd.f32 0.0, %v2174
    %v2176 = vpop.f32.mrb[0].mxu0
    %v2177 = vadd.f32 0.0, %v2176
    %2178 = vdwg.mxu0
    %2179 = vmatprep.subr.mxu0 %v1359
    %2180 = vmatpush1.msra.mxu0 %v1358
    %2181 = vmatprep.subr.mxu0 %v1478
    %2182 = vmatpush1.msra.mxu0 %v1475
    %2183 = vmatprep.subr.mxu0 0.0
    %2184 = vmatpush1.msra.mxu0 0.0
    %2185 = vmatprep.subr.mxu0 0.0
    %2186 = vmatpush1.msra.mxu0 0.0
    %2187 = vmatprep.subr.mxu0 0.0
    %2188 = vmatpush1.msra.mxu0 0.0
    %2189 = vmatprep.subr.mxu0 0.0
    %2190 = vmatpush1.msra.mxu0 0.0
    %2191 = vmatprep.subr.mxu0 0.0
    %2192 = vmatpush1.msra.mxu0 0.0
    %2193 = vmatprep.subr.mxu0 0.0
    %2194 = vmatpush1.msra.mxu0 0.0
    %2195 = vmatprep.subr.mxu0 0.0
    %2196 = vmatpush1.msra.mxu0 0.0
    %2197 = vmatprep.subr.mxu0 0.0
    %2198 = vmatpush1.msra.mxu0 0.0
    %2199 = vmatprep.subr.mxu0 0.0
    %2200 = vmatpush1.msra.mxu0 0.0
    %2201 = vmatprep.subr.mxu0 0.0
    %2202 = vmatpush1.msra.mxu0 0.0
    %2203 = vmatprep.subr.mxu0 0.0
    %2204 = vmatpush1.msra.mxu0 0.0
    %2205 = vmatprep.subr.mxu0 0.0
    %2206 = vmatpush1.msra.mxu0 0.0
    %2207 = vmatprep.subr.mxu0 0.0
    %2208 = vmatpush1.msra.mxu0 0.0
    %2209 = vmatprep.subr.mxu0 0.0
    %2210 = vmatpush1.msra.mxu0 0.0
    %2211 = vmatprep.subr.mxu0 0.0
    %2212 = vmatpush1.msra.mxu0 0.0
    %2213 = vmatprep.subr.mxu0 0.0
    %2214 = vmatpush1.msra.mxu0 0.0
    %2215 = vmatprep.subr.mxu0 0.0
    %2216 = vmatpush1.msra.mxu0 0.0
    %2217 = vmatprep.subr.mxu0 0.0
    %2218 = vmatpush1.msra.mxu0 0.0
    %2219 = vmatprep.subr.mxu0 0.0
    %2220 = vmatpush1.msra.mxu0 0.0
    %2221 = vmatprep.subr.mxu0 0.0
    %2222 = vmatpush1.msra.mxu0 0.0
    %2223 = vmatprep.subr.mxu0 0.0
    %2224 = vmatpush1.msra.mxu0 0.0
    %2225 = vmatprep.subr.mxu0 0.0
    %2226 = vmatpush1.msra.mxu0 0.0
    %2227 = vmatprep.subr.mxu0 0.0
    %2228 = vmatpush1.msra.mxu0 0.0
    %2229 = vmatprep.subr.mxu0 0.0
    %2230 = vmatpush1.msra.mxu0 0.0
    %2231 = vmatprep.subr.mxu0 0.0
    %2232 = vmatpush1.msra.mxu0 0.0
    %2233 = vmatprep.subr.mxu0 0.0
    %2234 = vmatpush1.msra.mxu0 0.0
    %2235 = vmatprep.subr.mxu0 0.0
    %2236 = vmatpush1.msra.mxu0 0.0
    %2237 = vmatprep.subr.mxu0 0.0
    %2238 = vmatpush1.msra.mxu0 0.0
    %2239 = vmatprep.subr.mxu0 0.0
    %2240 = vmatpush1.msra.mxu0 0.0
    %2241 = vmatprep.subr.mxu0 0.0
    %2242 = vmatpush1.msra.mxu0 0.0
    %2243 = vmatprep.mubr.f32.mxu0 0.0
    %2244 = vmatmul.mubr.f32.gmra.mrb[0].mxu0 %v1022
    %v2245 = vpop.f32.mrb[0].mxu0
    %v2246 = vadd.f32 0.0, %v2245
    %v2247 = vpop.f32.mrb[0].mxu0
    %v2248 = vadd.f32 0.0, %v2247
    %2249 = vdwg.mxu0
    %2250 = vmatprep.subr.mxu0 %v1361
    %2251 = vmatpush1.msra.mxu0 %v1360
    %2252 = vmatprep.subr.mxu0 %v1484
    %2253 = vmatpush1.msra.mxu0 %v1481
    %2254 = vmatprep.subr.mxu0 0.0
    %2255 = vmatpush1.msra.mxu0 0.0
    %2256 = vmatprep.subr.mxu0 0.0
    %2257 = vmatpush1.msra.mxu0 0.0
    %2258 = vmatprep.subr.mxu0 0.0
    %2259 = vmatpush1.msra.mxu0 0.0
    %2260 = vmatprep.subr.mxu0 0.0
    %2261 = vmatpush1.msra.mxu0 0.0
    %2262 = vmatprep.subr.mxu0 0.0
    %2263 = vmatpush1.msra.mxu0 0.0
    %2264 = vmatprep.subr.mxu0 0.0
    %2265 = vmatpush1.msra.mxu0 0.0
    %2266 = vmatprep.subr.mxu0 0.0
    %2267 = vmatpush1.msra.mxu0 0.0
    %2268 = vmatprep.subr.mxu0 0.0
    %2269 = vmatpush1.msra.mxu0 0.0
    %2270 = vmatprep.subr.mxu0 0.0
    %2271 = vmatpush1.msra.mxu0 0.0
    %2272 = vmatprep.subr.mxu0 0.0
    %2273 = vmatpush1.msra.mxu0 0.0
    %2274 = vmatprep.subr.mxu0 0.0
    %2275 = vmatpush1.msra.mxu0 0.0
    %2276 = vmatprep.subr.mxu0 0.0
    %2277 = vmatpush1.msra.mxu0 0.0
    %2278 = vmatprep.subr.mxu0 0.0
    %2279 = vmatpush1.msra.mxu0 0.0
    %2280 = vmatprep.subr.mxu0 0.0
    %2281 = vmatpush1.msra.mxu0 0.0
    %2282 = vmatprep.subr.mxu0 0.0
    %2283 = vmatpush1.msra.mxu0 0.0
    %2284 = vmatprep.subr.mxu0 0.0
    %2285 = vmatpush1.msra.mxu0 0.0
    %2286 = vmatprep.subr.mxu0 0.0
    %2287 = vmatpush1.msra.mxu0 0.0
    %2288 = vmatprep.subr.mxu0 0.0
    %2289 = vmatpush1.msra.mxu0 0.0
    %2290 = vmatprep.subr.mxu0 0.0
    %2291 = vmatpush1.msra.mxu0 0.0
    %2292 = vmatprep.subr.mxu0 0.0
    %2293 = vmatpush1.msra.mxu0 0.0
    %2294 = vmatprep.subr.mxu0 0.0
    %2295 = vmatpush1.msra.mxu0 0.0
    %2296 = vmatprep.subr.mxu0 0.0
    %2297 = vmatpush1.msra.mxu0 0.0
    %2298 = vmatprep.subr.mxu0 0.0
    %2299 = vmatpush1.msra.mxu0 0.0
    %2300 = vmatprep.subr.mxu0 0.0
    %2301 = vmatpush1.msra.mxu0 0.0
    %2302 = vmatprep.subr.mxu0 0.0
    %2303 = vmatpush1.msra.mxu0 0.0
    %2304 = vmatprep.subr.mxu0 0.0
    %2305 = vmatpush1.msra.mxu0 0.0
    %2306 = vmatprep.subr.mxu0 0.0
    %2307 = vmatpush1.msra.mxu0 0.0
    %2308 = vmatprep.subr.mxu0 0.0
    %2309 = vmatpush1.msra.mxu0 0.0
    %2310 = vmatprep.subr.mxu0 0.0
    %2311 = vmatpush1.msra.mxu0 0.0
    %2312 = vmatprep.subr.mxu0 0.0
    %2313 = vmatpush1.msra.mxu0 0.0
    %2314 = vmatprep.mubr.f32.mxu0 0.0
    %2315 = vmatmul.mubr.f32.gmra.mrb[0].mxu0 %v1022
    %v2316 = vpop.f32.mrb[0].mxu0
    %v2317 = vadd.f32 0.0, %v2316
    %v2318 = vpop.f32.mrb[0].mxu0
    %v2319 = vadd.f32 0.0, %v2318
    %2320 = vdwg.mxu0
    %2321 = vmatprep.subr.mxu0 %v1363
    %2322 = vmatpush1.msra.mxu0 %v1362
    %2323 = vmatprep.subr.mxu0 %v1490
    %2324 = vmatpush1.msra.mxu0 %v1487
    %2325 = vmatprep.subr.mxu0 0.0
    %2326 = vmatpush1.msra.mxu0 0.0
    %2327 = vmatprep.subr.mxu0 0.0
    %2328 = vmatpush1.msra.mxu0 0.0
    %2329 = vmatprep.subr.mxu0 0.0
    %2330 = vmatpush1.msra.mxu0 0.0
    %2331 = vmatprep.subr.mxu0 0.0
    %2332 = vmatpush1.msra.mxu0 0.0
    %2333 = vmatprep.subr.mxu0 0.0
    %2334 = vmatpush1.msra.mxu0 0.0
    %2335 = vmatprep.subr.mxu0 0.0
    %2336 = vmatpush1.msra.mxu0 0.0
    %2337 = vmatprep.subr.mxu0 0.0
    %2338 = vmatpush1.msra.mxu0 0.0
    %2339 = vmatprep.subr.mxu0 0.0
    %2340 = vmatpush1.msra.mxu0 0.0
    %2341 = vmatprep.subr.mxu0 0.0
    %2342 = vmatpush1.msra.mxu0 0.0
    %2343 = vmatprep.subr.mxu0 0.0
    %2344 = vmatpush1.msra.mxu0 0.0
    %2345 = vmatprep.subr.mxu0 0.0
    %2346 = vmatpush1.msra.mxu0 0.0
    %2347 = vmatprep.subr.mxu0 0.0
    %2348 = vmatpush1.msra.mxu0 0.0
    %2349 = vmatprep.subr.mxu0 0.0
    %2350 = vmatpush1.msra.mxu0 0.0
    %2351 = vmatprep.subr.mxu0 0.0
    %2352 = vmatpush1.msra.mxu0 0.0
    %2353 = vmatprep.subr.mxu0 0.0
    %2354 = vmatpush1.msra.mxu0 0.0
    %2355 = vmatprep.subr.mxu0 0.0
    %2356 = vmatpush1.msra.mxu0 0.0
    %2357 = vmatprep.subr.mxu0 0.0
    %2358 = vmatpush1.msra.mxu0 0.0
    %2359 = vmatprep.subr.mxu0 0.0
    %2360 = vmatpush1.msra.mxu0 0.0
    %2361 = vmatprep.subr.mxu0 0.0
    %2362 = vmatpush1.msra.mxu0 0.0
    %2363 = vmatprep.subr.mxu0 0.0
    %2364 = vmatpush1.msra.mxu0 0.0
    %2365 = vmatprep.subr.mxu0 0.0
    %2366 = vmatpush1.msra.mxu0 0.0
    %2367 = vmatprep.subr.mxu0 0.0
    %2368 = vmatpush1.msra.mxu0 0.0
    %2369 = vmatprep.subr.mxu0 0.0
    %2370 = vmatpush1.msra.mxu0 0.0
    %2371 = vmatprep.subr.mxu0 0.0
    %2372 = vmatpush1.msra.mxu0 0.0
    %2373 = vmatprep.subr.mxu0 0.0
    %2374 = vmatpush1.msra.mxu0 0.0
    %2375 = vmatprep.subr.mxu0 0.0
    %2376 = vmatpush1.msra.mxu0 0.0
    %2377 = vmatprep.subr.mxu0 0.0
    %2378 = vmatpush1.msra.mxu0 0.0
    %2379 = vmatprep.subr.mxu0 0.0
    %2380 = vmatpush1.msra.mxu0 0.0
    %2381 = vmatprep.subr.mxu0 0.0
    %2382 = vmatpush1.msra.mxu0 0.0
    %2383 = vmatprep.subr.mxu0 0.0
    %2384 = vmatpush1.msra.mxu0 0.0
    %2385 = vmatprep.mubr.f32.mxu0 0.0
    %2386 = vmatmul.mubr.f32.gmra.mrb[0].mxu0 %v1022
    %v2387 = vpop.f32.mrb[0].mxu0
    %v2388 = vadd.f32 0.0, %v2387
    %v2389 = vpop.f32.mrb[0].mxu0
    %v2390 = vadd.f32 0.0, %v2389
    %2391 = vdwg.mxu0
    %2392 = vmatprep.subr.mxu0 %v1365
    %2393 = vmatpush1.msra.mxu0 %v1364
    %2394 = vmatprep.subr.mxu0 %v1496
    %2395 = vmatpush1.msra.mxu0 %v1493
    %2396 = vmatprep.subr.mxu0 0.0
    %2397 = vmatpush1.msra.mxu0 0.0
    %2398 = vmatprep.subr.mxu0 0.0
    %2399 = vmatpush1.msra.mxu0 0.0
    %2400 = vmatprep.subr.mxu0 0.0
    %2401 = vmatpush1.msra.mxu0 0.0
    %2402 = vmatprep.subr.mxu0 0.0
    %2403 = vmatpush1.msra.mxu0 0.0
    %2404 = vmatprep.subr.mxu0 0.0
    %2405 = vmatpush1.msra.mxu0 0.0
    %2406 = vmatprep.subr.mxu0 0.0
    %2407 = vmatpush1.msra.mxu0 0.0
    %2408 = vmatprep.subr.mxu0 0.0
    %2409 = vmatpush1.msra.mxu0 0.0
    %2410 = vmatprep.subr.mxu0 0.0
    %2411 = vmatpush1.msra.mxu0 0.0
    %2412 = vmatprep.subr.mxu0 0.0
    %2413 = vmatpush1.msra.mxu0 0.0
    %2414 = vmatprep.subr.mxu0 0.0
    %2415 = vmatpush1.msra.mxu0 0.0
    %2416 = vmatprep.subr.mxu0 0.0
    %2417 = vmatpush1.msra.mxu0 0.0
    %2418 = vmatprep.subr.mxu0 0.0
    %2419 = vmatpush1.msra.mxu0 0.0
    %2420 = vmatprep.subr.mxu0 0.0
    %2421 = vmatpush1.msra.mxu0 0.0
    %2422 = vmatprep.subr.mxu0 0.0
    %2423 = vmatpush1.msra.mxu0 0.0
    %2424 = vmatprep.subr.mxu0 0.0
    %2425 = vmatpush1.msra.mxu0 0.0
    %2426 = vmatprep.subr.mxu0 0.0
    %2427 = vmatpush1.msra.mxu0 0.0
    %2428 = vmatprep.subr.mxu0 0.0
    %2429 = vmatpush1.msra.mxu0 0.0
    %2430 = vmatprep.subr.mxu0 0.0
    %2431 = vmatpush1.msra.mxu0 0.0
    %2432 = vmatprep.subr.mxu0 0.0
    %2433 = vmatpush1.msra.mxu0 0.0
    %2434 = vmatprep.subr.mxu0 0.0
    %2435 = vmatpush1.msra.mxu0 0.0
    %2436 = vmatprep.subr.mxu0 0.0
    %2437 = vmatpush1.msra.mxu0 0.0
    %2438 = vmatprep.subr.mxu0 0.0
    %2439 = vmatpush1.msra.mxu0 0.0
    %2440 = vmatprep.subr.mxu0 0.0
    %2441 = vmatpush1.msra.mxu0 0.0
    %2442 = vmatprep.subr.mxu0 0.0
    %2443 = vmatpush1.msra.mxu0 0.0
    %2444 = vmatprep.subr.mxu0 0.0
    %2445 = vmatpush1.msra.mxu0 0.0
    %2446 = vmatprep.subr.mxu0 0.0
    %2447 = vmatpush1.msra.mxu0 0.0
    %2448 = vmatprep.subr.mxu0 0.0
    %2449 = vmatpush1.msra.mxu0 0.0
    %2450 = vmatprep.subr.mxu0 0.0
    %2451 = vmatpush1.msra.mxu0 0.0
    %2452 = vmatprep.subr.mxu0 0.0
    %2453 = vmatpush1.msra.mxu0 0.0
    %2454 = vmatprep.subr.mxu0 0.0
    %2455 = vmatpush1.msra.mxu0 0.0
    %2456 = vmatprep.mubr.f32.mxu0 0.0
    %2457 = vmatmul.mubr.f32.gmra.mrb[0].mxu0 %v1022
    %v2458 = vpop.f32.mrb[0].mxu0
    %v2459 = vadd.f32 0.0, %v2458
    %v2460 = vpop.f32.mrb[0].mxu0
    %v2461 = vadd.f32 0.0, %v2460
    %2462 = vdwg.mxu0
    %2463 = vmatprep.subr.mxu0 %v1367
    %2464 = vmatpush1.msra.mxu0 %v1366
    %2465 = vmatprep.subr.mxu0 %v1502
    %2466 = vmatpush1.msra.mxu0 %v1499
    %2467 = vmatprep.subr.mxu0 0.0
    %2468 = vmatpush1.msra.mxu0 0.0
    %2469 = vmatprep.subr.mxu0 0.0
    %2470 = vmatpush1.msra.mxu0 0.0
    %2471 = vmatprep.subr.mxu0 0.0
    %2472 = vmatpush1.msra.mxu0 0.0
    %2473 = vmatprep.subr.mxu0 0.0
    %2474 = vmatpush1.msra.mxu0 0.0
    %2475 = vmatprep.subr.mxu0 0.0
    %2476 = vmatpush1.msra.mxu0 0.0
    %2477 = vmatprep.subr.mxu0 0.0
    %2478 = vmatpush1.msra.mxu0 0.0
    %2479 = vmatprep.subr.mxu0 0.0
    %2480 = vmatpush1.msra.mxu0 0.0
    %2481 = vmatprep.subr.mxu0 0.0
    %2482 = vmatpush1.msra.mxu0 0.0
    %2483 = vmatprep.subr.mxu0 0.0
    %2484 = vmatpush1.msra.mxu0 0.0
    %2485 = vmatprep.subr.mxu0 0.0
    %2486 = vmatpush1.msra.mxu0 0.0
    %2487 = vmatprep.subr.mxu0 0.0
    %2488 = vmatpush1.msra.mxu0 0.0
    %2489 = vmatprep.subr.mxu0 0.0
    %2490 = vmatpush1.msra.mxu0 0.0
    %2491 = vmatprep.subr.mxu0 0.0
    %2492 = vmatpush1.msra.mxu0 0.0
    %2493 = vmatprep.subr.mxu0 0.0
    %2494 = vmatpush1.msra.mxu0 0.0
    %2495 = vmatprep.subr.mxu0 0.0
    %2496 = vmatpush1.msra.mxu0 0.0
    %2497 = vmatprep.subr.mxu0 0.0
    %2498 = vmatpush1.msra.mxu0 0.0
    %2499 = vmatprep.subr.mxu0 0.0
    %2500 = vmatpush1.msra.mxu0 0.0
    %2501 = vmatprep.subr.mxu0 0.0
    %2502 = vmatpush1.msra.mxu0 0.0
    %2503 = vmatprep.subr.mxu0 0.0
    %2504 = vmatpush1.msra.mxu0 0.0
    %2505 = vmatprep.subr.mxu0 0.0
    %2506 = vmatpush1.msra.mxu0 0.0
    %2507 = vmatprep.subr.mxu0 0.0
    %2508 = vmatpush1.msra.mxu0 0.0
    %2509 = vmatprep.subr.mxu0 0.0
    %2510 = vmatpush1.msra.mxu0 0.0
    %2511 = vmatprep.subr.mxu0 0.0
    %2512 = vmatpush1.msra.mxu0 0.0
    %2513 = vmatprep.subr.mxu0 0.0
    %2514 = vmatpush1.msra.mxu0 0.0
    %2515 = vmatprep.subr.mxu0 0.0
    %2516 = vmatpush1.msra.mxu0 0.0
    %2517 = vmatprep.subr.mxu0 0.0
    %2518 = vmatpush1.msra.mxu0 0.0
    %2519 = vmatprep.subr.mxu0 0.0
    %2520 = vmatpush1.msra.mxu0 0.0
    %2521 = vmatprep.subr.mxu0 0.0
    %2522 = vmatpush1.msra.mxu0 0.0
    %2523 = vmatprep.subr.mxu0 0.0
    %2524 = vmatpush1.msra.mxu0 0.0
    %2525 = vmatprep.subr.mxu0 0.0
    %2526 = vmatpush1.msra.mxu0 0.0
    %2527 = vmatprep.mubr.f32.mxu0 0.0
    %2528 = vmatmul.mubr.f32.gmra.mrb[0].mxu0 %v1022
    %v2529 = vpop.f32.mrb[0].mxu0
    %v2530 = vadd.f32 0.0, %v2529
    %v2531 = vpop.f32.mrb[0].mxu0
    %v2532 = vadd.f32 0.0, %v2531
    %2533 = vdwg.mxu0
    %2534 = vmatprep.subr.mxu0 %v1369
    %2535 = vmatpush1.msra.mxu0 %v1368
    %2536 = vmatprep.subr.mxu0 %v1508
    %2537 = vmatpush1.msra.mxu0 %v1505
    %2538 = vmatprep.subr.mxu0 0.0
    %2539 = vmatpush1.msra.mxu0 0.0
    %2540 = vmatprep.subr.mxu0 0.0
    %2541 = vmatpush1.msra.mxu0 0.0
    %2542 = vmatprep.subr.mxu0 0.0
    %2543 = vmatpush1.msra.mxu0 0.0
    %2544 = vmatprep.subr.mxu0 0.0
    %2545 = vmatpush1.msra.mxu0 0.0
    %2546 = vmatprep.subr.mxu0 0.0
    %2547 = vmatpush1.msra.mxu0 0.0
    %2548 = vmatprep.subr.mxu0 0.0
    %2549 = vmatpush1.msra.mxu0 0.0
    %2550 = vmatprep.subr.mxu0 0.0
    %2551 = vmatpush1.msra.mxu0 0.0
    %2552 = vmatprep.subr.mxu0 0.0
    %2553 = vmatpush1.msra.mxu0 0.0
    %2554 = vmatprep.subr.mxu0 0.0
    %2555 = vmatpush1.msra.mxu0 0.0
    %2556 = vmatprep.subr.mxu0 0.0
    %2557 = vmatpush1.msra.mxu0 0.0
    %2558 = vmatprep.subr.mxu0 0.0
    %2559 = vmatpush1.msra.mxu0 0.0
    %2560 = vmatprep.subr.mxu0 0.0
    %2561 = vmatpush1.msra.mxu0 0.0
    %2562 = vmatprep.subr.mxu0 0.0
    %2563 = vmatpush1.msra.mxu0 0.0
    %2564 = vmatprep.subr.mxu0 0.0
    %2565 = vmatpush1.msra.mxu0 0.0
    %2566 = vmatprep.subr.mxu0 0.0
    %2567 = vmatpush1.msra.mxu0 0.0
    %2568 = vmatprep.subr.mxu0 0.0
    %2569 = vmatpush1.msra.mxu0 0.0
    %2570 = vmatprep.subr.mxu0 0.0
    %2571 = vmatpush1.msra.mxu0 0.0
    %2572 = vmatprep.subr.mxu0 0.0
    %2573 = vmatpush1.msra.mxu0 0.0
    %2574 = vmatprep.subr.mxu0 0.0
    %2575 = vmatpush1.msra.mxu0 0.0
    %2576 = vmatprep.subr.mxu0 0.0
    %2577 = vmatpush1.msra.mxu0 0.0
    %2578 = vmatprep.subr.mxu0 0.0
    %2579 = vmatpush1.msra.mxu0 0.0
    %2580 = vmatprep.subr.mxu0 0.0
    %2581 = vmatpush1.msra.mxu0 0.0
    %2582 = vmatprep.subr.mxu0 0.0
    %2583 = vmatpush1.msra.mxu0 0.0
    %2584 = vmatprep.subr.mxu0 0.0
    %2585 = vmatpush1.msra.mxu0 0.0
    %2586 = vmatprep.subr.mxu0 0.0
    %2587 = vmatpush1.msra.mxu0 0.0
    %2588 = vmatprep.subr.mxu0 0.0
    %2589 = vmatpush1.msra.mxu0 0.0
    %2590 = vmatprep.subr.mxu0 0.0
    %2591 = vmatpush1.msra.mxu0 0.0
    %2592 = vmatprep.subr.mxu0 0.0
    %2593 = vmatpush1.msra.mxu0 0.0
    %2594 = vmatprep.subr.mxu0 0.0
    %2595 = vmatpush1.msra.mxu0 0.0
    %2596 = vmatprep.subr.mxu0 0.0
    %2597 = vmatpush1.msra.mxu0 0.0
    %2598 = vmatprep.mubr.f32.mxu0 0.0
    %2599 = vmatmul.mubr.f32.gmra.mrb[0].mxu0 %v1022
    %v2600 = vpop.f32.mrb[0].mxu0
    %v2601 = vadd.f32 0.0, %v2600
    %v2602 = vpop.f32.mrb[0].mxu0
    %v2603 = vadd.f32 0.0, %v2602
    %2604 = vdwg.mxu0
    %2605 = vmatprep.subr.mxu0 %v1371
    %2606 = vmatpush1.msra.mxu0 %v1370
    %2607 = vmatprep.subr.mxu0 %v1514
    %2608 = vmatpush1.msra.mxu0 %v1511
    %2609 = vmatprep.subr.mxu0 0.0
    %2610 = vmatpush1.msra.mxu0 0.0
    %2611 = vmatprep.subr.mxu0 0.0
    %2612 = vmatpush1.msra.mxu0 0.0
    %2613 = vmatprep.subr.mxu0 0.0
    %2614 = vmatpush1.msra.mxu0 0.0
    %2615 = vmatprep.subr.mxu0 0.0
    %2616 = vmatpush1.msra.mxu0 0.0
    %2617 = vmatprep.subr.mxu0 0.0
    %2618 = vmatpush1.msra.mxu0 0.0
    %2619 = vmatprep.subr.mxu0 0.0
    %2620 = vmatpush1.msra.mxu0 0.0
    %2621 = vmatprep.subr.mxu0 0.0
    %2622 = vmatpush1.msra.mxu0 0.0
    %2623 = vmatprep.subr.mxu0 0.0
    %2624 = vmatpush1.msra.mxu0 0.0
    %2625 = vmatprep.subr.mxu0 0.0
    %2626 = vmatpush1.msra.mxu0 0.0
    %2627 = vmatprep.subr.mxu0 0.0
    %2628 = vmatpush1.msra.mxu0 0.0
    %2629 = vmatprep.subr.mxu0 0.0
    %2630 = vmatpush1.msra.mxu0 0.0
    %2631 = vmatprep.subr.mxu0 0.0
    %2632 = vmatpush1.msra.mxu0 0.0
    %2633 = vmatprep.subr.mxu0 0.0
    %2634 = vmatpush1.msra.mxu0 0.0
    %2635 = vmatprep.subr.mxu0 0.0
    %2636 = vmatpush1.msra.mxu0 0.0
    %2637 = vmatprep.subr.mxu0 0.0
    %2638 = vmatpush1.msra.mxu0 0.0
    %2639 = vmatprep.subr.mxu0 0.0
    %2640 = vmatpush1.msra.mxu0 0.0
    %2641 = vmatprep.subr.mxu0 0.0
    %2642 = vmatpush1.msra.mxu0 0.0
    %2643 = vmatprep.subr.mxu0 0.0
    %2644 = vmatpush1.msra.mxu0 0.0
    %2645 = vmatprep.subr.mxu0 0.0
    %2646 = vmatpush1.msra.mxu0 0.0
    %2647 = vmatprep.subr.mxu0 0.0
    %2648 = vmatpush1.msra.mxu0 0.0
    %2649 = vmatprep.subr.mxu0 0.0
    %2650 = vmatpush1.msra.mxu0 0.0
    %2651 = vmatprep.subr.mxu0 0.0
    %2652 = vmatpush1.msra.mxu0 0.0
    %2653 = vmatprep.subr.mxu0 0.0
    %2654 = vmatpush1.msra.mxu0 0.0
    %2655 = vmatprep.subr.mxu0 0.0
    %2656 = vmatpush1.msra.mxu0 0.0
    %2657 = vmatprep.subr.mxu0 0.0
    %2658 = vmatpush1.msra.mxu0 0.0
    %2659 = vmatprep.subr.mxu0 0.0
    %2660 = vmatpush1.msra.mxu0 0.0
    %2661 = vmatprep.subr.mxu0 0.0
    %2662 = vmatpush1.msra.mxu0 0.0
    %2663 = vmatprep.subr.mxu0 0.0
    %2664 = vmatpush1.msra.mxu0 0.0
    %2665 = vmatprep.subr.mxu0 0.0
    %2666 = vmatpush1.msra.mxu0 0.0
    %2667 = vmatprep.subr.mxu0 0.0
    %2668 = vmatpush1.msra.mxu0 0.0
    %2669 = vmatprep.mubr.f32.mxu0 0.0
    %2670 = vmatmul.mubr.f32.gmra.mrb[0].mxu0 %v1022
    %v2671 = vpop.f32.mrb[0].mxu0
    %v2672 = vadd.f32 0.0, %v2671
    %v2673 = vpop.f32.mrb[0].mxu0
    %v2674 = vadd.f32 0.0, %v2673
    %2675 = vdwg.mxu0
    %2676 = vmatprep.subr.mxu0 %v1373
    %2677 = vmatpush1.msra.mxu0 %v1372
    %2678 = vmatprep.subr.mxu0 %v1520
    %2679 = vmatpush1.msra.mxu0 %v1517
    %2680 = vmatprep.subr.mxu0 0.0
    %2681 = vmatpush1.msra.mxu0 0.0
    %2682 = vmatprep.subr.mxu0 0.0
    %2683 = vmatpush1.msra.mxu0 0.0
    %2684 = vmatprep.subr.mxu0 0.0
    %2685 = vmatpush1.msra.mxu0 0.0
    %2686 = vmatprep.subr.mxu0 0.0
    %2687 = vmatpush1.msra.mxu0 0.0
    %2688 = vmatprep.subr.mxu0 0.0
    %2689 = vmatpush1.msra.mxu0 0.0
    %2690 = vmatprep.subr.mxu0 0.0
    %2691 = vmatpush1.msra.mxu0 0.0
    %2692 = vmatprep.subr.mxu0 0.0
    %2693 = vmatpush1.msra.mxu0 0.0
    %2694 = vmatprep.subr.mxu0 0.0
    %2695 = vmatpush1.msra.mxu0 0.0
    %2696 = vmatprep.subr.mxu0 0.0
    %2697 = vmatpush1.msra.mxu0 0.0
    %2698 = vmatprep.subr.mxu0 0.0
    %2699 = vmatpush1.msra.mxu0 0.0
    %2700 = vmatprep.subr.mxu0 0.0
    %2701 = vmatpush1.msra.mxu0 0.0
    %2702 = vmatprep.subr.mxu0 0.0
    %2703 = vmatpush1.msra.mxu0 0.0
    %2704 = vmatprep.subr.mxu0 0.0
    %2705 = vmatpush1.msra.mxu0 0.0
    %2706 = vmatprep.subr.mxu0 0.0
    %2707 = vmatpush1.msra.mxu0 0.0
    %2708 = vmatprep.subr.mxu0 0.0
    %2709 = vmatpush1.msra.mxu0 0.0
    %2710 = vmatprep.subr.mxu0 0.0
    %2711 = vmatpush1.msra.mxu0 0.0
    %2712 = vmatprep.subr.mxu0 0.0
    %2713 = vmatpush1.msra.mxu0 0.0
    %2714 = vmatprep.subr.mxu0 0.0
    %2715 = vmatpush1.msra.mxu0 0.0
    %2716 = vmatprep.subr.mxu0 0.0
    %2717 = vmatpush1.msra.mxu0 0.0
    %2718 = vmatprep.subr.mxu0 0.0
    %2719 = vmatpush1.msra.mxu0 0.0
    %2720 = vmatprep.subr.mxu0 0.0
    %2721 = vmatpush1.msra.mxu0 0.0
    %2722 = vmatprep.subr.mxu0 0.0
    %2723 = vmatpush1.msra.mxu0 0.0
    %2724 = vmatprep.subr.mxu0 0.0
    %2725 = vmatpush1.msra.mxu0 0.0
    %2726 = vmatprep.subr.mxu0 0.0
    %2727 = vmatpush1.msra.mxu0 0.0
    %2728 = vmatprep.subr.mxu0 0.0
    %2729 = vmatpush1.msra.mxu0 0.0
    %2730 = vmatprep.subr.mxu0 0.0
    %2731 = vmatpush1.msra.mxu0 0.0
    %2732 = vmatprep.subr.mxu0 0.0
    %2733 = vmatpush1.msra.mxu0 0.0
    %2734 = vmatprep.subr.mxu0 0.0
    %2735 = vmatpush1.msra.mxu0 0.0
    %2736 = vmatprep.subr.mxu0 0.0
    %2737 = vmatpush1.msra.mxu0 0.0
    %2738 = vmatprep.subr.mxu0 0.0
    %2739 = vmatpush1.msra.mxu0 0.0
    %2740 = vmatprep.mubr.f32.mxu0 0.0
    %2741 = vmatmul.mubr.f32.gmra.mrb[0].mxu0 %v1022
    %v2742 = vpop.f32.mrb[0].mxu0
    %v2743 = vadd.f32 0.0, %v2742
    %v2744 = vpop.f32.mrb[0].mxu0
    %v2745 = vadd.f32 0.0, %v2744
    %2746 = vdwg.mxu0
    %2747 = vmatprep.subr.mxu0 %v1375
    %2748 = vmatpush1.msra.mxu0 %v1374
    %2749 = vmatprep.subr.mxu0 %v1526
    %2750 = vmatpush1.msra.mxu0 %v1523
    %2751 = vmatprep.subr.mxu0 0.0
    %2752 = vmatpush1.msra.mxu0 0.0
    %2753 = vmatprep.subr.mxu0 0.0
    %2754 = vmatpush1.msra.mxu0 0.0
    %2755 = vmatprep.subr.mxu0 0.0
    %2756 = vmatpush1.msra.mxu0 0.0
    %2757 = vmatprep.subr.mxu0 0.0
    %2758 = vmatpush1.msra.mxu0 0.0
    %2759 = vmatprep.subr.mxu0 0.0
    %2760 = vmatpush1.msra.mxu0 0.0
    %2761 = vmatprep.subr.mxu0 0.0
    %2762 = vmatpush1.msra.mxu0 0.0
    %2763 = vmatprep.subr.mxu0 0.0
    %2764 = vmatpush1.msra.mxu0 0.0
    %2765 = vmatprep.subr.mxu0 0.0
    %2766 = vmatpush1.msra.mxu0 0.0
    %2767 = vmatprep.subr.mxu0 0.0
    %2768 = vmatpush1.msra.mxu0 0.0
    %2769 = vmatprep.subr.mxu0 0.0
    %2770 = vmatpush1.msra.mxu0 0.0
    %2771 = vmatprep.subr.mxu0 0.0
    %2772 = vmatpush1.msra.mxu0 0.0
    %2773 = vmatprep.subr.mxu0 0.0
    %2774 = vmatpush1.msra.mxu0 0.0
    %2775 = vmatprep.subr.mxu0 0.0
    %2776 = vmatpush1.msra.mxu0 0.0
    %2777 = vmatprep.subr.mxu0 0.0
    %2778 = vmatpush1.msra.mxu0 0.0
    %2779 = vmatprep.subr.mxu0 0.0
    %2780 = vmatpush1.msra.mxu0 0.0
    %2781 = vmatprep.subr.mxu0 0.0
    %2782 = vmatpush1.msra.mxu0 0.0
    %2783 = vmatprep.subr.mxu0 0.0
    %2784 = vmatpush1.msra.mxu0 0.0
    %2785 = vmatprep.subr.mxu0 0.0
    %2786 = vmatpush1.msra.mxu0 0.0
    %2787 = vmatprep.subr.mxu0 0.0
    %2788 = vmatpush1.msra.mxu0 0.0
    %2789 = vmatprep.subr.mxu0 0.0
    %2790 = vmatpush1.msra.mxu0 0.0
    %2791 = vmatprep.subr.mxu0 0.0
    %2792 = vmatpush1.msra.mxu0 0.0
    %2793 = vmatprep.subr.mxu0 0.0
    %2794 = vmatpush1.msra.mxu0 0.0
    %2795 = vmatprep.subr.mxu0 0.0
    %2796 = vmatpush1.msra.mxu0 0.0
    %2797 = vmatprep.subr.mxu0 0.0
    %2798 = vmatpush1.msra.mxu0 0.0
    %2799 = vmatprep.subr.mxu0 0.0
    %2800 = vmatpush1.msra.mxu0 0.0
    %2801 = vmatprep.subr.mxu0 0.0
    %2802 = vmatpush1.msra.mxu0 0.0
    %2803 = vmatprep.subr.mxu0 0.0
    %2804 = vmatpush1.msra.mxu0 0.0
    %2805 = vmatprep.subr.mxu0 0.0
    %2806 = vmatpush1.msra.mxu0 0.0
    %2807 = vmatprep.subr.mxu0 0.0
    %2808 = vmatpush1.msra.mxu0 0.0
    %2809 = vmatprep.subr.mxu0 0.0
    %2810 = vmatpush1.msra.mxu0 0.0
    %2811 = vmatprep.mubr.f32.mxu0 0.0
    %2812 = vmatmul.mubr.f32.gmra.mrb[0].mxu0 %v1022
    %v2813 = vpop.f32.mrb[0].mxu0
    %v2814 = vadd.f32 0.0, %v2813
    %v2815 = vpop.f32.mrb[0].mxu0
    %v2816 = vadd.f32 0.0, %v2815
    %2817 = vdwg.mxu0
    %2818 = vmatprep.subr.mxu0 %v1377
    %2819 = vmatpush1.msra.mxu0 %v1376
    %2820 = vmatprep.subr.mxu0 %v1532
    %2821 = vmatpush1.msra.mxu0 %v1529
    %2822 = vmatprep.subr.mxu0 0.0
    %2823 = vmatpush1.msra.mxu0 0.0
    %2824 = vmatprep.subr.mxu0 0.0
    %2825 = vmatpush1.msra.mxu0 0.0
    %2826 = vmatprep.subr.mxu0 0.0
    %2827 = vmatpush1.msra.mxu0 0.0
    %2828 = vmatprep.subr.mxu0 0.0
    %2829 = vmatpush1.msra.mxu0 0.0
    %2830 = vmatprep.subr.mxu0 0.0
    %2831 = vmatpush1.msra.mxu0 0.0
    %2832 = vmatprep.subr.mxu0 0.0
    %2833 = vmatpush1.msra.mxu0 0.0
    %2834 = vmatprep.subr.mxu0 0.0
    %2835 = vmatpush1.msra.mxu0 0.0
    %2836 = vmatprep.subr.mxu0 0.0
    %2837 = vmatpush1.msra.mxu0 0.0
    %2838 = vmatprep.subr.mxu0 0.0
    %2839 = vmatpush1.msra.mxu0 0.0
    %2840 = vmatprep.subr.mxu0 0.0
    %2841 = vmatpush1.msra.mxu0 0.0
    %2842 = vmatprep.subr.mxu0 0.0
    %2843 = vmatpush1.msra.mxu0 0.0
    %2844 = vmatprep.subr.mxu0 0.0
    %2845 = vmatpush1.msra.mxu0 0.0
    %2846 = vmatprep.subr.mxu0 0.0
    %2847 = vmatpush1.msra.mxu0 0.0
    %2848 = vmatprep.subr.mxu0 0.0
    %2849 = vmatpush1.msra.mxu0 0.0
    %2850 = vmatprep.subr.mxu0 0.0
    %2851 = vmatpush1.msra.mxu0 0.0
    %2852 = vmatprep.subr.mxu0 0.0
    %2853 = vmatpush1.msra.mxu0 0.0
    %2854 = vmatprep.subr.mxu0 0.0
    %2855 = vmatpush1.msra.mxu0 0.0
    %2856 = vmatprep.subr.mxu0 0.0
    %2857 = vmatpush1.msra.mxu0 0.0
    %2858 = vmatprep.subr.mxu0 0.0
    %2859 = vmatpush1.msra.mxu0 0.0
    %2860 = vmatprep.subr.mxu0 0.0
    %2861 = vmatpush1.msra.mxu0 0.0
    %2862 = vmatprep.subr.mxu0 0.0
    %2863 = vmatpush1.msra.mxu0 0.0
    %2864 = vmatprep.subr.mxu0 0.0
    %2865 = vmatpush1.msra.mxu0 0.0
    %2866 = vmatprep.subr.mxu0 0.0
    %2867 = vmatpush1.msra.mxu0 0.0
    %2868 = vmatprep.subr.mxu0 0.0
    %2869 = vmatpush1.msra.mxu0 0.0
    %2870 = vmatprep.subr.mxu0 0.0
    %2871 = vmatpush1.msra.mxu0 0.0
    %2872 = vmatprep.subr.mxu0 0.0
    %2873 = vmatpush1.msra.mxu0 0.0
    %2874 = vmatprep.subr.mxu0 0.0
    %2875 = vmatpush1.msra.mxu0 0.0
    %2876 = vmatprep.subr.mxu0 0.0
    %2877 = vmatpush1.msra.mxu0 0.0
    %2878 = vmatprep.subr.mxu0 0.0
    %2879 = vmatpush1.msra.mxu0 0.0
    %2880 = vmatprep.subr.mxu0 0.0
    %2881 = vmatpush1.msra.mxu0 0.0
    %2882 = vmatprep.mubr.f32.mxu0 0.0
    %2883 = vmatmul.mubr.f32.gmra.mrb[0].mxu0 %v1022
    %v2884 = vpop.f32.mrb[0].mxu0
    %v2885 = vadd.f32 0.0, %v2884
    %v2886 = vpop.f32.mrb[0].mxu0
    %v2887 = vadd.f32 0.0, %v2886
    %2888 = vdwg.mxu0
    %2889 = vmatprep.subr.mxu0 %v1379
    %2890 = vmatpush1.msra.mxu0 %v1378
    %2891 = vmatprep.subr.mxu0 %v1538
    %2892 = vmatpush1.msra.mxu0 %v1535
    %2893 = vmatprep.subr.mxu0 0.0
    %2894 = vmatpush1.msra.mxu0 0.0
    %2895 = vmatprep.subr.mxu0 0.0
    %2896 = vmatpush1.msra.mxu0 0.0
    %2897 = vmatprep.subr.mxu0 0.0
    %2898 = vmatpush1.msra.mxu0 0.0
    %2899 = vmatprep.subr.mxu0 0.0
    %2900 = vmatpush1.msra.mxu0 0.0
    %2901 = vmatprep.subr.mxu0 0.0
    %2902 = vmatpush1.msra.mxu0 0.0
    %2903 = vmatprep.subr.mxu0 0.0
    %2904 = vmatpush1.msra.mxu0 0.0
    %2905 = vmatprep.subr.mxu0 0.0
    %2906 = vmatpush1.msra.mxu0 0.0
    %2907 = vmatprep.subr.mxu0 0.0
    %2908 = vmatpush1.msra.mxu0 0.0
    %2909 = vmatprep.subr.mxu0 0.0
    %2910 = vmatpush1.msra.mxu0 0.0
    %2911 = vmatprep.subr.mxu0 0.0
    %2912 = vmatpush1.msra.mxu0 0.0
    %2913 = vmatprep.subr.mxu0 0.0
    %2914 = vmatpush1.msra.mxu0 0.0
    %2915 = vmatprep.subr.mxu0 0.0
    %2916 = vmatpush1.msra.mxu0 0.0
    %2917 = vmatprep.subr.mxu0 0.0
    %2918 = vmatpush1.msra.mxu0 0.0
    %2919 = vmatprep.subr.mxu0 0.0
    %2920 = vmatpush1.msra.mxu0 0.0
    %2921 = vmatprep.subr.mxu0 0.0
    %2922 = vmatpush1.msra.mxu0 0.0
    %2923 = vmatprep.subr.mxu0 0.0
    %2924 = vmatpush1.msra.mxu0 0.0
    %2925 = vmatprep.subr.mxu0 0.0
    %2926 = vmatpush1.msra.mxu0 0.0
    %2927 = vmatprep.subr.mxu0 0.0
    %2928 = vmatpush1.msra.mxu0 0.0
    %2929 = vmatprep.subr.mxu0 0.0
    %2930 = vmatpush1.msra.mxu0 0.0
    %2931 = vmatprep.subr.mxu0 0.0
    %2932 = vmatpush1.msra.mxu0 0.0
    %2933 = vmatprep.subr.mxu0 0.0
    %2934 = vmatpush1.msra.mxu0 0.0
    %2935 = vmatprep.subr.mxu0 0.0
    %2936 = vmatpush1.msra.mxu0 0.0
    %2937 = vmatprep.subr.mxu0 0.0
    %2938 = vmatpush1.msra.mxu0 0.0
    %2939 = vmatprep.subr.mxu0 0.0
    %2940 = vmatpush1.msra.mxu0 0.0
    %2941 = vmatprep.subr.mxu0 0.0
    %2942 = vmatpush1.msra.mxu0 0.0
    %2943 = vmatprep.subr.mxu0 0.0
    %2944 = vmatpush1.msra.mxu0 0.0
    %2945 = vmatprep.subr.mxu0 0.0
    %2946 = vmatpush1.msra.mxu0 0.0
    %2947 = vmatprep.subr.mxu0 0.0
    %2948 = vmatpush1.msra.mxu0 0.0
    %2949 = vmatprep.subr.mxu0 0.0
    %2950 = vmatpush1.msra.mxu0 0.0
    %2951 = vmatprep.subr.mxu0 0.0
    %2952 = vmatpush1.msra.mxu0 0.0
    %2953 = vmatprep.mubr.f32.mxu0 0.0
    %2954 = vmatmul.mubr.f32.gmra.mrb[0].mxu0 %v1022
    %v2955 = vpop.f32.mrb[0].mxu0
    %v2956 = vadd.f32 0.0, %v2955
    %v2957 = vpop.f32.mrb[0].mxu0
    %v2958 = vadd.f32 0.0, %v2957
    %2959 = vdwg.mxu0
    %2960 = vst [vmem:[%s8] sm:$0x1f] %v1607
    %2961 = vst [vmem:[%s8 + $0x8] sm:$0x1f] %v1609
    %2962 = vst [vmem:[%s8 + $0x10] sm:$0x1f] %v1678
    %2963 = vst [vmem:[%s8 + $0x18] sm:$0x1f] %v1680
    %2964 = vst [vmem:[%s8 + $0x20] sm:$0x1f] %v1749
    %2965 = vst [vmem:[%s8 + $0x28] sm:$0x1f] %v1751
    %2966 = vst [vmem:[%s8 + $0x30] sm:$0x1f] %v1820
    %2967 = vst [vmem:[%s8 + $0x38] sm:$0x1f] %v1822
    %2968 = vst [vmem:[%s8 + $0x40] sm:$0x1f] %v1891
    %2969 = vst [vmem:[%s8 + $0x48] sm:$0x1f] %v1893
    %2970 = vst [vmem:[%s8 + $0x50] sm:$0x1f] %v1962
    %2971 = vst [vmem:[%s8 + $0x58] sm:$0x1f] %v1964
    %2972 = vst [vmem:[%s8 + $0x60] sm:$0x1f] %v2033
    %2973 = vst [vmem:[%s8 + $0x68] sm:$0x1f] %v2035
    %2974 = vst [vmem:[%s8 + $0x70] sm:$0x1f] %v2104
    %2975 = vst [vmem:[%s8 + $0x78] sm:$0x1f] %v2106
    %2976 = vst [vmem:[%s8 + $0x80] sm:$0x1f] %v2175
    %2977 = vst [vmem:[%s8 + $0x88] sm:$0x1f] %v2177
    %2978 = vst [vmem:[%s8 + $0x90] sm:$0x1f] %v2246
    %2979 = vst [vmem:[%s8 + $0x98] sm:$0x1f] %v2248
    %2980 = vst [vmem:[%s8 + $0xa0] sm:$0x1f] %v2317
    %2981 = vst [vmem:[%s8 + $0xa8] sm:$0x1f] %v2319
    %2982 = vst [vmem:[%s8 + $0xb0] sm:$0x1f] %v2388
    %2983 = vst [vmem:[%s8 + $0xb8] sm:$0x1f] %v2390
    %2984 = vst [vmem:[%s8 + $0xc0] sm:$0x1f] %v2459
    %2985 = vst [vmem:[%s8 + $0xc8] sm:$0x1f] %v2461
    %2986 = vst [vmem:[%s8 + $0xd0] sm:$0x1f] %v2530
    %2987 = vst [vmem:[%s8 + $0xd8] sm:$0x1f] %v2532
    %2988 = vst [vmem:[%s8 + $0xe0] sm:$0x1f] %v2601
    %2989 = vst [vmem:[%s8 + $0xe8] sm:$0x1f] %v2603
    %2990 = vst [vmem:[%s8 + $0xf0] sm:$0x1f] %v2672
    %2991 = vst [vmem:[%s8 + $0xf8] sm:$0x1f] %v2674
    %2992 = vst [vmem:[%s8 + $0x100] sm:$0x1f] %v2743
    %2993 = vst [vmem:[%s8 + $0x108] sm:$0x1f] %v2745
    %2994 = vst [vmem:[%s8 + $0x110] sm:$0x1f] %v2814
    %2995 = vst [vmem:[%s8 + $0x118] sm:$0x1f] %v2816
    %2996 = vst [vmem:[%s8 + $0x120] sm:$0x1f] %v2885
    %2997 = vst [vmem:[%s8 + $0x128] sm:$0x1f] %v2887
    %2998 = vst [vmem:[%s8 + $0x130] sm:$0x1f] %v2956
    %vm2999 = vcmask 61440
    %3000 = vst.msk [vmem:[%s8 + $0x138] sm:$0x1f] %vm2999, %v2958
    %v3002 = vsel %vm106, %v256, 0.0
    %v3003 = vrot.slane %v3002, 4
    %v3004 = vadd.f32 %v3002, %v3003
    %v3005 = vrot.slane %v3004, 2
    %v3006 = vadd.f32 %v3004, %v3005
    %v3007 = vrot.slane %v3006, 1
    %v3008 = vadd.f32 %v3006, %v3007
    %v3009 = vsel %vm106, %v264, 0.0
    %v3010 = vrot.slane %v3009, 4
    %v3011 = vadd.f32 %v3009, %v3010
    %v3012 = vrot.slane %v3011, 2
    %v3013 = vadd.f32 %v3011, %v3012
    %v3014 = vrot.slane %v3013, 1
    %v3015 = vadd.f32 %v3013, %v3014
    %v3016 = vsel %vm106, %v263, 0.0
    %v3017 = vrot.slane %v3016, 4
    %v3018 = vadd.f32 %v3016, %v3017
    %v3019 = vrot.slane %v3018, 2
    %v3020 = vadd.f32 %v3018, %v3019
    %v3021 = vrot.slane %v3020, 1
    %v3022 = vadd.f32 %v3020, %v3021
    %v3023 = vsel %vm106, %v265, 0.0
    %v3024 = vrot.slane %v3023, 4
    %v3025 = vadd.f32 %v3023, %v3024
    %v3026 = vrot.slane %v3025, 2
    %v3027 = vadd.f32 %v3025, %v3026
    %v3028 = vrot.slane %v3027, 1
    %v3029 = vadd.f32 %v3027, %v3028
    %v3030 = vsel %vm106, %v273, 0.0
    %v3031 = vrot.slane %v3030, 4
    %v3032 = vadd.f32 %v3030, %v3031
    %v3033 = vrot.slane %v3032, 2
    %v3034 = vadd.f32 %v3032, %v3033
    %v3035 = vrot.slane %v3034, 1
    %v3036 = vadd.f32 %v3034, %v3035
    %v3037 = vsel %vm106, %v281, 0.0
    %v3038 = vrot.slane %v3037, 4
    %v3039 = vadd.f32 %v3037, %v3038
    %v3040 = vrot.slane %v3039, 2
    %v3041 = vadd.f32 %v3039, %v3040
    %v3042 = vrot.slane %v3041, 1
    %v3043 = vadd.f32 %v3041, %v3042
    %v3044 = vsel %vm106, %v280, 0.0
    %v3045 = vrot.slane %v3044, 4
    %v3046 = vadd.f32 %v3044, %v3045
    %v3047 = vrot.slane %v3046, 2
    %v3048 = vadd.f32 %v3046, %v3047
    %v3049 = vrot.slane %v3048, 1
    %v3050 = vadd.f32 %v3048, %v3049
    %v3051 = vsel %vm120, %v282, 0.0
    %v3052 = vrot.slane %v3051, 4
    %v3053 = vadd.f32 %v3051, %v3052
    %v3054 = vrot.slane %v3053, 2
    %v3055 = vadd.f32 %v3053, %v3054
    %v3056 = vrot.slane %v3055, 1
    %v3057 = vadd.f32 %v3055, %v3056
    %vm3058 = vcmask 1044480
    %v3059 = vsel %vm3058, %v1114, 0.0
    %v3060 = vrot.slane %v3059, 4
    %v3061 = vadd.f32 %v3059, %v3060
    %v3062 = vrot.slane %v3061, 2
    %v3063 = vadd.f32 %v3061, %v3062
    %v3064 = vrot.slane %v3063, 1
    %v3065 = vadd.f32 %v3063, %v3064
    %v3066 = vsel %vm3058, %v1116, 0.0
    %v3067 = vrot.slane %v3066, 4
    %v3068 = vadd.f32 %v3066, %v3067
    %v3069 = vrot.slane %v3068, 2
    %v3070 = vadd.f32 %v3068, %v3069
    %v3071 = vrot.slane %v3070, 1
    %v3072 = vadd.f32 %v3070, %v3071
    %v3073 = vsel %vm3058, %v1185, 0.0
    %v3074 = vrot.slane %v3073, 4
    %v3075 = vadd.f32 %v3073, %v3074
    %v3076 = vrot.slane %v3075, 2
    %v3077 = vadd.f32 %v3075, %v3076
    %v3078 = vrot.slane %v3077, 1
    %v3079 = vadd.f32 %v3077, %v3078
    %v3080 = vsel %vm3058, %v1187, 0.0
    %v3081 = vrot.slane %v3080, 4
    %v3082 = vadd.f32 %v3080, %v3081
    %v3083 = vrot.slane %v3082, 2
    %v3084 = vadd.f32 %v3082, %v3083
    %v3085 = vrot.slane %v3084, 1
    %v3086 = vadd.f32 %v3084, %v3085
    %v3087 = vsel %vm3058, %v1256, 0.0
    %v3088 = vrot.slane %v3087, 4
    %v3089 = vadd.f32 %v3087, %v3088
    %v3090 = vrot.slane %v3089, 2
    %v3091 = vadd.f32 %v3089, %v3090
    %v3092 = vrot.slane %v3091, 1
    %v3093 = vadd.f32 %v3091, %v3092
    %v3094 = vsel %vm3058, %v1258, 0.0
    %v3095 = vrot.slane %v3094, 4
    %v3096 = vadd.f32 %v3094, %v3095
    %v3097 = vrot.slane %v3096, 2
    %v3098 = vadd.f32 %v3096, %v3097
    %v3099 = vrot.slane %v3098, 1
    %v3100 = vadd.f32 %v3098, %v3099
    %v3101 = vsel %vm3058, %v1327, 0.0
    %v3102 = vrot.slane %v3101, 4
    %v3103 = vadd.f32 %v3101, %v3102
    %v3104 = vrot.slane %v3103, 2
    %v3105 = vadd.f32 %v3103, %v3104
    %v3106 = vrot.slane %v3105, 1
    %v3107 = vadd.f32 %v3105, %v3106
    %v3108 = vsel %vm1338, %v1329, 0.0
    %v3109 = vrot.slane %v3108, 4
    %v3110 = vadd.f32 %v3108, %v3109
    %v3111 = vrot.slane %v3110, 2
    %v3112 = vadd.f32 %v3110, %v3111
    %v3113 = vrot.slane %v3112, 1
    %v3114 = vadd.f32 %v3112, %v3113
    %v3115 = vmul.f32 %v3008, %v3065
    %v3116 = vmul.f32 %v3015, %v3072
    %v3117 = vmul.f32 %v3022, %v3079
    %v3118 = vmul.f32 %v3029, %v3086
    %v3119 = vmul.f32 %v3036, %v3093
    %v3120 = vmul.f32 %v3043, %v3100
    %v3121 = vmul.f32 %v3050, %v3107
    %v3122 = vmul.f32 %v3057, %v3114
    %v3123 = vadd.f32 %v3115, %v3116
    %v3124 = vadd.f32 %v3123, %v3117
    %v3125 = vadd.f32 %v3124, %v3118
    %v3126 = vadd.f32 %v3125, %v3119
    %v3127 = vadd.f32 %v3126, %v3120
    %v3128 = vadd.f32 %v3127, %v3121
    %v3129 = vsel %vm101, %v3122, 0.0
    %v3130 = vadd.f32 %v3128, %v3129
    %3131 = vadd.xlane.f32.xlu0 %v3130
    %v3132 = vpop.xlane.xlu0 %3131
    %v3133 = vmul.f32 %v3132, 0.5
    %vm3134 = vcmask 0
    %3135 = vst.msk [vmem:[#allocation14] sm:$0x1] %vm3134, %v3133
    // Predicated region
    $region26: #{prompt_forward.1} parent=1 // pred_check
      _
    $region27: #{prompt_forward.1} parent=1 // pred_check_branch
      %3137 = sbr.rel (0) target = $region29
    $region28: #{prompt_forward.1} parent=1 // pred_region
      %s3139 = ssub.s32 2048, 2048
      %3140 = vsyncadd [#allocation4], %s3139
      %s3141 = sshll.u32 [#allocation8], 4
      %s3142 = int_to_ptr.vmem [resolvable:$true] %s3141
      %3147 = dma.vmem_to_hbm [thread:$0]  %s3142, 2048, %s3, [#allocation4], 1024, 1024, 64
    $region29: #{prompt_forward.1} parent=1 // pred_fallthru
      _
    // Predicated region
    $region30: #{prompt_forward.1} parent=1 // pred_check
      _
    $region31: #{prompt_forward.1} parent=1 // pred_check_branch
      %3149 = sbr.rel (0) target = $region33
    $region32: #{prompt_forward.1} parent=1 // pred_region
      %s3151 = ssub.s32 256, 256
      %3152 = vsyncadd [#allocation10], %s3151
      %s3154 = sshll.u32 [#allocation9], 4
      %s3155 = int_to_ptr.vmem [resolvable:$true] %s3154
      %3157 = dma.vmem_to_hbm [thread:$0]  %s3155, 256, %s4, [#allocation10]
    $region33: #{prompt_forward.1} parent=1 // pred_fallthru
      _
    // Predicated region
    $region34: #{prompt_forward.1} parent=1 // pred_check
      _
    $region35: #{prompt_forward.1} parent=1 // pred_check_branch
      %3159 = sbr.rel (0) target = $region37
    $region36: #{prompt_forward.1} parent=1 // pred_region
      %s3161 = ssub.s32 32, 32
      %3162 = vsyncadd [#allocation10], %s3161
      %s3164 = sshll.u32 [#allocation11], 4
      %s3165 = int_to_ptr.vmem [resolvable:$true] %s3164
      %3167 = dma.vmem_to_hbm [thread:$0]  %s3165, 32, %s5, [#allocation10]
    $region37: #{prompt_forward.1} parent=1 // pred_fallthru
      _
    // Predicated region
    $region38: #{prompt_forward.1} parent=1 // pred_check
      _
    $region39: #{prompt_forward.1} parent=1 // pred_check_branch
      %3169 = sbr.rel (0) target = $region41
    $region40: #{prompt_forward.1} parent=1 // pred_region
      %s3171 = ssub.s32 32, 32
      %3172 = vsyncadd [#allocation13], %s3171
      %s3174 = sshll.u32 [#allocation12], 4
      %s3175 = int_to_ptr.vmem [resolvable:$true] %s3174
      %3177 = dma.vmem_to_hbm [thread:$0]  %s3175, 32, %s6, [#allocation13]
    $region41: #{prompt_forward.1} parent=1 // pred_fallthru
      _
    // Predicated region
    $region42: #{prompt_forward.1} parent=1 // pred_check
      _
    $region43: #{prompt_forward.1} parent=1 // pred_check_branch
      %3179 = sbr.rel (0) target = $region45
    $region44: #{prompt_forward.1} parent=1 // pred_region
      _
    $region45: #{prompt_forward.1} parent=1 // pred_fallthru
      _
    // Predicated region
    $region46: #{prompt_forward.1} parent=1 // pred_check
      _
    $region47: #{prompt_forward.1} parent=1 // pred_check_branch
      %3181 = sbr.rel (0) target = $region49
    $region48: #{prompt_forward.1} parent=1 // pred_region
      _
    $region49: #{prompt_forward.1} parent=1 // pred_fallthru
      _
    // Predicated region
    $region50: #{prompt_forward.1} parent=1 // pred_check
      _
    $region51: #{prompt_forward.1} parent=1 // pred_check_branch
      %3183 = sbr.rel (0) target = $region53
    $region52: #{prompt_forward.1} parent=1 // pred_region
      %s3185 = ssub.s32 16, 16
      %3186 = vsyncadd [#allocation13], %s3185
      %s3188 = sshll.u32 [#allocation14], 4
      %s3189 = int_to_ptr.vmem [resolvable:$true] %s3188
      %3191 = dma.vmem_to_hbm [thread:$0]  %s3189, 16, %s9, [#allocation13]
    $region53: #{prompt_forward.1} parent=1 // pred_fallthru
      _
    // Predicated region
    $region54: #{prompt_forward.1} parent=1 // pred_check
      _
    $region55: #{prompt_forward.1} parent=1 // pred_check_branch
      %3193 = sbr.rel (0) target = $region57
    $region56: #{prompt_forward.1} parent=1 // pred_region
      %3194 = dma.done [#allocation4], 2048
    $region57: #{prompt_forward.1} parent=1 // pred_fallthru
      _
    // Predicated region
    $region58: #{prompt_forward.1} parent=1 // pred_check
      _
    $region59: #{prompt_forward.1} parent=1 // pred_check_branch
      %3196 = sbr.rel (0) target = $region61
    $region60: #{prompt_forward.1} parent=1 // pred_region
      %3197 = dma.done [#allocation10], 256
    $region61: #{prompt_forward.1} parent=1 // pred_fallthru
      _
    // Predicated region
    $region62: #{prompt_forward.1} parent=1 // pred_check
      _
    $region63: #{prompt_forward.1} parent=1 // pred_check_branch
      %3199 = sbr.rel (0) target = $region65
    $region64: #{prompt_forward.1} parent=1 // pred_region
      %3200 = dma.done [#allocation10], 32
    $region65: #{prompt_forward.1} parent=1 // pred_fallthru
      _
    // Predicated region
    $region66: #{prompt_forward.1} parent=1 // pred_check
      _
    $region67: #{prompt_forward.1} parent=1 // pred_check_branch
      %3202 = sbr.rel (0) target = $region69
    $region68: #{prompt_forward.1} parent=1 // pred_region
      %3203 = dma.done [#allocation13], 32
    $region69: #{prompt_forward.1} parent=1 // pred_fallthru
      _
    // Predicated region
    $region70: #{prompt_forward.1} parent=1 // pred_check
      _
    $region71: #{prompt_forward.1} parent=1 // pred_check_branch
      %3205 = sbr.rel (0) target = $region73
    $region72: #{prompt_forward.1} parent=1 // pred_region
      _
    $region73: #{prompt_forward.1} parent=1 // pred_fallthru
      _
    // Predicated region
    $region74: #{prompt_forward.1} parent=1 // pred_check
      _
    $region75: #{prompt_forward.1} parent=1 // pred_check_branch
      %3207 = sbr.rel (0) target = $region77
    $region76: #{prompt_forward.1} parent=1 // pred_region
      _
    $region77: #{prompt_forward.1} parent=1 // pred_fallthru
      _
    // Predicated region
    $region78: #{prompt_forward.1} parent=1 // pred_check
      _
    $region79: #{prompt_forward.1} parent=1 // pred_check_branch
      %3209 = sbr.rel (0) target = $region81
    $region80: #{prompt_forward.1} parent=1 // pred_region
      %3210 = dma.done [#allocation13], 16
    $region81: #{prompt_forward.1} parent=1 // pred_fallthru
      _
    %3211 = vsyncpa [#allocation3], 1
    %3212 = vsyncpa [#allocation6], 1
    %3213 = vsyncpa [#allocation4], 1
    %3214 = vsyncpa [#allocation10], 1
    %3215 = vsyncpa [#allocation13], 1

</llo_original>
